<compile_context>
chip_gen: v5e
topology: v5e:2x2
jax: 0.10.0
libtpu: 0.0.40
codegen_flags: <defaults>
</compile_context>

<pallas_src>
import jax
import jax.numpy as jnp
from jax.experimental import pallas as pl
from jax.experimental.pallas import tpu as pltpu


def _round_up(x, m):
    return ((x + m - 1) // m) * m


# ---------------------------------------------------------------------------
# Fused kernel: one grid step == one GRU layer.
# ---------------------------------------------------------------------------
def _stacked_gru_kernel(x_ref, h0_ref, w_ref, b_ref, hn_ref, lhs_scratch):
    """Refs (Bp/Hp/Kp are 8/128-aligned padded sizes):

    x_ref       : (Bp, Kp)            zero-padded layer-0 input
    h0_ref      : (1, Bp, Hp)         h0[l]
    w_ref       : (1, Kp + Hp, 4*Hp)  fused per-layer weight
    b_ref       : (1, 1, 4*Hp)        fused per-layer bias
    hn_ref      : (1, Bp, Hp)         hn[l] output
    lhs_scratch : (Bp, Kp + Hp)       VMEM-resident fused LHS [layer_input | h],
                                      carries the layer input across grid steps.
    """
    l = pl.program_id(0)
    Hp = h0_ref.shape[-1]
    Kp = lhs_scratch.shape[-1] - Hp

    # Layer 0 reads the external input; layers >= 1 reuse the previous layer's
    # output already sitting in lhs_scratch[:, :Hp] (written at end of prev step).
    @pl.when(l == 0)
    def _():
        lhs_scratch[:, 0:Kp] = x_ref[...]

    h = h0_ref[0]                       # (Bp, Hp), f32
    lhs_scratch[:, Kp:] = h             # hidden half of the fused LHS

    # One MXU matmul per layer: produces [r | z | i_n | h_n] gate blocks.
    g = jnp.dot(
        lhs_scratch[...],
        w_ref[0],
        preferred_element_type=jnp.float32,
        precision=jax.lax.Precision.HIGHEST,
    )
    g = g + b_ref[0]                    # fused biases (b_hn lands inside h_n block)

    r = jax.nn.sigmoid(g[:, 0:Hp])
    z = jax.nn.sigmoid(g[:, Hp:2 * Hp])
    n = jnp.tanh(g[:, 2 * Hp:3 * Hp] + r * g[:, 3 * Hp:4 * Hp])
    h_new = z * (h - n) + n             # == (1 - z) * n + z * h, one fewer VALU op

    hn_ref[0] = h_new.astype(hn_ref.dtype)

    # Carry this layer's output as the next layer's input (stays in VMEM).
    # For configs with Kp > Hp, stale lane columns [Hp:Kp] of lhs_scratch are
    # harmless: the corresponding weight rows of every layer >= 1 are zero.
    lhs_scratch[:, 0:Hp] = h_new
    # TODO(synk): training-mode dropout between layers (p > 0) not implemented;
    # eval-mode / p=0 dropout is an identity, matching this kernel.


# ---------------------------------------------------------------------------
# One-time parameter packing (transpose + fuse + pad), done at init time.
# ---------------------------------------------------------------------------
def pack_gru_params(params, input_size, hidden_size):
    """Pack torch-layout GRUCell params into fused, lane-aligned stacks.

    params: list of (w_ih (3H, din), w_hh (3H, H), b_ih (3H,), b_hh (3H,)).
    Returns (w_comb (L, Kp+Hp, 4*Hp), b_comb (L, 1, 4*Hp), meta).
    """
    L = len(params)
    H = hidden_size
    Hp = _round_up(H, 128)
    Kp = max(_round_up(input_size, 128), Hp)

    w_layers, b_layers = [], []
    for (w_ih, w_hh, b_ih, b_hh) in params:
        din = w_ih.shape[1]                       # input_size for layer 0, else H
        wih_t = jnp.transpose(w_ih).astype(jnp.float32)   # (din, 3H) = [r|z|n]
        whh_t = jnp.transpose(w_hh).astype(jnp.float32)   # (H,   3H) = [r|z|n]

        w = jnp.zeros((Kp + Hp, 4 * Hp), jnp.float32)
        # r gate: input rows on top, hidden rows below (summed by the matmul).
        w = w.at[0:din, 0:H].set(wih_t[:, 0:H])
        w = w.at[Kp:Kp + H, 0:H].set(whh_t[:, 0:H])
        # z gate.
        w = w.at[0:din, Hp:Hp + H].set(wih_t[:, H:2 * H])
        w = w.at[Kp:Kp + H, Hp:Hp + H].set(whh_t[:, H:2 * H])
        # n gate: keep input (i_n) and hidden (h_n) contributions separate.
        w = w.at[0:din, 2 * Hp:2 * Hp + H].set(wih_t[:, 2 * H:3 * H])
        w = w.at[Kp:Kp + H, 3 * Hp:3 * Hp + H].set(whh_t[:, 2 * H:3 * H])

        b = jnp.zeros((1, 4 * Hp), jnp.float32)
        b = b.at[0, 0:H].set(b_ih[0:H] + b_hh[0:H])               # r: fold biases
        b = b.at[0, Hp:Hp + H].set(b_ih[H:2 * H] + b_hh[H:2 * H]) # z: fold biases
        b = b.at[0, 2 * Hp:2 * Hp + H].set(b_ih[2 * H:3 * H])     # b_in
        b = b.at[0, 3 * Hp:3 * Hp + H].set(b_hh[2 * H:3 * H])     # b_hn (inside r*(...))

        w_layers.append(w)
        b_layers.append(b)

    meta = dict(L=L, H=H, Hp=Hp, Kp=Kp, input_size=input_size)
    return jnp.stack(w_layers), jnp.stack(b_layers), meta


# ---------------------------------------------------------------------------
# Forward wrapper: one pallas_call for the whole stack.
# ---------------------------------------------------------------------------
def stacking_gru_cell(x, h0, packed):
    """x: (B, input_size), h0: (L, B, H). Returns (output (B, H), hn (L, B, H))."""
    w_comb, b_comb, meta = packed
    L, H, Hp, Kp = meta["L"], meta["H"], meta["Hp"], meta["Kp"]
    Din = meta["input_size"]
    B = x.shape[0]
    Bp = _round_up(B, 8)

    x_pad = jnp.zeros((Bp, Kp), jnp.float32).at[:B, :Din].set(x.astype(jnp.float32))
    h0_pad = jnp.zeros((L, Bp, Hp), jnp.float32).at[:, :B, :H].set(h0.astype(jnp.float32))

    grid_spec = pltpu.PrefetchScalarGridSpec(
        num_scalar_prefetch=0,
        grid=(L,),
        in_specs=[
            pl.BlockSpec((Bp, Kp), lambda l: (0, 0)),                 # layer-0 input
            pl.BlockSpec((1, Bp, Hp), lambda l: (l, 0, 0)),           # h0[l]
            pl.BlockSpec((1, Kp + Hp, 4 * Hp), lambda l: (l, 0, 0)),  # fused W[l]
            pl.BlockSpec((1, 1, 4 * Hp), lambda l: (l, 0, 0)),        # fused b[l]
        ],
        out_specs=pl.BlockSpec((1, Bp, Hp), lambda l: (l, 0, 0)),     # hn[l]
        scratch_shapes=[pltpu.VMEM((Bp, Kp + Hp), jnp.float32)],      # fused LHS carry
    )

    hn_pad = pl.pallas_call(
        _stacked_gru_kernel,
        out_shape=jax.ShapeDtypeStruct((L, Bp, Hp), jnp.float32),
        grid_spec=grid_spec,
        compiler_params=pltpu.CompilerParams(
            dimension_semantics=("arbitrary",),   # layer recurrence is sequential
        ),
    )(x_pad, h0_pad, w_comb, b_comb)

    hn = hn_pad[:, :B, :H].astype(x.dtype)
    return hn[-1], hn


# ---------------------------------------------------------------------------
# Init + pure-JAX reference (torch layout / torch math) for correctness check.
# ---------------------------------------------------------------------------
def init_params(key, input_size, hidden_size, num_layers, dtype=jnp.float32):
    """Mirrors torch.nn.GRUCell init: U(-1/sqrt(H), 1/sqrt(H))."""
    params = []
    bound = 1.0 / (hidden_size ** 0.5)
    in_sz = input_size
    for _ in range(num_layers):
        key, k1, k2, k3, k4 = jax.random.split(key, 5)
        w_ih = jax.random.uniform(k1, (3 * hidden_size, in_sz), dtype, -bound, bound)
        w_hh = jax.random.uniform(k2, (3 * hidden_size, hidden_size), dtype, -bound, bound)
        b_ih = jax.random.uniform(k3, (3 * hidden_size,), dtype, -bound, bound)
        b_hh = jax.random.uniform(k4, (3 * hidden_size,), dtype, -bound, bound)
        params.append((w_ih, w_hh, b_ih, b_hh))
        in_sz = hidden_size
    return params


def reference_stacking_gru(x, h0, params):
    hn = []
    output = x
    hi = jax.lax.Precision.HIGHEST
    for i, (w_ih, w_hh, b_ih, b_hh) in enumerate(params):
        h = h0[i]
        H = h.shape[-1]
        gi = jnp.dot(output, w_ih.T, precision=hi) + b_ih
        gh = jnp.dot(h, w_hh.T, precision=hi) + b_hh
        i_r, i_z, i_n = gi[:, :H], gi[:, H:2 * H], gi[:, 2 * H:]
        h_r, h_z, h_n = gh[:, :H], gh[:, H:2 * H], gh[:, 2 * H:]
        r = jax.nn.sigmoid(i_r + h_r)
        z = jax.nn.sigmoid(i_z + h_z)
        n = jnp.tanh(i_n + r * h_n)
        h_new = (1.0 - z) * n + z * h
        hn.append(h_new)
        output = h_new
    return output, jnp.stack(hn)


if __name__ == "__main__":
    batch = 2
    input_size = 16
    hidden_size = 32
    num_layers = 2
    # dropout = 0.0  -> identity (eval-mode) between layers

    key = jax.random.PRNGKey(0)
    key, kx, kh, kp = jax.random.split(key, 4)

    x = jax.random.normal(kx, (batch, input_size), jnp.float32)
    h0 = jax.random.normal(kh, (num_layers, batch, hidden_size), jnp.float32)
    params = init_params(kp, input_size, hidden_size, num_layers)

    # One-time packing (transpose / fuse / pad) at "init" time.
    packed = pack_gru_params(params, input_size, hidden_size)

    output, hn = stacking_gru_cell(x, h0, packed)
    output = jax.block_until_ready(output)
    hn = jax.block_until_ready(hn)

    # Sanity check against the pure-JAX reference.
    ref_out, ref_hn = reference_stacking_gru(x, h0, params)
    assert output.shape == (batch, hidden_size)
    assert hn.shape == (num_layers, batch, hidden_size)
    assert jnp.allclose(output, ref_out, atol=1e-5, rtol=1e-5)
    assert jnp.allclose(hn, ref_hn, atol=1e-5, rtol=1e-5)

    print("KERNEL_OK")
</pallas_src>

<mosaic_0001>
module attributes {stable_mosaic.version = 11 : i64} {
  func.func @_stacked_gru_kernel(%arg0: i32, %arg1: memref<8x128xf32, #tpu.memory_space<vmem>>, %arg2: memref<1x8x128xf32, #tpu.memory_space<vmem>>, %arg3: memref<1x256x512xf32, #tpu.memory_space<vmem>>, %arg4: memref<1x1x512xf32, #tpu.memory_space<vmem>>, %arg5: memref<1x8x128xf32, #tpu.memory_space<vmem>>, %arg6: memref<8x256xf32, #tpu.memory_space<vmem>>) attributes {dimension_semantics = [#tpu.dimension_semantics<arbitrary>], iteration_bounds = array<i64: 2>, scalar_prefetch = 0 : i64, scratch_operands = 1 : i64, tpu.core_type = #tpu.core_type<tc>, window_params = [{pipeline_mode = #tpu.pipeline_mode<synchronous>, transform_indices = @transform_0, window_bounds = array<i64: 8, 128>}, {transform_indices = @transform_1, window_bounds = array<i64: 1, 8, 128>}, {transform_indices = @transform_2, window_bounds = array<i64: 1, 256, 512>}, {transform_indices = @transform_3, window_bounds = array<i64: 1, 1, 512>}, {transform_indices = @transform_4, window_bounds = array<i64: 1, 8, 128>}]} {
    %c0_i32 = arith.constant 0 : i32
    %0 = arith.cmpi eq, %arg0, %c0_i32 : i32
    %1 = arith.extui %0 : i1 to i32
    %c0_i32_0 = arith.constant 0 : i32
    %2 = arith.cmpi ne, %1, %c0_i32_0 : i32
    scf.if %2 {
      %c0_19 = arith.constant 0 : index
      %c0_20 = arith.constant 0 : index
      %38 = vector.load %arg1[%c0_19, %c0_20] : memref<8x128xf32, #tpu.memory_space<vmem>>, vector<8x128xf32>
      %c0_21 = arith.constant 0 : index
      %c0_22 = arith.constant 0 : index
      %39 = vector.load %arg6[%c0_21, %c0_22] : memref<8x256xf32, #tpu.memory_space<vmem>>, vector<8x128xf32>
      tpu.vector_store %arg6[%c0_21, %c0_22], %38 {strides = array<i32>} : memref<8x256xf32, #tpu.memory_space<vmem>>, vector<8x128xf32>,
    } else {
    }
    %c0 = arith.constant 0 : index
    %c0_1 = arith.constant 0 : index
    %c0_2 = arith.constant 0 : index
    %3 = vector.load %arg2[%c0, %c0_1, %c0_2] : memref<1x8x128xf32, #tpu.memory_space<vmem>>, vector<1x8x128xf32>
    %4 = vector.shape_cast %3 : vector<1x8x128xf32> to vector<8x128xf32>
    %c0_3 = arith.constant 0 : index
    %c128 = arith.constant 128 : index
    %5 = vector.load %arg6[%c0_3, %c128] : memref<8x256xf32, #tpu.memory_space<vmem>>, vector<8x128xf32>
    tpu.vector_store %arg6[%c0_3, %c128], %4 {strides = array<i32>} : memref<8x256xf32, #tpu.memory_space<vmem>>, vector<8x128xf32>,
    %c0_4 = arith.constant 0 : index
    %c0_5 = arith.constant 0 : index
    %6 = vector.load %arg6[%c0_4, %c0_5] : memref<8x256xf32, #tpu.memory_space<vmem>>, vector<8x256xf32>
    %c0_6 = arith.constant 0 : index
    %c0_7 = arith.constant 0 : index
    %c0_8 = arith.constant 0 : index
    %7 = vector.load %arg3[%c0_6, %c0_7, %c0_8] : memref<1x256x512xf32, #tpu.memory_space<vmem>>, vector<1x256x512xf32>
    %8 = vector.shape_cast %7 : vector<1x256x512xf32> to vector<256x512xf32>
    %cst = arith.constant dense<0.000000e+00> : vector<8x512xf32>
    %9 = tpu.matmul %6, %8, %cst {dimension_numbers = #tpu.dot_dimension_numbers<[1], [0], [0], [1], [0, 0, 1, 1], [], []>, precision = #tpu.contract_precision<fp32>} : vector<8x256xf32>, vector<256x512xf32>, vector<8x512xf32> -> vector<8x512xf32>
    %c0_9 = arith.constant 0 : index
    %c0_10 = arith.constant 0 : index
    %c0_11 = arith.constant 0 : index
    %10 = vector.load %arg4[%c0_9, %c0_10, %c0_11] : memref<1x1x512xf32, #tpu.memory_space<vmem>>, vector<1x1x512xf32>
    %11 = vector.shape_cast %10 : vector<1x1x512xf32> to vector<1x512xf32>
    %12 = vector.broadcast %11 : vector<1x512xf32> to vector<8x512xf32>
    %13 = arith.addf %9, %12 : vector<8x512xf32>
    %14 = vector.extract_strided_slice %13 {offsets = [0, 0], sizes = [8, 128], strides = [1, 1]} : vector<8x512xf32> to vector<8x128xf32>
    %15 = arith.negf %14 : vector<8x128xf32>
    %16 = math.exp %15 : vector<8x128xf32>
    %cst_12 = arith.constant 1.000000e+00 : f32
    %17 = vector.broadcast %cst_12 : f32 to vector<8x128xf32>
    %18 = arith.addf %17, %16 : vector<8x128xf32>
    %19 = arith.divf %17, %18 : vector<8x128xf32>
    %20 = vector.extract_strided_slice %13 {offsets = [0, 128], sizes = [8, 128], strides = [1, 1]} : vector<8x512xf32> to vector<8x128xf32>
    %21 = arith.negf %20 : vector<8x128xf32>
    %22 = math.exp %21 : vector<8x128xf32>
    %cst_13 = arith.constant 1.000000e+00 : f32
    %23 = vector.broadcast %cst_13 : f32 to vector<8x128xf32>
    %24 = arith.addf %23, %22 : vector<8x128xf32>
    %25 = arith.divf %23, %24 : vector<8x128xf32>
    %26 = vector.extract_strided_slice %13 {offsets = [0, 256], sizes = [8, 128], strides = [1, 1]} : vector<8x512xf32> to vector<8x128xf32>
    %27 = vector.extract_strided_slice %13 {offsets = [0, 384], sizes = [8, 128], strides = [1, 1]} : vector<8x512xf32> to vector<8x128xf32>
    %28 = arith.mulf %19, %27 : vector<8x128xf32>
    %29 = arith.addf %26, %28 : vector<8x128xf32>
    %30 = math.tanh %29 : vector<8x128xf32>
    %31 = arith.subf %4, %30 : vector<8x128xf32>
    %32 = arith.mulf %25, %31 : vector<8x128xf32>
    %33 = arith.addf %32, %30 : vector<8x128xf32>
    %c0_14 = arith.constant 0 : index
    %c0_15 = arith.constant 0 : index
    %c0_16 = arith.constant 0 : index
    %34 = vector.load %arg5[%c0_14, %c0_15, %c0_16] : memref<1x8x128xf32, #tpu.memory_space<vmem>>, vector<1x8x128xf32>
    %35 = vector.shape_cast %34 : vector<1x8x128xf32> to vector<8x128xf32>
    %36 = vector.shape_cast %33 : vector<8x128xf32> to vector<1x8x128xf32>
    tpu.vector_store %arg5[%c0_14, %c0_15, %c0_16], %36 {strides = array<i32>} : memref<1x8x128xf32, #tpu.memory_space<vmem>>, vector<1x8x128xf32>,
    %c0_17 = arith.constant 0 : index
    %c0_18 = arith.constant 0 : index
    %37 = vector.load %arg6[%c0_17, %c0_18] : memref<8x256xf32, #tpu.memory_space<vmem>>, vector<8x128xf32>
    tpu.vector_store %arg6[%c0_17, %c0_18], %33 {strides = array<i32>} : memref<8x256xf32, #tpu.memory_space<vmem>>, vector<8x128xf32>,
    return
  }
  func.func @transform_0(%arg0: i32) -> (i32, i32) {
    %c0_i32 = arith.constant 0 : i32
    %c0_i32_0 = arith.constant 0 : i32
    %c0_i32_1 = arith.constant 0 : i32
    return %c0_i32, %c0_i32_0 : i32, i32
  }
  func.func @transform_1(%arg0: i32) -> (i32, i32, i32) {
    %c0_i32 = arith.constant 0 : i32
    %c0_i32_0 = arith.constant 0 : i32
    %c0_i32_1 = arith.constant 0 : i32
    return %arg0, %c0_i32, %c0_i32_0 : i32, i32, i32
  }
  func.func @transform_2(%arg0: i32) -> (i32, i32, i32) {
    %c0_i32 = arith.constant 0 : i32
    %c0_i32_0 = arith.constant 0 : i32
    %c0_i32_1 = arith.constant 0 : i32
    return %arg0, %c0_i32, %c0_i32_0 : i32, i32, i32
  }
  func.func @transform_3(%arg0: i32) -> (i32, i32, i32) {
    %c0_i32 = arith.constant 0 : i32
    %c0_i32_0 = arith.constant 0 : i32
    %c0_i32_1 = arith.constant 0 : i32
    return %arg0, %c0_i32, %c0_i32_0 : i32, i32, i32
  }
  func.func @transform_4(%arg0: i32) -> (i32, i32, i32) {
    %c0_i32 = arith.constant 0 : i32
    %c0_i32_0 = arith.constant 0 : i32
    %c0_i32_1 = arith.constant 0 : i32
    return %arg0, %c0_i32, %c0_i32_0 : i32, i32, i32
  }
}

</mosaic_0001>

<llo_original>
// kernel: tpu_custom_call.1
$region0: #{tpu_custom_call.1}
  #allocation0 [shape = 'u32[]', space=smem, size = 0x4, offset = 0x4, fixed_abs, tag = 'smem constant byte address 0x4 - core index']
  #allocation1 [shape = 'u32[72,128]{1,0:T(1,128)}', space=vmem, size = 0x9000, scoped, tag = 'internal scratch']
  #allocation2 [shape = 'f32[8,256]{1,0:T(8,128)}', space=vmem, size = 0x2000, scoped, tag = 'scratch operand']
  %s0 = inlined_call_operand.hbm [shape: f32[8,128], index: 0, kind: input, shape index: {}]
  %s1 = inlined_call_operand.hbm [shape: f32[2,8,128], index: 1, kind: input, shape index: {}]
  %s2 = inlined_call_operand.hbm [shape: f32[2,256,512], index: 2, kind: input, shape index: {}]
  %s3 = inlined_call_operand.hbm [shape: f32[2,1,512], index: 3, kind: input, shape index: {}]
  %s4 = inlined_call_operand.hbm [shape: f32[2,8,128], index: 4, kind: output, shape index: {}]
  %s5 = sld [smem:[#allocation0]]
  $region69: #{tpu_custom_call.1} parent=0
    _
  %s7 = ssub.s32 1, %s5
  %s8 = scalar_select 0, %s7, %s5
  $region1: #{tpu_custom_call.1} parent=0
    #allocation3 [shape = 'u8[4096]{0}', space=vmem, size = 0x1000, scoped, tag = 'input window, operand 0, single buffered']
    #allocation4 [shape = 's32[2]{0}', space=sflag, size = 0x8, scoped, tag = 'scoped memory for tpu_custom_call.1']
    #allocation5 [shape = 's32[2]{0}', space=sflag, size = 0x8, scoped, tag = 'scoped memory for tpu_custom_call.1']
    #allocation6 [shape = 'u8[8192]{0}', space=vmem, size = 0x2000, scoped, tag = 'input window, operand 1']
    #allocation7 [shape = 's32[2]{0}', space=sflag, size = 0x8, scoped, tag = 'scoped memory for tpu_custom_call.1']
    #allocation8 [shape = 'u8[1048576]{0}', space=vmem, size = 0x100000, scoped, tag = 'input window, operand 2']
    #allocation9 [shape = 'u8[4096]{0}', space=vmem, size = 0x1000, scoped, tag = 'input window, operand 3']
    #allocation10 [shape = 's32[2]{0}', space=sflag, size = 0x8, scoped, tag = 'scoped memory for tpu_custom_call.1']
    #allocation11 [shape = 'u8[8192]{0}', space=vmem, size = 0x2000, scoped, tag = 'output window, operand 0']
    %9 = vsyncpa [#allocation4], 0
    %10 = vsyncpa [#allocation7], 0
    %s11 = scalar_lea.sflag [#allocation7], 1
    %12 = vsyncpa %s11, 0
    %13 = vsyncpa [#allocation10], 0
    %s14 = scalar_lea.sflag [#allocation10], 1
    %15 = vsyncpa %s14, 0
    %16 = vsyncpa [#allocation5], 0
    %s17 = scalar_lea.sflag [#allocation5], 1
    %18 = vsyncpa %s17, 0
    loop: start=0, step=1, limit=4
    $region2: #{tpu_custom_call.1} parent=1 // loop_pre_header
      _
    $region3: #{tpu_custom_call.1} parent=1 // loop_header
      %s20 = sphi 0, %s24
      %p21 = scmp.ge.s32.totalorder %s20, 4
      %s28 = sphi 0, %s28
      %s30 = sphi 0, %s28
      %s31 = sphi 0, %s30
      %s45 = sphi 0, %s31
      %s51 = sphi 0, %s53
      %s54 = sphi 0, %s51
      %s55 = sphi 0, %s54
      %s71 = sphi 0, %s55
      %s77 = sphi 0, %s79
      %s80 = sphi 0, %s77
      %s81 = sphi 0, %s80
      %s97 = sphi 0, %s81
      %s103 = sphi 0, %s105
      %s106 = sphi 0, %s103
      %s107 = sphi 0, %s106
      %s123 = sphi 0, %s107
      %s129 = sphi 0, %s131
      %s132 = sphi 0, %s129
      %s133 = sphi 0, %s132
      %s149 = sphi 0, %s133
    $region4: #{tpu_custom_call.1} parent=1 // loop_header_branch
      %23 = sbr.rel (%p21) target = $region8
    $region5: #{tpu_custom_call.1} parent=1 // loop_body
      %s25 = ssub.s32 %s20, 1
      %s26 = ssub.s32 %s20, 2
      %s27 = sadd.s32 %s20, 1
      %s29 = sadd.s32 %s28, 1
      %p32 = scmp.eq.s32.totalorder %s20, 1
      %p33 = scmp.ne.s32.totalorder %s28, %s30
      %p34 = scmp.eq.s32.totalorder %s20, 0
      %p35 = por %p33, %p34
      %p36 = scmp.ne.s32.totalorder %s28, %s30
      %p37 = scmp.eq.s32.totalorder %s25, 1
      %p38 = por %p36, %p37
      %p39 = scmp.ne.s32.totalorder %s30, %s31
      %p40 = scmp.eq.s32.totalorder %s25, 0
      %p41 = por %p39, %p40
      %p42 = scmp.ne.s32.totalorder %s30, %s31
      %p43 = scmp.eq.s32.totalorder %s26, 1
      %p44 = por %p42, %p43
      %p46 = scmp.ne.s32.totalorder %s31, %s45
      %p47 = scmp.eq.s32.totalorder %s26, 0
      %p48 = por %p46, %p47
      %s49 = ssub.s32 %s20, %s27
      %p50 = scmp.eq.s32.totalorder %s49, 0
      %s52 = sadd.s32 %s51, 1
      %s53 = scalar_select %p50, %s51, %s52
      %p56 = pneg %p50
      %p57 = scmp.eq.s32.totalorder %s20, 1
      %p58 = por %p56, %p57
      %p59 = scmp.ne.s32.totalorder %s51, %s54
      %p60 = scmp.eq.s32.totalorder %s20, 0
      %p61 = por %p59, %p60
      %p62 = scmp.ne.s32.totalorder %s51, %s54
      %p63 = scmp.eq.s32.totalorder %s25, 1
      %p64 = por %p62, %p63
      %p65 = scmp.ne.s32.totalorder %s54, %s55
      %p66 = scmp.eq.s32.totalorder %s25, 0
      %p67 = por %p65, %p66
      %p68 = scmp.ne.s32.totalorder %s54, %s55
      %p69 = scmp.eq.s32.totalorder %s26, 1
      %p70 = por %p68, %p69
      %p72 = scmp.ne.s32.totalorder %s55, %s71
      %p73 = scmp.eq.s32.totalorder %s26, 0
      %p74 = por %p72, %p73
      %s75 = ssub.s32 %s20, %s27
      %p76 = scmp.eq.s32.totalorder %s75, 0
      %s78 = sadd.s32 %s77, 1
      %s79 = scalar_select %p76, %s77, %s78
      %p82 = pneg %p76
      %p83 = scmp.eq.s32.totalorder %s20, 1
      %p84 = por %p82, %p83
      %p85 = scmp.ne.s32.totalorder %s77, %s80
      %p86 = scmp.eq.s32.totalorder %s20, 0
      %p87 = por %p85, %p86
      %p88 = scmp.ne.s32.totalorder %s77, %s80
      %p89 = scmp.eq.s32.totalorder %s25, 1
      %p90 = por %p88, %p89
      %p91 = scmp.ne.s32.totalorder %s80, %s81
      %p92 = scmp.eq.s32.totalorder %s25, 0
      %p93 = por %p91, %p92
      %p94 = scmp.ne.s32.totalorder %s80, %s81
      %p95 = scmp.eq.s32.totalorder %s26, 1
      %p96 = por %p94, %p95
      %p98 = scmp.ne.s32.totalorder %s81, %s97
      %p99 = scmp.eq.s32.totalorder %s26, 0
      %p100 = por %p98, %p99
      %s101 = ssub.s32 %s20, %s27
      %p102 = scmp.eq.s32.totalorder %s101, 0
      %s104 = sadd.s32 %s103, 1
      %s105 = scalar_select %p102, %s103, %s104
      %p108 = pneg %p102
      %p109 = scmp.eq.s32.totalorder %s20, 1
      %p110 = por %p108, %p109
      %p111 = scmp.ne.s32.totalorder %s103, %s106
      %p112 = scmp.eq.s32.totalorder %s20, 0
      %p113 = por %p111, %p112
      %p114 = scmp.ne.s32.totalorder %s103, %s106
      %p115 = scmp.eq.s32.totalorder %s25, 1
      %p116 = por %p114, %p115
      %p117 = scmp.ne.s32.totalorder %s106, %s107
      %p118 = scmp.eq.s32.totalorder %s25, 0
      %p119 = por %p117, %p118
      %p120 = scmp.ne.s32.totalorder %s106, %s107
      %p121 = scmp.eq.s32.totalorder %s26, 1
      %p122 = por %p120, %p121
      %p124 = scmp.ne.s32.totalorder %s107, %s123
      %p125 = scmp.eq.s32.totalorder %s26, 0
      %p126 = por %p124, %p125
      %s127 = ssub.s32 %s20, %s27
      %p128 = scmp.eq.s32.totalorder %s127, 0
      %s130 = sadd.s32 %s129, 1
      %s131 = scalar_select %p128, %s129, %s130
      %p134 = pneg %p128
      %p135 = scmp.eq.s32.totalorder %s20, 1
      %p136 = por %p134, %p135
      %p137 = scmp.ne.s32.totalorder %s129, %s132
      %p138 = scmp.eq.s32.totalorder %s20, 0
      %p139 = por %p137, %p138
      %p140 = scmp.ne.s32.totalorder %s129, %s132
      %p141 = scmp.eq.s32.totalorder %s25, 1
      %p142 = por %p140, %p141
      %p143 = scmp.ne.s32.totalorder %s132, %s133
      %p144 = scmp.eq.s32.totalorder %s25, 0
      %p145 = por %p143, %p144
      %p146 = scmp.ne.s32.totalorder %s132, %s133
      %p147 = scmp.eq.s32.totalorder %s26, 1
      %p148 = por %p146, %p147
      %p150 = scmp.ne.s32.totalorder %s133, %s149
      %p151 = scmp.eq.s32.totalorder %s26, 0
      %p152 = por %p150, %p151
      %p153 = scmp.le.s32.totalorder 1, %s20
      %p154 = scmp.lt.s32.totalorder %s20, 3
      %p155 = pnand %p153, %p154
      %p156 = pneg %p155
      // Predicated region
      $region9: #{tpu_custom_call.1} parent=5 // pred_check
        _
      $region10: #{tpu_custom_call.1} parent=5 // pred_check_branch
        %158 = sbr.rel (%p155) target = $region12
      $region11: #{tpu_custom_call.1} parent=5 // pred_region
        %s159 = ssub.s32 %s20, 1
        // Predicated region
        $region13: #{tpu_custom_call.1} parent=11 // pred_check
          %p160 = pneg %p41
        $region14: #{tpu_custom_call.1} parent=11 // pred_check_branch
          %162 = sbr.rel (%p160) target = $region16
        $region15: #{tpu_custom_call.1} parent=11 // pred_region
          %164 = vsyncadd [#allocation4], 0
          %s166 = sshll.u32 %s0, 4
          %s167 = int_to_ptr.hbm [resolvable:$true] %s166
          %s168 = sshll.u32 [#allocation3], 4
          %s169 = int_to_ptr.vmem [resolvable:$true] %s168
          %171 = dma.hbm_to_vmem [thread:$0]  %s167, 128, %s169, [#allocation4]
        $region16: #{tpu_custom_call.1} parent=11 // pred_fallthru
          _
      $region12: #{tpu_custom_call.1} parent=5 // pred_fallthru
        _
      %p172 = scmp.lt.s32.totalorder %s20, 2
      // Predicated region
      $region17: #{tpu_custom_call.1} parent=5 // pred_check
        %p173 = pneg %p172
      $region18: #{tpu_custom_call.1} parent=5 // pred_check_branch
        %175 = sbr.rel (%p173) target = $region20
      $region19: #{tpu_custom_call.1} parent=5 // pred_region
        // Predicated region
        $region21: #{tpu_custom_call.1} parent=19 // pred_check
          %p176 = pneg %p61
        $region22: #{tpu_custom_call.1} parent=19 // pred_check_branch
          %178 = sbr.rel (%p176) target = $region24
        $region23: #{tpu_custom_call.1} parent=19 // pred_region
          %s179 = sand.u32 %s20, 1
          %s180 = scalar_lea.sflag [#allocation7], %s179
          %s181 = sand.u32 %s51, 1
          %s182 = smul.addr %s181, 8
          %s183 = scalar_lea.vmem [#allocation6], %s182
          %185 = vsyncadd %s180, 0
          %s186 = smul.addr %s20, 8
          %s187 = scalar_lea.hbm %s1, %s186
          %s189 = sshll.u32 %s187, 4
          %s190 = int_to_ptr.hbm [resolvable:$true] %s189
          %s191 = sshll.u32 %s183, 4
          %s192 = int_to_ptr.vmem [resolvable:$true] %s191
          %194 = dma.hbm_to_vmem [thread:$0]  %s190, 128, %s192, %s180
        $region24: #{tpu_custom_call.1} parent=19 // pred_fallthru
          _
        // Predicated region
        $region25: #{tpu_custom_call.1} parent=19 // pred_check
          %p195 = pneg %p87
        $region26: #{tpu_custom_call.1} parent=19 // pred_check_branch
          %197 = sbr.rel (%p195) target = $region28
        $region27: #{tpu_custom_call.1} parent=19 // pred_region
          %s198 = sand.u32 %s20, 1
          %s199 = scalar_lea.sflag [#allocation7], %s198
          %s200 = sand.u32 %s77, 1
          %s201 = smul.addr %s200, 1024
          %s202 = scalar_lea.vmem [#allocation8], %s201
          %204 = vsyncadd %s199, 0
          %s205 = smul.addr %s20, 128
          %s206 = smul.addr %s205, 8
          %s207 = scalar_lea.hbm %s2, %s206
          %s208 = sshll.u32 %s207, 4
          %s209 = int_to_ptr.hbm [resolvable:$true] %s208
          %s210 = sshll.u32 %s202, 4
          %s211 = int_to_ptr.vmem [resolvable:$true] %s210
          %216 = dma.hbm_to_vmem [thread:$0]  %s209, 16384, %s211, %s199, 512, 512, 32
        $region28: #{tpu_custom_call.1} parent=19 // pred_fallthru
          _
        // Predicated region
        $region29: #{tpu_custom_call.1} parent=19 // pred_check
          %p217 = pneg %p113
        $region30: #{tpu_custom_call.1} parent=19 // pred_check_branch
          %219 = sbr.rel (%p217) target = $region32
        $region31: #{tpu_custom_call.1} parent=19 // pred_region
          %s220 = sand.u32 %s103, 1
          %s221 = scalar_lea.sflag [#allocation10], %s220
          %s222 = sand.u32 %s103, 1
          %s223 = smul.addr %s222, 4
          %s224 = scalar_lea.vmem [#allocation9], %s223
          %226 = vsyncadd %s221, 0
          %s227 = smul.addr %s20, 4
          %s228 = scalar_lea.hbm %s3, %s227
          %s230 = sshll.u32 %s228, 4
          %s231 = int_to_ptr.hbm [resolvable:$true] %s230
          %s232 = sshll.u32 %s224, 4
          %s233 = int_to_ptr.vmem [resolvable:$true] %s232
          %235 = dma.hbm_to_vmem [thread:$0]  %s231, 64, %s233, %s221
        $region32: #{tpu_custom_call.1} parent=19 // pred_fallthru
          _
      $region20: #{tpu_custom_call.1} parent=5 // pred_fallthru
        _
      %p236 = scmp.le.s32.totalorder 1, %s20
      %p237 = scmp.lt.s32.totalorder %s20, 3
      %p238 = pnand %p236, %p237
      %p239 = pneg %p238
      // Predicated region
      $region33: #{tpu_custom_call.1} parent=5 // pred_check
        _
      $region34: #{tpu_custom_call.1} parent=5 // pred_check_branch
        %241 = sbr.rel (%p238) target = $region36
      $region35: #{tpu_custom_call.1} parent=5 // pred_region
        %s242 = ssub.s32 %s20, 1
        // Predicated region
        $region37: #{tpu_custom_call.1} parent=35 // pred_check
          %p243 = pneg %p41
        $region38: #{tpu_custom_call.1} parent=35 // pred_check_branch
          %245 = sbr.rel (%p243) target = $region40
        $region39: #{tpu_custom_call.1} parent=35 // pred_region
          %247 = dma.done [#allocation4], 128
        $region40: #{tpu_custom_call.1} parent=35 // pred_fallthru
          _
        %s248 = sand.u32 %s25, 1
        %s249 = scalar_lea.sflag [#allocation7], %s248
        %s250 = sand.u32 %s54, 1
        %s251 = smul.addr %s250, 8
        %s252 = scalar_lea.vmem [#allocation6], %s251
        // Predicated region
        $region41: #{tpu_custom_call.1} parent=35 // pred_check
          %p253 = pneg %p67
        $region42: #{tpu_custom_call.1} parent=35 // pred_check_branch
          %255 = sbr.rel (%p253) target = $region44
        $region43: #{tpu_custom_call.1} parent=35 // pred_region
          %257 = dma.done %s249, 128
        $region44: #{tpu_custom_call.1} parent=35 // pred_fallthru
          _
        %s258 = sand.u32 %s25, 1
        %s259 = scalar_lea.sflag [#allocation7], %s258
        %s260 = sand.u32 %s80, 1
        %s261 = smul.addr %s260, 1024
        %s262 = scalar_lea.vmem [#allocation8], %s261
        // Predicated region
        $region45: #{tpu_custom_call.1} parent=35 // pred_check
          %p263 = pneg %p93
        $region46: #{tpu_custom_call.1} parent=35 // pred_check_branch
          %265 = sbr.rel (%p263) target = $region48
        $region47: #{tpu_custom_call.1} parent=35 // pred_region
          %267 = dma.done %s259, 16384
        $region48: #{tpu_custom_call.1} parent=35 // pred_fallthru
          _
        %s268 = sand.u32 %s106, 1
        %s269 = scalar_lea.sflag [#allocation10], %s268
        %s270 = sand.u32 %s106, 1
        %s271 = smul.addr %s270, 4
        %s272 = scalar_lea.vmem [#allocation9], %s271
        // Predicated region
        $region49: #{tpu_custom_call.1} parent=35 // pred_check
          %p273 = pneg %p119
        $region50: #{tpu_custom_call.1} parent=35 // pred_check_branch
          %275 = sbr.rel (%p273) target = $region52
        $region51: #{tpu_custom_call.1} parent=35 // pred_region
          %277 = dma.done %s269, 64
        $region52: #{tpu_custom_call.1} parent=35 // pred_fallthru
          _
        %p278 = pneg %p41
        %p279 = pneg %p38
        %s280 = sand.u32 %s25, 1
        %s281 = scalar_lea.sflag [#allocation7], %s280
        %s282 = sand.u32 %s54, 1
        %s283 = smul.addr %s282, 8
        %s284 = scalar_lea.vmem [#allocation6], %s283
        %p285 = pneg %p67
        %p286 = pneg %p64
        %s287 = sand.u32 %s25, 1
        %s288 = scalar_lea.sflag [#allocation7], %s287
        %s289 = sand.u32 %s80, 1
        %s290 = smul.addr %s289, 1024
        %s291 = scalar_lea.vmem [#allocation8], %s290
        %p292 = pneg %p93
        %p293 = pneg %p90
        %s294 = sand.u32 %s106, 1
        %s295 = scalar_lea.sflag [#allocation10], %s294
        %s296 = sand.u32 %s106, 1
        %s297 = smul.addr %s296, 4
        %s298 = scalar_lea.vmem [#allocation9], %s297
        %p299 = pneg %p119
        %p300 = pneg %p116
        %p301 = pneg %p145
        %p302 = pneg %p142
        %s303 = sand.u32 %s132, 1
        %s304 = scalar_lea.sflag [#allocation5], %s303
        %s305 = sand.u32 %s132, 1
        %s306 = smul.addr %s305, 8
        %s307 = scalar_lea.vmem [#allocation11], %s306
        %p308 = scmp.eq.s32.totalorder %s25, 0
        // Predicated region
        $region53: #{tpu_custom_call.1} parent=35 // pred_check
          %p309 = pneg %p308
        $region54: #{tpu_custom_call.1} parent=35 // pred_check_branch
          %311 = sbr.rel (%p309) target = $region56
        $region55: #{tpu_custom_call.1} parent=35 // pred_region
          %v312 = vld [vmem:[#allocation3] sm:$0xff]
          %313 = vst [vmem:[#allocation2] sm:$0xff] %v312
        $region56: #{tpu_custom_call.1} parent=35 // pred_fallthru
          _
        %v314 = vld [vmem:[%s252] sm:$0xff]
        %315 = vst [vmem:[#allocation2 + $0x8] sm:$0xff] %v314
        %v316 = vld [vmem:[#allocation2] sm:$0xff]
        %v317 = vld [vmem:[#allocation2 + $0x8] sm:$0xff]
        %v318 = vld [vmem:[%s262] sm:$0xff]
        %v319 = vld [vmem:[%s262 + $0x8] sm:$0xff]
        %v320 = vld [vmem:[%s262 + $0x10] sm:$0xff]
        %v321 = vld [vmem:[%s262 + $0x18] sm:$0xff]
        %v322 = vld [vmem:[%s262 + $0x20] sm:$0xff]
        %v323 = vld [vmem:[%s262 + $0x28] sm:$0xff]
        %v324 = vld [vmem:[%s262 + $0x30] sm:$0xff]
        %v325 = vld [vmem:[%s262 + $0x38] sm:$0xff]
        %v326 = vld [vmem:[%s262 + $0x40] sm:$0xff]
        %v327 = vld [vmem:[%s262 + $0x48] sm:$0xff]
        %v328 = vld [vmem:[%s262 + $0x50] sm:$0xff]
        %v329 = vld [vmem:[%s262 + $0x58] sm:$0xff]
        %v330 = vld [vmem:[%s262 + $0x60] sm:$0xff]
        %v331 = vld [vmem:[%s262 + $0x68] sm:$0xff]
        %v332 = vld [vmem:[%s262 + $0x70] sm:$0xff]
        %v333 = vld [vmem:[%s262 + $0x78] sm:$0xff]
        %v334 = vld [vmem:[%s262 + $0x80] sm:$0xff]
        %v335 = vld [vmem:[%s262 + $0x88] sm:$0xff]
        %v336 = vld [vmem:[%s262 + $0x90] sm:$0xff]
        %v337 = vld [vmem:[%s262 + $0x98] sm:$0xff]
        %v338 = vld [vmem:[%s262 + $0xa0] sm:$0xff]
        %v339 = vld [vmem:[%s262 + $0xa8] sm:$0xff]
        %v340 = vld [vmem:[%s262 + $0xb0] sm:$0xff]
        %v341 = vld [vmem:[%s262 + $0xb8] sm:$0xff]
        %v342 = vld [vmem:[%s262 + $0xc0] sm:$0xff]
        %v343 = vld [vmem:[%s262 + $0xc8] sm:$0xff]
        %v344 = vld [vmem:[%s262 + $0xd0] sm:$0xff]
        %v345 = vld [vmem:[%s262 + $0xd8] sm:$0xff]
        %v346 = vld [vmem:[%s262 + $0xe0] sm:$0xff]
        %v347 = vld [vmem:[%s262 + $0xe8] sm:$0xff]
        %v348 = vld [vmem:[%s262 + $0xf0] sm:$0xff]
        %v349 = vld [vmem:[%s262 + $0xf8] sm:$0xff]
        %v350 = vld [vmem:[%s262 + $0x100] sm:$0xff]
        %v351 = vld [vmem:[%s262 + $0x108] sm:$0xff]
        %v352 = vld [vmem:[%s262 + $0x110] sm:$0xff]
        %v353 = vld [vmem:[%s262 + $0x118] sm:$0xff]
        %v354 = vld [vmem:[%s262 + $0x120] sm:$0xff]
        %v355 = vld [vmem:[%s262 + $0x128] sm:$0xff]
        %v356 = vld [vmem:[%s262 + $0x130] sm:$0xff]
        %v357 = vld [vmem:[%s262 + $0x138] sm:$0xff]
        %v358 = vld [vmem:[%s262 + $0x140] sm:$0xff]
        %v359 = vld [vmem:[%s262 + $0x148] sm:$0xff]
        %v360 = vld [vmem:[%s262 + $0x150] sm:$0xff]
        %v361 = vld [vmem:[%s262 + $0x158] sm:$0xff]
        %v362 = vld [vmem:[%s262 + $0x160] sm:$0xff]
        %v363 = vld [vmem:[%s262 + $0x168] sm:$0xff]
        %v364 = vld [vmem:[%s262 + $0x170] sm:$0xff]
        %v365 = vld [vmem:[%s262 + $0x178] sm:$0xff]
        %v366 = vld [vmem:[%s262 + $0x180] sm:$0xff]
        %v367 = vld [vmem:[%s262 + $0x188] sm:$0xff]
        %v368 = vld [vmem:[%s262 + $0x190] sm:$0xff]
        %v369 = vld [vmem:[%s262 + $0x198] sm:$0xff]
        %v370 = vld [vmem:[%s262 + $0x1a0] sm:$0xff]
        %v371 = vld [vmem:[%s262 + $0x1a8] sm:$0xff]
        %v372 = vld [vmem:[%s262 + $0x1b0] sm:$0xff]
        %v373 = vld [vmem:[%s262 + $0x1b8] sm:$0xff]
        %v374 = vld [vmem:[%s262 + $0x1c0] sm:$0xff]
        %v375 = vld [vmem:[%s262 + $0x1c8] sm:$0xff]
        %v376 = vld [vmem:[%s262 + $0x1d0] sm:$0xff]
        %v377 = vld [vmem:[%s262 + $0x1d8] sm:$0xff]
        %v378 = vld [vmem:[%s262 + $0x1e0] sm:$0xff]
        %v379 = vld [vmem:[%s262 + $0x1e8] sm:$0xff]
        %v380 = vld [vmem:[%s262 + $0x1f0] sm:$0xff]
        %v381 = vld [vmem:[%s262 + $0x1f8] sm:$0xff]
        %v382 = vld [vmem:[%s262 + $0x200] sm:$0xff]
        %v383 = vld [vmem:[%s262 + $0x208] sm:$0xff]
        %v384 = vld [vmem:[%s262 + $0x210] sm:$0xff]
        %v385 = vld [vmem:[%s262 + $0x218] sm:$0xff]
        %v386 = vld [vmem:[%s262 + $0x220] sm:$0xff]
        %v387 = vld [vmem:[%s262 + $0x228] sm:$0xff]
        %v388 = vld [vmem:[%s262 + $0x230] sm:$0xff]
        %v389 = vld [vmem:[%s262 + $0x238] sm:$0xff]
        %v390 = vld [vmem:[%s262 + $0x240] sm:$0xff]
        %v391 = vld [vmem:[%s262 + $0x248] sm:$0xff]
        %v392 = vld [vmem:[%s262 + $0x250] sm:$0xff]
        %v393 = vld [vmem:[%s262 + $0x258] sm:$0xff]
        %v394 = vld [vmem:[%s262 + $0x260] sm:$0xff]
        %v395 = vld [vmem:[%s262 + $0x268] sm:$0xff]
        %v396 = vld [vmem:[%s262 + $0x270] sm:$0xff]
        %v397 = vld [vmem:[%s262 + $0x278] sm:$0xff]
        %v398 = vld [vmem:[%s262 + $0x280] sm:$0xff]
        %v399 = vld [vmem:[%s262 + $0x288] sm:$0xff]
        %v400 = vld [vmem:[%s262 + $0x290] sm:$0xff]
        %v401 = vld [vmem:[%s262 + $0x298] sm:$0xff]
        %v402 = vld [vmem:[%s262 + $0x2a0] sm:$0xff]
        %v403 = vld [vmem:[%s262 + $0x2a8] sm:$0xff]
        %v404 = vld [vmem:[%s262 + $0x2b0] sm:$0xff]
        %v405 = vld [vmem:[%s262 + $0x2b8] sm:$0xff]
        %v406 = vld [vmem:[%s262 + $0x2c0] sm:$0xff]
        %v407 = vld [vmem:[%s262 + $0x2c8] sm:$0xff]
        %v408 = vld [vmem:[%s262 + $0x2d0] sm:$0xff]
        %v409 = vld [vmem:[%s262 + $0x2d8] sm:$0xff]
        %v410 = vld [vmem:[%s262 + $0x2e0] sm:$0xff]
        %v411 = vld [vmem:[%s262 + $0x2e8] sm:$0xff]
        %v412 = vld [vmem:[%s262 + $0x2f0] sm:$0xff]
        %v413 = vld [vmem:[%s262 + $0x2f8] sm:$0xff]
        %v414 = vld [vmem:[%s262 + $0x300] sm:$0xff]
        %v415 = vld [vmem:[%s262 + $0x308] sm:$0xff]
        %v416 = vld [vmem:[%s262 + $0x310] sm:$0xff]
        %v417 = vld [vmem:[%s262 + $0x318] sm:$0xff]
        %v418 = vld [vmem:[%s262 + $0x320] sm:$0xff]
        %v419 = vld [vmem:[%s262 + $0x328] sm:$0xff]
        %v420 = vld [vmem:[%s262 + $0x330] sm:$0xff]
        %v421 = vld [vmem:[%s262 + $0x338] sm:$0xff]
        %v422 = vld [vmem:[%s262 + $0x340] sm:$0xff]
        %v423 = vld [vmem:[%s262 + $0x348] sm:$0xff]
        %v424 = vld [vmem:[%s262 + $0x350] sm:$0xff]
        %v425 = vld [vmem:[%s262 + $0x358] sm:$0xff]
        %v426 = vld [vmem:[%s262 + $0x360] sm:$0xff]
        %v427 = vld [vmem:[%s262 + $0x368] sm:$0xff]
        %v428 = vld [vmem:[%s262 + $0x370] sm:$0xff]
        %v429 = vld [vmem:[%s262 + $0x378] sm:$0xff]
        %v430 = vld [vmem:[%s262 + $0x380] sm:$0xff]
        %v431 = vld [vmem:[%s262 + $0x388] sm:$0xff]
        %v432 = vld [vmem:[%s262 + $0x390] sm:$0xff]
        %v433 = vld [vmem:[%s262 + $0x398] sm:$0xff]
        %v434 = vld [vmem:[%s262 + $0x3a0] sm:$0xff]
        %v435 = vld [vmem:[%s262 + $0x3a8] sm:$0xff]
        %v436 = vld [vmem:[%s262 + $0x3b0] sm:$0xff]
        %v437 = vld [vmem:[%s262 + $0x3b8] sm:$0xff]
        %v438 = vld [vmem:[%s262 + $0x3c0] sm:$0xff]
        %v439 = vld [vmem:[%s262 + $0x3c8] sm:$0xff]
        %v440 = vld [vmem:[%s262 + $0x3d0] sm:$0xff]
        %v441 = vld [vmem:[%s262 + $0x3d8] sm:$0xff]
        %v442 = vld [vmem:[%s262 + $0x3e0] sm:$0xff]
        %v443 = vld [vmem:[%s262 + $0x3e8] sm:$0xff]
        %v444 = vld [vmem:[%s262 + $0x3f0] sm:$0xff]
        %v445 = vld [vmem:[%s262 + $0x3f8] sm:$0xff]
        %v446 = vld [vmem:[%s272] sm:$0xf]
        %v448 = vperm.slane %v446, 0
        %v449 = vperm.slane %v446, 1
        %v450 = vperm.slane %v446, 2
        %v451 = vperm.slane %v446, 3
        %v456 = vand.u32 %v378, 4294901760
        %457 = vmatpush.msra.mxu0 %v456
        %v458 = vand.u32 %v374, 4294901760
        %459 = vmatpush.msra.mxu0 %v458
        %v460 = vand.u32 %v370, 4294901760
        %461 = vmatpush.msra.mxu0 %v460
        %v462 = vand.u32 %v366, 4294901760
        %463 = vmatpush.msra.mxu0 %v462
        %v464 = vand.u32 %v362, 4294901760
        %465 = vmatpush.msra.mxu0 %v464
        %v466 = vand.u32 %v358, 4294901760
        %467 = vmatpush.msra.mxu0 %v466
        %v468 = vand.u32 %v354, 4294901760
        %469 = vmatpush.msra.mxu0 %v468
        %v470 = vand.u32 %v350, 4294901760
        %471 = vmatpush.msra.mxu0 %v470
        %v472 = vand.u32 %v346, 4294901760
        %473 = vmatpush.msra.mxu0 %v472
        %v474 = vand.u32 %v342, 4294901760
        %475 = vmatpush.msra.mxu0 %v474
        %v476 = vand.u32 %v338, 4294901760
        %477 = vmatpush.msra.mxu0 %v476
        %v478 = vand.u32 %v334, 4294901760
        %479 = vmatpush.msra.mxu0 %v478
        %v480 = vand.u32 %v330, 4294901760
        %481 = vmatpush.msra.mxu0 %v480
        %v482 = vand.u32 %v326, 4294901760
        %483 = vmatpush.msra.mxu0 %v482
        %v484 = vand.u32 %v322, 4294901760
        %485 = vmatpush.msra.mxu0 %v484
        %v486 = vand.u32 %v318, 4294901760
        %487 = vmatpush.msra.mxu0 %v486
        %v488 = vand.u32 %v316, 4294901760
        %v489 = vsub.f32 %v316, %v488
        %v490 = vand.u32 %v489, 4294901760
        %v491 = vsub.f32 %v489, %v490
        %v492 = vand.u32 %v491, 4294901760
        %493 = vmatmul.f32.gmra.mxu0 %v492
        %v494 = vpop.f32.mrf.mxu0
        %v495 = vadd.f32 %v448, %v494
        %496 = vdwg.mxu0
        %v497 = vand.u32 %v378, 4294901760
        %v498 = vsub.f32 %v378, %v497
        %v499 = vand.u32 %v498, 4294901760
        %v500 = vsub.f32 %v498, %v499
        %v501 = vand.u32 %v500, 4294901760
        %502 = vmatpush.msra.mxu0 %v501
        %v503 = vand.u32 %v374, 4294901760
        %v504 = vsub.f32 %v374, %v503
        %v505 = vand.u32 %v504, 4294901760
        %v506 = vsub.f32 %v504, %v505
        %v507 = vand.u32 %v506, 4294901760
        %508 = vmatpush.msra.mxu0 %v507
        %v509 = vand.u32 %v370, 4294901760
        %v510 = vsub.f32 %v370, %v509
        %v511 = vand.u32 %v510, 4294901760
        %v512 = vsub.f32 %v510, %v511
        %v513 = vand.u32 %v512, 4294901760
        %514 = vmatpush.msra.mxu0 %v513
        %v515 = vand.u32 %v366, 4294901760
        %v516 = vsub.f32 %v366, %v515
        %v517 = vand.u32 %v516, 4294901760
        %v518 = vsub.f32 %v516, %v517
        %v519 = vand.u32 %v518, 4294901760
        %520 = vmatpush.msra.mxu0 %v519
        %v521 = vand.u32 %v362, 4294901760
        %v522 = vsub.f32 %v362, %v521
        %v523 = vand.u32 %v522, 4294901760
        %v524 = vsub.f32 %v522, %v523
        %v525 = vand.u32 %v524, 4294901760
        %526 = vmatpush.msra.mxu0 %v525
        %v527 = vand.u32 %v358, 4294901760
        %v528 = vsub.f32 %v358, %v527
        %v529 = vand.u32 %v528, 4294901760
        %v530 = vsub.f32 %v528, %v529
        %v531 = vand.u32 %v530, 4294901760
        %532 = vmatpush.msra.mxu0 %v531
        %v533 = vand.u32 %v354, 4294901760
        %v534 = vsub.f32 %v354, %v533
        %v535 = vand.u32 %v534, 4294901760
        %v536 = vsub.f32 %v534, %v535
        %v537 = vand.u32 %v536, 4294901760
        %538 = vmatpush.msra.mxu0 %v537
        %v539 = vand.u32 %v350, 4294901760
        %v540 = vsub.f32 %v350, %v539
        %v541 = vand.u32 %v540, 4294901760
        %v542 = vsub.f32 %v540, %v541
        %v543 = vand.u32 %v542, 4294901760
        %544 = vmatpush.msra.mxu0 %v543
        %v545 = vand.u32 %v346, 4294901760
        %v546 = vsub.f32 %v346, %v545
        %v547 = vand.u32 %v546, 4294901760
        %v548 = vsub.f32 %v546, %v547
        %v549 = vand.u32 %v548, 4294901760
        %550 = vmatpush.msra.mxu0 %v549
        %v551 = vand.u32 %v342, 4294901760
        %v552 = vsub.f32 %v342, %v551
        %v553 = vand.u32 %v552, 4294901760
        %v554 = vsub.f32 %v552, %v553
        %v555 = vand.u32 %v554, 4294901760
        %556 = vmatpush.msra.mxu0 %v555
        %v557 = vand.u32 %v338, 4294901760
        %v558 = vsub.f32 %v338, %v557
        %v559 = vand.u32 %v558, 4294901760
        %v560 = vsub.f32 %v558, %v559
        %v561 = vand.u32 %v560, 4294901760
        %562 = vmatpush.msra.mxu0 %v561
        %v563 = vand.u32 %v334, 4294901760
        %v564 = vsub.f32 %v334, %v563
        %v565 = vand.u32 %v564, 4294901760
        %v566 = vsub.f32 %v564, %v565
        %v567 = vand.u32 %v566, 4294901760
        %568 = vmatpush.msra.mxu0 %v567
        %v569 = vand.u32 %v330, 4294901760
        %v570 = vsub.f32 %v330, %v569
        %v571 = vand.u32 %v570, 4294901760
        %v572 = vsub.f32 %v570, %v571
        %v573 = vand.u32 %v572, 4294901760
        %574 = vmatpush.msra.mxu0 %v573
        %v575 = vand.u32 %v326, 4294901760
        %v576 = vsub.f32 %v326, %v575
        %v577 = vand.u32 %v576, 4294901760
        %v578 = vsub.f32 %v576, %v577
        %v579 = vand.u32 %v578, 4294901760
        %580 = vmatpush.msra.mxu0 %v579
        %v581 = vand.u32 %v322, 4294901760
        %v582 = vsub.f32 %v322, %v581
        %v583 = vand.u32 %v582, 4294901760
        %v584 = vsub.f32 %v582, %v583
        %v585 = vand.u32 %v584, 4294901760
        %586 = vmatpush.msra.mxu0 %v585
        %v587 = vand.u32 %v318, 4294901760
        %v588 = vsub.f32 %v318, %v587
        %v589 = vand.u32 %v588, 4294901760
        %v590 = vsub.f32 %v588, %v589
        %v591 = vand.u32 %v590, 4294901760
        %592 = vmatpush.msra.mxu0 %v591
        %v593 = vand.u32 %v316, 4294901760
        %594 = vmatmul.f32.gmra.mxu0 %v593
        %v595 = vpop.f32.mrf.mxu0
        %v596 = vadd.f32 %v495, %v595
        %597 = vdwg.mxu0
        %v598 = vand.u32 %v378, 4294901760
        %v599 = vsub.f32 %v378, %v598
        %600 = vmatpush.msra.mxu0 %v599
        %v601 = vand.u32 %v374, 4294901760
        %v602 = vsub.f32 %v374, %v601
        %603 = vmatpush.msra.mxu0 %v602
        %v604 = vand.u32 %v370, 4294901760
        %v605 = vsub.f32 %v370, %v604
        %606 = vmatpush.msra.mxu0 %v605
        %v607 = vand.u32 %v366, 4294901760
        %v608 = vsub.f32 %v366, %v607
        %609 = vmatpush.msra.mxu0 %v608
        %v610 = vand.u32 %v362, 4294901760
        %v611 = vsub.f32 %v362, %v610
        %612 = vmatpush.msra.mxu0 %v611
        %v613 = vand.u32 %v358, 4294901760
        %v614 = vsub.f32 %v358, %v613
        %615 = vmatpush.msra.mxu0 %v614
        %v616 = vand.u32 %v354, 4294901760
        %v617 = vsub.f32 %v354, %v616
        %618 = vmatpush.msra.mxu0 %v617
        %v619 = vand.u32 %v350, 4294901760
        %v620 = vsub.f32 %v350, %v619
        %621 = vmatpush.msra.mxu0 %v620
        %v622 = vand.u32 %v346, 4294901760
        %v623 = vsub.f32 %v346, %v622
        %624 = vmatpush.msra.mxu0 %v623
        %v625 = vand.u32 %v342, 4294901760
        %v626 = vsub.f32 %v342, %v625
        %627 = vmatpush.msra.mxu0 %v626
        %v628 = vand.u32 %v338, 4294901760
        %v629 = vsub.f32 %v338, %v628
        %630 = vmatpush.msra.mxu0 %v629
        %v631 = vand.u32 %v334, 4294901760
        %v632 = vsub.f32 %v334, %v631
        %633 = vmatpush.msra.mxu0 %v632
        %v634 = vand.u32 %v330, 4294901760
        %v635 = vsub.f32 %v330, %v634
        %636 = vmatpush.msra.mxu0 %v635
        %v637 = vand.u32 %v326, 4294901760
        %v638 = vsub.f32 %v326, %v637
        %639 = vmatpush.msra.mxu0 %v638
        %v640 = vand.u32 %v322, 4294901760
        %v641 = vsub.f32 %v322, %v640
        %642 = vmatpush.msra.mxu0 %v641
        %v643 = vand.u32 %v318, 4294901760
        %v644 = vsub.f32 %v318, %v643
        %645 = vmatpush.msra.mxu0 %v644
        %v646 = vand.u32 %v316, 4294901760
        %v647 = vsub.f32 %v316, %v646
        %648 = vmatmul.f32.gmra.mxu0 %v647
        %v649 = vpop.f32.mrf.mxu0
        %v650 = vadd.f32 %v596, %v649
        %651 = vdwg.mxu0
        %v652 = vand.u32 %v378, 4294901760
        %653 = vmatpush.msra.mxu0 %v652
        %v654 = vand.u32 %v374, 4294901760
        %655 = vmatpush.msra.mxu0 %v654
        %v656 = vand.u32 %v370, 4294901760
        %657 = vmatpush.msra.mxu0 %v656
        %v658 = vand.u32 %v366, 4294901760
        %659 = vmatpush.msra.mxu0 %v658
        %v660 = vand.u32 %v362, 4294901760
        %661 = vmatpush.msra.mxu0 %v660
        %v662 = vand.u32 %v358, 4294901760
        %663 = vmatpush.msra.mxu0 %v662
        %v664 = vand.u32 %v354, 4294901760
        %665 = vmatpush.msra.mxu0 %v664
        %v666 = vand.u32 %v350, 4294901760
        %667 = vmatpush.msra.mxu0 %v666
        %v668 = vand.u32 %v346, 4294901760
        %669 = vmatpush.msra.mxu0 %v668
        %v670 = vand.u32 %v342, 4294901760
        %671 = vmatpush.msra.mxu0 %v670
        %v672 = vand.u32 %v338, 4294901760
        %673 = vmatpush.msra.mxu0 %v672
        %v674 = vand.u32 %v334, 4294901760
        %675 = vmatpush.msra.mxu0 %v674
        %v676 = vand.u32 %v330, 4294901760
        %677 = vmatpush.msra.mxu0 %v676
        %v678 = vand.u32 %v326, 4294901760
        %679 = vmatpush.msra.mxu0 %v678
        %v680 = vand.u32 %v322, 4294901760
        %681 = vmatpush.msra.mxu0 %v680
        %v682 = vand.u32 %v318, 4294901760
        %683 = vmatpush.msra.mxu0 %v682
        %v684 = vand.u32 %v316, 4294901760
        %v685 = vsub.f32 %v316, %v684
        %v686 = vand.u32 %v685, 4294901760
        %687 = vmatmul.f32.gmra.mxu0 %v686
        %v688 = vpop.f32.mrf.mxu0
        %v689 = vadd.f32 %v650, %v688
        %690 = vdwg.mxu0
        %v691 = vand.u32 %v378, 4294901760
        %v692 = vsub.f32 %v378, %v691
        %v693 = vand.u32 %v692, 4294901760
        %694 = vmatpush.msra.mxu0 %v693
        %v695 = vand.u32 %v374, 4294901760
        %v696 = vsub.f32 %v374, %v695
        %v697 = vand.u32 %v696, 4294901760
        %698 = vmatpush.msra.mxu0 %v697
        %v699 = vand.u32 %v370, 4294901760
        %v700 = vsub.f32 %v370, %v699
        %v701 = vand.u32 %v700, 4294901760
        %702 = vmatpush.msra.mxu0 %v701
        %v703 = vand.u32 %v366, 4294901760
        %v704 = vsub.f32 %v366, %v703
        %v705 = vand.u32 %v704, 4294901760
        %706 = vmatpush.msra.mxu0 %v705
        %v707 = vand.u32 %v362, 4294901760
        %v708 = vsub.f32 %v362, %v707
        %v709 = vand.u32 %v708, 4294901760
        %710 = vmatpush.msra.mxu0 %v709
        %v711 = vand.u32 %v358, 4294901760
        %v712 = vsub.f32 %v358, %v711
        %v713 = vand.u32 %v712, 4294901760
        %714 = vmatpush.msra.mxu0 %v713
        %v715 = vand.u32 %v354, 4294901760
        %v716 = vsub.f32 %v354, %v715
        %v717 = vand.u32 %v716, 4294901760
        %718 = vmatpush.msra.mxu0 %v717
        %v719 = vand.u32 %v350, 4294901760
        %v720 = vsub.f32 %v350, %v719
        %v721 = vand.u32 %v720, 4294901760
        %722 = vmatpush.msra.mxu0 %v721
        %v723 = vand.u32 %v346, 4294901760
        %v724 = vsub.f32 %v346, %v723
        %v725 = vand.u32 %v724, 4294901760
        %726 = vmatpush.msra.mxu0 %v725
        %v727 = vand.u32 %v342, 4294901760
        %v728 = vsub.f32 %v342, %v727
        %v729 = vand.u32 %v728, 4294901760
        %730 = vmatpush.msra.mxu0 %v729
        %v731 = vand.u32 %v338, 4294901760
        %v732 = vsub.f32 %v338, %v731
        %v733 = vand.u32 %v732, 4294901760
        %734 = vmatpush.msra.mxu0 %v733
        %v735 = vand.u32 %v334, 4294901760
        %v736 = vsub.f32 %v334, %v735
        %v737 = vand.u32 %v736, 4294901760
        %738 = vmatpush.msra.mxu0 %v737
        %v739 = vand.u32 %v330, 4294901760
        %v740 = vsub.f32 %v330, %v739
        %v741 = vand.u32 %v740, 4294901760
        %742 = vmatpush.msra.mxu0 %v741
        %v743 = vand.u32 %v326, 4294901760
        %v744 = vsub.f32 %v326, %v743
        %v745 = vand.u32 %v744, 4294901760
        %746 = vmatpush.msra.mxu0 %v745
        %v747 = vand.u32 %v322, 4294901760
        %v748 = vsub.f32 %v322, %v747
        %v749 = vand.u32 %v748, 4294901760
        %750 = vmatpush.msra.mxu0 %v749
        %v751 = vand.u32 %v318, 4294901760
        %v752 = vsub.f32 %v318, %v751
        %v753 = vand.u32 %v752, 4294901760
        %754 = vmatpush.msra.mxu0 %v753
        %v755 = vand.u32 %v316, 4294901760
        %756 = vmatmul.f32.gmra.mxu0 %v755
        %v757 = vpop.f32.mrf.mxu0
        %v758 = vadd.f32 %v689, %v757
        %759 = vdwg.mxu0
        %v760 = vand.u32 %v378, 4294901760
        %761 = vmatpush.msra.mxu0 %v760
        %v762 = vand.u32 %v374, 4294901760
        %763 = vmatpush.msra.mxu0 %v762
        %v764 = vand.u32 %v370, 4294901760
        %765 = vmatpush.msra.mxu0 %v764
        %v766 = vand.u32 %v366, 4294901760
        %767 = vmatpush.msra.mxu0 %v766
        %v768 = vand.u32 %v362, 4294901760
        %769 = vmatpush.msra.mxu0 %v768
        %v770 = vand.u32 %v358, 4294901760
        %771 = vmatpush.msra.mxu0 %v770
        %v772 = vand.u32 %v354, 4294901760
        %773 = vmatpush.msra.mxu0 %v772
        %v774 = vand.u32 %v350, 4294901760
        %775 = vmatpush.msra.mxu0 %v774
        %v776 = vand.u32 %v346, 4294901760
        %777 = vmatpush.msra.mxu0 %v776
        %v778 = vand.u32 %v342, 4294901760
        %779 = vmatpush.msra.mxu0 %v778
        %v780 = vand.u32 %v338, 4294901760
        %781 = vmatpush.msra.mxu0 %v780
        %v782 = vand.u32 %v334, 4294901760
        %783 = vmatpush.msra.mxu0 %v782
        %v784 = vand.u32 %v330, 4294901760
        %785 = vmatpush.msra.mxu0 %v784
        %v786 = vand.u32 %v326, 4294901760
        %787 = vmatpush.msra.mxu0 %v786
        %v788 = vand.u32 %v322, 4294901760
        %789 = vmatpush.msra.mxu0 %v788
        %v790 = vand.u32 %v318, 4294901760
        %791 = vmatpush.msra.mxu0 %v790
        %v792 = vand.u32 %v316, 4294901760
        %793 = vmatmul.f32.gmra.mxu0 %v792
        %v794 = vpop.f32.mrf.mxu0
        %v795 = vadd.f32 %v758, %v794
        %796 = vdwg.mxu0
        %v797 = vand.u32 %v442, 4294901760
        %798 = vmatpush.msra.mxu0 %v797
        %v799 = vand.u32 %v438, 4294901760
        %800 = vmatpush.msra.mxu0 %v799
        %v801 = vand.u32 %v434, 4294901760
        %802 = vmatpush.msra.mxu0 %v801
        %v803 = vand.u32 %v430, 4294901760
        %804 = vmatpush.msra.mxu0 %v803
        %v805 = vand.u32 %v426, 4294901760
        %806 = vmatpush.msra.mxu0 %v805
        %v807 = vand.u32 %v422, 4294901760
        %808 = vmatpush.msra.mxu0 %v807
        %v809 = vand.u32 %v418, 4294901760
        %810 = vmatpush.msra.mxu0 %v809
        %v811 = vand.u32 %v414, 4294901760
        %812 = vmatpush.msra.mxu0 %v811
        %v813 = vand.u32 %v410, 4294901760
        %814 = vmatpush.msra.mxu0 %v813
        %v815 = vand.u32 %v406, 4294901760
        %816 = vmatpush.msra.mxu0 %v815
        %v817 = vand.u32 %v402, 4294901760
        %818 = vmatpush.msra.mxu0 %v817
        %v819 = vand.u32 %v398, 4294901760
        %820 = vmatpush.msra.mxu0 %v819
        %v821 = vand.u32 %v394, 4294901760
        %822 = vmatpush.msra.mxu0 %v821
        %v823 = vand.u32 %v390, 4294901760
        %824 = vmatpush.msra.mxu0 %v823
        %v825 = vand.u32 %v386, 4294901760
        %826 = vmatpush.msra.mxu0 %v825
        %v827 = vand.u32 %v382, 4294901760
        %828 = vmatpush.msra.mxu0 %v827
        %v829 = vand.u32 %v317, 4294901760
        %v830 = vsub.f32 %v317, %v829
        %v831 = vand.u32 %v830, 4294901760
        %v832 = vsub.f32 %v830, %v831
        %v833 = vand.u32 %v832, 4294901760
        %834 = vmatmul.f32.gmra.mxu0 %v833
        %v835 = vpop.f32.mrf.mxu0
        %v836 = vadd.f32 %v795, %v835
        %837 = vdwg.mxu0
        %v838 = vand.u32 %v442, 4294901760
        %v839 = vsub.f32 %v442, %v838
        %v840 = vand.u32 %v839, 4294901760
        %v841 = vsub.f32 %v839, %v840
        %v842 = vand.u32 %v841, 4294901760
        %843 = vmatpush.msra.mxu0 %v842
        %v844 = vand.u32 %v438, 4294901760
        %v845 = vsub.f32 %v438, %v844
        %v846 = vand.u32 %v845, 4294901760
        %v847 = vsub.f32 %v845, %v846
        %v848 = vand.u32 %v847, 4294901760
        %849 = vmatpush.msra.mxu0 %v848
        %v850 = vand.u32 %v434, 4294901760
        %v851 = vsub.f32 %v434, %v850
        %v852 = vand.u32 %v851, 4294901760
        %v853 = vsub.f32 %v851, %v852
        %v854 = vand.u32 %v853, 4294901760
        %855 = vmatpush.msra.mxu0 %v854
        %v856 = vand.u32 %v430, 4294901760
        %v857 = vsub.f32 %v430, %v856
        %v858 = vand.u32 %v857, 4294901760
        %v859 = vsub.f32 %v857, %v858
        %v860 = vand.u32 %v859, 4294901760
        %861 = vmatpush.msra.mxu0 %v860
        %v862 = vand.u32 %v426, 4294901760
        %v863 = vsub.f32 %v426, %v862
        %v864 = vand.u32 %v863, 4294901760
        %v865 = vsub.f32 %v863, %v864
        %v866 = vand.u32 %v865, 4294901760
        %867 = vmatpush.msra.mxu0 %v866
        %v868 = vand.u32 %v422, 4294901760
        %v869 = vsub.f32 %v422, %v868
        %v870 = vand.u32 %v869, 4294901760
        %v871 = vsub.f32 %v869, %v870
        %v872 = vand.u32 %v871, 4294901760
        %873 = vmatpush.msra.mxu0 %v872
        %v874 = vand.u32 %v418, 4294901760
        %v875 = vsub.f32 %v418, %v874
        %v876 = vand.u32 %v875, 4294901760
        %v877 = vsub.f32 %v875, %v876
        %v878 = vand.u32 %v877, 4294901760
        %879 = vmatpush.msra.mxu0 %v878
        %v880 = vand.u32 %v414, 4294901760
        %v881 = vsub.f32 %v414, %v880
        %v882 = vand.u32 %v881, 4294901760
        %v883 = vsub.f32 %v881, %v882
        %v884 = vand.u32 %v883, 4294901760
        %885 = vmatpush.msra.mxu0 %v884
        %v886 = vand.u32 %v410, 4294901760
        %v887 = vsub.f32 %v410, %v886
        %v888 = vand.u32 %v887, 4294901760
        %v889 = vsub.f32 %v887, %v888
        %v890 = vand.u32 %v889, 4294901760
        %891 = vmatpush.msra.mxu0 %v890
        %v892 = vand.u32 %v406, 4294901760
        %v893 = vsub.f32 %v406, %v892
        %v894 = vand.u32 %v893, 4294901760
        %v895 = vsub.f32 %v893, %v894
        %v896 = vand.u32 %v895, 4294901760
        %897 = vmatpush.msra.mxu0 %v896
        %v898 = vand.u32 %v402, 4294901760
        %v899 = vsub.f32 %v402, %v898
        %v900 = vand.u32 %v899, 4294901760
        %v901 = vsub.f32 %v899, %v900
        %v902 = vand.u32 %v901, 4294901760
        %903 = vmatpush.msra.mxu0 %v902
        %v904 = vand.u32 %v398, 4294901760
        %v905 = vsub.f32 %v398, %v904
        %v906 = vand.u32 %v905, 4294901760
        %v907 = vsub.f32 %v905, %v906
        %v908 = vand.u32 %v907, 4294901760
        %909 = vmatpush.msra.mxu0 %v908
        %v910 = vand.u32 %v394, 4294901760
        %v911 = vsub.f32 %v394, %v910
        %v912 = vand.u32 %v911, 4294901760
        %v913 = vsub.f32 %v911, %v912
        %v914 = vand.u32 %v913, 4294901760
        %915 = vmatpush.msra.mxu0 %v914
        %v916 = vand.u32 %v390, 4294901760
        %v917 = vsub.f32 %v390, %v916
        %v918 = vand.u32 %v917, 4294901760
        %v919 = vsub.f32 %v917, %v918
        %v920 = vand.u32 %v919, 4294901760
        %921 = vmatpush.msra.mxu0 %v920
        %v922 = vand.u32 %v386, 4294901760
        %v923 = vsub.f32 %v386, %v922
        %v924 = vand.u32 %v923, 4294901760
        %v925 = vsub.f32 %v923, %v924
        %v926 = vand.u32 %v925, 4294901760
        %927 = vmatpush.msra.mxu0 %v926
        %v928 = vand.u32 %v382, 4294901760
        %v929 = vsub.f32 %v382, %v928
        %v930 = vand.u32 %v929, 4294901760
        %v931 = vsub.f32 %v929, %v930
        %v932 = vand.u32 %v931, 4294901760
        %933 = vmatpush.msra.mxu0 %v932
        %v934 = vand.u32 %v317, 4294901760
        %935 = vmatmul.f32.gmra.mxu0 %v934
        %v936 = vpop.f32.mrf.mxu0
        %v937 = vadd.f32 %v836, %v936
        %938 = vdwg.mxu0
        %v939 = vand.u32 %v442, 4294901760
        %v940 = vsub.f32 %v442, %v939
        %941 = vmatpush.msra.mxu0 %v940
        %v942 = vand.u32 %v438, 4294901760
        %v943 = vsub.f32 %v438, %v942
        %944 = vmatpush.msra.mxu0 %v943
        %v945 = vand.u32 %v434, 4294901760
        %v946 = vsub.f32 %v434, %v945
        %947 = vmatpush.msra.mxu0 %v946
        %v948 = vand.u32 %v430, 4294901760
        %v949 = vsub.f32 %v430, %v948
        %950 = vmatpush.msra.mxu0 %v949
        %v951 = vand.u32 %v426, 4294901760
        %v952 = vsub.f32 %v426, %v951
        %953 = vmatpush.msra.mxu0 %v952
        %v954 = vand.u32 %v422, 4294901760
        %v955 = vsub.f32 %v422, %v954
        %956 = vmatpush.msra.mxu0 %v955
        %v957 = vand.u32 %v418, 4294901760
        %v958 = vsub.f32 %v418, %v957
        %959 = vmatpush.msra.mxu0 %v958
        %v960 = vand.u32 %v414, 4294901760
        %v961 = vsub.f32 %v414, %v960
        %962 = vmatpush.msra.mxu0 %v961
        %v963 = vand.u32 %v410, 4294901760
        %v964 = vsub.f32 %v410, %v963
        %965 = vmatpush.msra.mxu0 %v964
        %v966 = vand.u32 %v406, 4294901760
        %v967 = vsub.f32 %v406, %v966
        %968 = vmatpush.msra.mxu0 %v967
        %v969 = vand.u32 %v402, 4294901760
        %v970 = vsub.f32 %v402, %v969
        %971 = vmatpush.msra.mxu0 %v970
        %v972 = vand.u32 %v398, 4294901760
        %v973 = vsub.f32 %v398, %v972
        %974 = vmatpush.msra.mxu0 %v973
        %v975 = vand.u32 %v394, 4294901760
        %v976 = vsub.f32 %v394, %v975
        %977 = vmatpush.msra.mxu0 %v976
        %v978 = vand.u32 %v390, 4294901760
        %v979 = vsub.f32 %v390, %v978
        %980 = vmatpush.msra.mxu0 %v979
        %v981 = vand.u32 %v386, 4294901760
        %v982 = vsub.f32 %v386, %v981
        %983 = vmatpush.msra.mxu0 %v982
        %v984 = vand.u32 %v382, 4294901760
        %v985 = vsub.f32 %v382, %v984
        %986 = vmatpush.msra.mxu0 %v985
        %v987 = vand.u32 %v317, 4294901760
        %v988 = vsub.f32 %v317, %v987
        %989 = vmatmul.f32.gmra.mxu0 %v988
        %v990 = vpop.f32.mrf.mxu0
        %v991 = vadd.f32 %v937, %v990
        %992 = vdwg.mxu0
        %v993 = vand.u32 %v442, 4294901760
        %994 = vmatpush.msra.mxu0 %v993
        %v995 = vand.u32 %v438, 4294901760
        %996 = vmatpush.msra.mxu0 %v995
        %v997 = vand.u32 %v434, 4294901760
        %998 = vmatpush.msra.mxu0 %v997
        %v999 = vand.u32 %v430, 4294901760
        %1000 = vmatpush.msra.mxu0 %v999
        %v1001 = vand.u32 %v426, 4294901760
        %1002 = vmatpush.msra.mxu0 %v1001
        %v1003 = vand.u32 %v422, 4294901760
        %1004 = vmatpush.msra.mxu0 %v1003
        %v1005 = vand.u32 %v418, 4294901760
        %1006 = vmatpush.msra.mxu0 %v1005
        %v1007 = vand.u32 %v414, 4294901760
        %1008 = vmatpush.msra.mxu0 %v1007
        %v1009 = vand.u32 %v410, 4294901760
        %1010 = vmatpush.msra.mxu0 %v1009
        %v1011 = vand.u32 %v406, 4294901760
        %1012 = vmatpush.msra.mxu0 %v1011
        %v1013 = vand.u32 %v402, 4294901760
        %1014 = vmatpush.msra.mxu0 %v1013
        %v1015 = vand.u32 %v398, 4294901760
        %1016 = vmatpush.msra.mxu0 %v1015
        %v1017 = vand.u32 %v394, 4294901760
        %1018 = vmatpush.msra.mxu0 %v1017
        %v1019 = vand.u32 %v390, 4294901760
        %1020 = vmatpush.msra.mxu0 %v1019
        %v1021 = vand.u32 %v386, 4294901760
        %1022 = vmatpush.msra.mxu0 %v1021
        %v1023 = vand.u32 %v382, 4294901760
        %1024 = vmatpush.msra.mxu0 %v1023
        %v1025 = vand.u32 %v317, 4294901760
        %v1026 = vsub.f32 %v317, %v1025
        %v1027 = vand.u32 %v1026, 4294901760
        %1028 = vmatmul.f32.gmra.mxu0 %v1027
        %v1029 = vpop.f32.mrf.mxu0
        %v1030 = vadd.f32 %v991, %v1029
        %1031 = vdwg.mxu0
        %v1032 = vand.u32 %v442, 4294901760
        %v1033 = vsub.f32 %v442, %v1032
        %v1034 = vand.u32 %v1033, 4294901760
        %1035 = vmatpush.msra.mxu0 %v1034
        %v1036 = vand.u32 %v438, 4294901760
        %v1037 = vsub.f32 %v438, %v1036
        %v1038 = vand.u32 %v1037, 4294901760
        %1039 = vmatpush.msra.mxu0 %v1038
        %v1040 = vand.u32 %v434, 4294901760
        %v1041 = vsub.f32 %v434, %v1040
        %v1042 = vand.u32 %v1041, 4294901760
        %1043 = vmatpush.msra.mxu0 %v1042
        %v1044 = vand.u32 %v430, 4294901760
        %v1045 = vsub.f32 %v430, %v1044
        %v1046 = vand.u32 %v1045, 4294901760
        %1047 = vmatpush.msra.mxu0 %v1046
        %v1048 = vand.u32 %v426, 4294901760
        %v1049 = vsub.f32 %v426, %v1048
        %v1050 = vand.u32 %v1049, 4294901760
        %1051 = vmatpush.msra.mxu0 %v1050
        %v1052 = vand.u32 %v422, 4294901760
        %v1053 = vsub.f32 %v422, %v1052
        %v1054 = vand.u32 %v1053, 4294901760
        %1055 = vmatpush.msra.mxu0 %v1054
        %v1056 = vand.u32 %v418, 4294901760
        %v1057 = vsub.f32 %v418, %v1056
        %v1058 = vand.u32 %v1057, 4294901760
        %1059 = vmatpush.msra.mxu0 %v1058
        %v1060 = vand.u32 %v414, 4294901760
        %v1061 = vsub.f32 %v414, %v1060
        %v1062 = vand.u32 %v1061, 4294901760
        %1063 = vmatpush.msra.mxu0 %v1062
        %v1064 = vand.u32 %v410, 4294901760
        %v1065 = vsub.f32 %v410, %v1064
        %v1066 = vand.u32 %v1065, 4294901760
        %1067 = vmatpush.msra.mxu0 %v1066
        %v1068 = vand.u32 %v406, 4294901760
        %v1069 = vsub.f32 %v406, %v1068
        %v1070 = vand.u32 %v1069, 4294901760
        %1071 = vmatpush.msra.mxu0 %v1070
        %v1072 = vand.u32 %v402, 4294901760
        %v1073 = vsub.f32 %v402, %v1072
        %v1074 = vand.u32 %v1073, 4294901760
        %1075 = vmatpush.msra.mxu0 %v1074
        %v1076 = vand.u32 %v398, 4294901760
        %v1077 = vsub.f32 %v398, %v1076
        %v1078 = vand.u32 %v1077, 4294901760
        %1079 = vmatpush.msra.mxu0 %v1078
        %v1080 = vand.u32 %v394, 4294901760
        %v1081 = vsub.f32 %v394, %v1080
        %v1082 = vand.u32 %v1081, 4294901760
        %1083 = vmatpush.msra.mxu0 %v1082
        %v1084 = vand.u32 %v390, 4294901760
        %v1085 = vsub.f32 %v390, %v1084
        %v1086 = vand.u32 %v1085, 4294901760
        %1087 = vmatpush.msra.mxu0 %v1086
        %v1088 = vand.u32 %v386, 4294901760
        %v1089 = vsub.f32 %v386, %v1088
        %v1090 = vand.u32 %v1089, 4294901760
        %1091 = vmatpush.msra.mxu0 %v1090
        %v1092 = vand.u32 %v382, 4294901760
        %v1093 = vsub.f32 %v382, %v1092
        %v1094 = vand.u32 %v1093, 4294901760
        %1095 = vmatpush.msra.mxu0 %v1094
        %v1096 = vand.u32 %v317, 4294901760
        %1097 = vmatmul.f32.gmra.mxu0 %v1096
        %v1098 = vpop.f32.mrf.mxu0
        %v1099 = vadd.f32 %v1030, %v1098
        %1100 = vdwg.mxu0
        %v1101 = vand.u32 %v442, 4294901760
        %1102 = vmatpush.msra.mxu0 %v1101
        %v1103 = vand.u32 %v438, 4294901760
        %1104 = vmatpush.msra.mxu0 %v1103
        %v1105 = vand.u32 %v434, 4294901760
        %1106 = vmatpush.msra.mxu0 %v1105
        %v1107 = vand.u32 %v430, 4294901760
        %1108 = vmatpush.msra.mxu0 %v1107
        %v1109 = vand.u32 %v426, 4294901760
        %1110 = vmatpush.msra.mxu0 %v1109
        %v1111 = vand.u32 %v422, 4294901760
        %1112 = vmatpush.msra.mxu0 %v1111
        %v1113 = vand.u32 %v418, 4294901760
        %1114 = vmatpush.msra.mxu0 %v1113
        %v1115 = vand.u32 %v414, 4294901760
        %1116 = vmatpush.msra.mxu0 %v1115
        %v1117 = vand.u32 %v410, 4294901760
        %1118 = vmatpush.msra.mxu0 %v1117
        %v1119 = vand.u32 %v406, 4294901760
        %1120 = vmatpush.msra.mxu0 %v1119
        %v1121 = vand.u32 %v402, 4294901760
        %1122 = vmatpush.msra.mxu0 %v1121
        %v1123 = vand.u32 %v398, 4294901760
        %1124 = vmatpush.msra.mxu0 %v1123
        %v1125 = vand.u32 %v394, 4294901760
        %1126 = vmatpush.msra.mxu0 %v1125
        %v1127 = vand.u32 %v390, 4294901760
        %1128 = vmatpush.msra.mxu0 %v1127
        %v1129 = vand.u32 %v386, 4294901760
        %1130 = vmatpush.msra.mxu0 %v1129
        %v1131 = vand.u32 %v382, 4294901760
        %1132 = vmatpush.msra.mxu0 %v1131
        %v1133 = vand.u32 %v317, 4294901760
        %1134 = vmatmul.f32.gmra.mxu0 %v1133
        %v1135 = vpop.f32.mrf.mxu0
        %v1136 = vadd.f32 %v1099, %v1135
        %1137 = vdwg.mxu0
        %v1138 = vand.u32 %v379, 4294901760
        %1139 = vmatpush.msra.mxu0 %v1138
        %v1140 = vand.u32 %v375, 4294901760
        %1141 = vmatpush.msra.mxu0 %v1140
        %v1142 = vand.u32 %v371, 4294901760
        %1143 = vmatpush.msra.mxu0 %v1142
        %v1144 = vand.u32 %v367, 4294901760
        %1145 = vmatpush.msra.mxu0 %v1144
        %v1146 = vand.u32 %v363, 4294901760
        %1147 = vmatpush.msra.mxu0 %v1146
        %v1148 = vand.u32 %v359, 4294901760
        %1149 = vmatpush.msra.mxu0 %v1148
        %v1150 = vand.u32 %v355, 4294901760
        %1151 = vmatpush.msra.mxu0 %v1150
        %v1152 = vand.u32 %v351, 4294901760
        %1153 = vmatpush.msra.mxu0 %v1152
        %v1154 = vand.u32 %v347, 4294901760
        %1155 = vmatpush.msra.mxu0 %v1154
        %v1156 = vand.u32 %v343, 4294901760
        %1157 = vmatpush.msra.mxu0 %v1156
        %v1158 = vand.u32 %v339, 4294901760
        %1159 = vmatpush.msra.mxu0 %v1158
        %v1160 = vand.u32 %v335, 4294901760
        %1161 = vmatpush.msra.mxu0 %v1160
        %v1162 = vand.u32 %v331, 4294901760
        %1163 = vmatpush.msra.mxu0 %v1162
        %v1164 = vand.u32 %v327, 4294901760
        %1165 = vmatpush.msra.mxu0 %v1164
        %v1166 = vand.u32 %v323, 4294901760
        %1167 = vmatpush.msra.mxu0 %v1166
        %v1168 = vand.u32 %v319, 4294901760
        %1169 = vmatpush.msra.mxu0 %v1168
        %v1170 = vand.u32 %v316, 4294901760
        %v1171 = vsub.f32 %v316, %v1170
        %v1172 = vand.u32 %v1171, 4294901760
        %v1173 = vsub.f32 %v1171, %v1172
        %v1174 = vand.u32 %v1173, 4294901760
        %1175 = vmatmul.f32.gmra.mxu0 %v1174
        %v1176 = vpop.f32.mrf.mxu0
        %v1177 = vadd.f32 %v449, %v1176
        %1178 = vdwg.mxu0
        %v1179 = vand.u32 %v379, 4294901760
        %v1180 = vsub.f32 %v379, %v1179
        %v1181 = vand.u32 %v1180, 4294901760
        %v1182 = vsub.f32 %v1180, %v1181
        %v1183 = vand.u32 %v1182, 4294901760
        %1184 = vmatpush.msra.mxu0 %v1183
        %v1185 = vand.u32 %v375, 4294901760
        %v1186 = vsub.f32 %v375, %v1185
        %v1187 = vand.u32 %v1186, 4294901760
        %v1188 = vsub.f32 %v1186, %v1187
        %v1189 = vand.u32 %v1188, 4294901760
        %1190 = vmatpush.msra.mxu0 %v1189
        %v1191 = vand.u32 %v371, 4294901760
        %v1192 = vsub.f32 %v371, %v1191
        %v1193 = vand.u32 %v1192, 4294901760
        %v1194 = vsub.f32 %v1192, %v1193
        %v1195 = vand.u32 %v1194, 4294901760
        %1196 = vmatpush.msra.mxu0 %v1195
        %v1197 = vand.u32 %v367, 4294901760
        %v1198 = vsub.f32 %v367, %v1197
        %v1199 = vand.u32 %v1198, 4294901760
        %v1200 = vsub.f32 %v1198, %v1199
        %v1201 = vand.u32 %v1200, 4294901760
        %1202 = vmatpush.msra.mxu0 %v1201
        %v1203 = vand.u32 %v363, 4294901760
        %v1204 = vsub.f32 %v363, %v1203
        %v1205 = vand.u32 %v1204, 4294901760
        %v1206 = vsub.f32 %v1204, %v1205
        %v1207 = vand.u32 %v1206, 4294901760
        %1208 = vmatpush.msra.mxu0 %v1207
        %v1209 = vand.u32 %v359, 4294901760
        %v1210 = vsub.f32 %v359, %v1209
        %v1211 = vand.u32 %v1210, 4294901760
        %v1212 = vsub.f32 %v1210, %v1211
        %v1213 = vand.u32 %v1212, 4294901760
        %1214 = vmatpush.msra.mxu0 %v1213
        %v1215 = vand.u32 %v355, 4294901760
        %v1216 = vsub.f32 %v355, %v1215
        %v1217 = vand.u32 %v1216, 4294901760
        %v1218 = vsub.f32 %v1216, %v1217
        %v1219 = vand.u32 %v1218, 4294901760
        %1220 = vmatpush.msra.mxu0 %v1219
        %v1221 = vand.u32 %v351, 4294901760
        %v1222 = vsub.f32 %v351, %v1221
        %v1223 = vand.u32 %v1222, 4294901760
        %v1224 = vsub.f32 %v1222, %v1223
        %v1225 = vand.u32 %v1224, 4294901760
        %1226 = vmatpush.msra.mxu0 %v1225
        %v1227 = vand.u32 %v347, 4294901760
        %v1228 = vsub.f32 %v347, %v1227
        %v1229 = vand.u32 %v1228, 4294901760
        %v1230 = vsub.f32 %v1228, %v1229
        %v1231 = vand.u32 %v1230, 4294901760
        %1232 = vmatpush.msra.mxu0 %v1231
        %v1233 = vand.u32 %v343, 4294901760
        %v1234 = vsub.f32 %v343, %v1233
        %v1235 = vand.u32 %v1234, 4294901760
        %v1236 = vsub.f32 %v1234, %v1235
        %v1237 = vand.u32 %v1236, 4294901760
        %1238 = vmatpush.msra.mxu0 %v1237
        %v1239 = vand.u32 %v339, 4294901760
        %v1240 = vsub.f32 %v339, %v1239
        %v1241 = vand.u32 %v1240, 4294901760
        %v1242 = vsub.f32 %v1240, %v1241
        %v1243 = vand.u32 %v1242, 4294901760
        %1244 = vmatpush.msra.mxu0 %v1243
        %v1245 = vand.u32 %v335, 4294901760
        %v1246 = vsub.f32 %v335, %v1245
        %v1247 = vand.u32 %v1246, 4294901760
        %v1248 = vsub.f32 %v1246, %v1247
        %v1249 = vand.u32 %v1248, 4294901760
        %1250 = vmatpush.msra.mxu0 %v1249
        %v1251 = vand.u32 %v331, 4294901760
        %v1252 = vsub.f32 %v331, %v1251
        %v1253 = vand.u32 %v1252, 4294901760
        %v1254 = vsub.f32 %v1252, %v1253
        %v1255 = vand.u32 %v1254, 4294901760
        %1256 = vmatpush.msra.mxu0 %v1255
        %v1257 = vand.u32 %v327, 4294901760
        %v1258 = vsub.f32 %v327, %v1257
        %v1259 = vand.u32 %v1258, 4294901760
        %v1260 = vsub.f32 %v1258, %v1259
        %v1261 = vand.u32 %v1260, 4294901760
        %1262 = vmatpush.msra.mxu0 %v1261
        %v1263 = vand.u32 %v323, 4294901760
        %v1264 = vsub.f32 %v323, %v1263
        %v1265 = vand.u32 %v1264, 4294901760
        %v1266 = vsub.f32 %v1264, %v1265
        %v1267 = vand.u32 %v1266, 4294901760
        %1268 = vmatpush.msra.mxu0 %v1267
        %v1269 = vand.u32 %v319, 4294901760
        %v1270 = vsub.f32 %v319, %v1269
        %v1271 = vand.u32 %v1270, 4294901760
        %v1272 = vsub.f32 %v1270, %v1271
        %v1273 = vand.u32 %v1272, 4294901760
        %1274 = vmatpush.msra.mxu0 %v1273
        %v1275 = vand.u32 %v316, 4294901760
        %1276 = vmatmul.f32.gmra.mxu0 %v1275
        %v1277 = vpop.f32.mrf.mxu0
        %v1278 = vadd.f32 %v1177, %v1277
        %1279 = vdwg.mxu0
        %v1280 = vand.u32 %v379, 4294901760
        %v1281 = vsub.f32 %v379, %v1280
        %1282 = vmatpush.msra.mxu0 %v1281
        %v1283 = vand.u32 %v375, 4294901760
        %v1284 = vsub.f32 %v375, %v1283
        %1285 = vmatpush.msra.mxu0 %v1284
        %v1286 = vand.u32 %v371, 4294901760
        %v1287 = vsub.f32 %v371, %v1286
        %1288 = vmatpush.msra.mxu0 %v1287
        %v1289 = vand.u32 %v367, 4294901760
        %v1290 = vsub.f32 %v367, %v1289
        %1291 = vmatpush.msra.mxu0 %v1290
        %v1292 = vand.u32 %v363, 4294901760
        %v1293 = vsub.f32 %v363, %v1292
        %1294 = vmatpush.msra.mxu0 %v1293
        %v1295 = vand.u32 %v359, 4294901760
        %v1296 = vsub.f32 %v359, %v1295
        %1297 = vmatpush.msra.mxu0 %v1296
        %v1298 = vand.u32 %v355, 4294901760
        %v1299 = vsub.f32 %v355, %v1298
        %1300 = vmatpush.msra.mxu0 %v1299
        %v1301 = vand.u32 %v351, 4294901760
        %v1302 = vsub.f32 %v351, %v1301
        %1303 = vmatpush.msra.mxu0 %v1302
        %v1304 = vand.u32 %v347, 4294901760
        %v1305 = vsub.f32 %v347, %v1304
        %1306 = vmatpush.msra.mxu0 %v1305
        %v1307 = vand.u32 %v343, 4294901760
        %v1308 = vsub.f32 %v343, %v1307
        %1309 = vmatpush.msra.mxu0 %v1308
        %v1310 = vand.u32 %v339, 4294901760
        %v1311 = vsub.f32 %v339, %v1310
        %1312 = vmatpush.msra.mxu0 %v1311
        %v1313 = vand.u32 %v335, 4294901760
        %v1314 = vsub.f32 %v335, %v1313
        %1315 = vmatpush.msra.mxu0 %v1314
        %v1316 = vand.u32 %v331, 4294901760
        %v1317 = vsub.f32 %v331, %v1316
        %1318 = vmatpush.msra.mxu0 %v1317
        %v1319 = vand.u32 %v327, 4294901760
        %v1320 = vsub.f32 %v327, %v1319
        %1321 = vmatpush.msra.mxu0 %v1320
        %v1322 = vand.u32 %v323, 4294901760
        %v1323 = vsub.f32 %v323, %v1322
        %1324 = vmatpush.msra.mxu0 %v1323
        %v1325 = vand.u32 %v319, 4294901760
        %v1326 = vsub.f32 %v319, %v1325
        %1327 = vmatpush.msra.mxu0 %v1326
        %v1328 = vand.u32 %v316, 4294901760
        %v1329 = vsub.f32 %v316, %v1328
        %1330 = vmatmul.f32.gmra.mxu0 %v1329
        %v1331 = vpop.f32.mrf.mxu0
        %v1332 = vadd.f32 %v1278, %v1331
        %1333 = vdwg.mxu0
        %v1334 = vand.u32 %v379, 4294901760
        %1335 = vmatpush.msra.mxu0 %v1334
        %v1336 = vand.u32 %v375, 4294901760
        %1337 = vmatpush.msra.mxu0 %v1336
        %v1338 = vand.u32 %v371, 4294901760
        %1339 = vmatpush.msra.mxu0 %v1338
        %v1340 = vand.u32 %v367, 4294901760
        %1341 = vmatpush.msra.mxu0 %v1340
        %v1342 = vand.u32 %v363, 4294901760
        %1343 = vmatpush.msra.mxu0 %v1342
        %v1344 = vand.u32 %v359, 4294901760
        %1345 = vmatpush.msra.mxu0 %v1344
        %v1346 = vand.u32 %v355, 4294901760
        %1347 = vmatpush.msra.mxu0 %v1346
        %v1348 = vand.u32 %v351, 4294901760
        %1349 = vmatpush.msra.mxu0 %v1348
        %v1350 = vand.u32 %v347, 4294901760
        %1351 = vmatpush.msra.mxu0 %v1350
        %v1352 = vand.u32 %v343, 4294901760
        %1353 = vmatpush.msra.mxu0 %v1352
        %v1354 = vand.u32 %v339, 4294901760
        %1355 = vmatpush.msra.mxu0 %v1354
        %v1356 = vand.u32 %v335, 4294901760
        %1357 = vmatpush.msra.mxu0 %v1356
        %v1358 = vand.u32 %v331, 4294901760
        %1359 = vmatpush.msra.mxu0 %v1358
        %v1360 = vand.u32 %v327, 4294901760
        %1361 = vmatpush.msra.mxu0 %v1360
        %v1362 = vand.u32 %v323, 4294901760
        %1363 = vmatpush.msra.mxu0 %v1362
        %v1364 = vand.u32 %v319, 4294901760
        %1365 = vmatpush.msra.mxu0 %v1364
        %v1366 = vand.u32 %v316, 4294901760
        %v1367 = vsub.f32 %v316, %v1366
        %v1368 = vand.u32 %v1367, 4294901760
        %1369 = vmatmul.f32.gmra.mxu0 %v1368
        %v1370 = vpop.f32.mrf.mxu0
        %v1371 = vadd.f32 %v1332, %v1370
        %1372 = vdwg.mxu0
        %v1373 = vand.u32 %v379, 4294901760
        %v1374 = vsub.f32 %v379, %v1373
        %v1375 = vand.u32 %v1374, 4294901760
        %1376 = vmatpush.msra.mxu0 %v1375
        %v1377 = vand.u32 %v375, 4294901760
        %v1378 = vsub.f32 %v375, %v1377
        %v1379 = vand.u32 %v1378, 4294901760
        %1380 = vmatpush.msra.mxu0 %v1379
        %v1381 = vand.u32 %v371, 4294901760
        %v1382 = vsub.f32 %v371, %v1381
        %v1383 = vand.u32 %v1382, 4294901760
        %1384 = vmatpush.msra.mxu0 %v1383
        %v1385 = vand.u32 %v367, 4294901760
        %v1386 = vsub.f32 %v367, %v1385
        %v1387 = vand.u32 %v1386, 4294901760
        %1388 = vmatpush.msra.mxu0 %v1387
        %v1389 = vand.u32 %v363, 4294901760
        %v1390 = vsub.f32 %v363, %v1389
        %v1391 = vand.u32 %v1390, 4294901760
        %1392 = vmatpush.msra.mxu0 %v1391
        %v1393 = vand.u32 %v359, 4294901760
        %v1394 = vsub.f32 %v359, %v1393
        %v1395 = vand.u32 %v1394, 4294901760
        %1396 = vmatpush.msra.mxu0 %v1395
        %v1397 = vand.u32 %v355, 4294901760
        %v1398 = vsub.f32 %v355, %v1397
        %v1399 = vand.u32 %v1398, 4294901760
        %1400 = vmatpush.msra.mxu0 %v1399
        %v1401 = vand.u32 %v351, 4294901760
        %v1402 = vsub.f32 %v351, %v1401
        %v1403 = vand.u32 %v1402, 4294901760
        %1404 = vmatpush.msra.mxu0 %v1403
        %v1405 = vand.u32 %v347, 4294901760
        %v1406 = vsub.f32 %v347, %v1405
        %v1407 = vand.u32 %v1406, 4294901760
        %1408 = vmatpush.msra.mxu0 %v1407
        %v1409 = vand.u32 %v343, 4294901760
        %v1410 = vsub.f32 %v343, %v1409
        %v1411 = vand.u32 %v1410, 4294901760
        %1412 = vmatpush.msra.mxu0 %v1411
        %v1413 = vand.u32 %v339, 4294901760
        %v1414 = vsub.f32 %v339, %v1413
        %v1415 = vand.u32 %v1414, 4294901760
        %1416 = vmatpush.msra.mxu0 %v1415
        %v1417 = vand.u32 %v335, 4294901760
        %v1418 = vsub.f32 %v335, %v1417
        %v1419 = vand.u32 %v1418, 4294901760
        %1420 = vmatpush.msra.mxu0 %v1419
        %v1421 = vand.u32 %v331, 4294901760
        %v1422 = vsub.f32 %v331, %v1421
        %v1423 = vand.u32 %v1422, 4294901760
        %1424 = vmatpush.msra.mxu0 %v1423
        %v1425 = vand.u32 %v327, 4294901760
        %v1426 = vsub.f32 %v327, %v1425
        %v1427 = vand.u32 %v1426, 4294901760
        %1428 = vmatpush.msra.mxu0 %v1427
        %v1429 = vand.u32 %v323, 4294901760
        %v1430 = vsub.f32 %v323, %v1429
        %v1431 = vand.u32 %v1430, 4294901760
        %1432 = vmatpush.msra.mxu0 %v1431
        %v1433 = vand.u32 %v319, 4294901760
        %v1434 = vsub.f32 %v319, %v1433
        %v1435 = vand.u32 %v1434, 4294901760
        %1436 = vmatpush.msra.mxu0 %v1435
        %v1437 = vand.u32 %v316, 4294901760
        %1438 = vmatmul.f32.gmra.mxu0 %v1437
        %v1439 = vpop.f32.mrf.mxu0
        %v1440 = vadd.f32 %v1371, %v1439
        %1441 = vdwg.mxu0
        %v1442 = vand.u32 %v379, 4294901760
        %1443 = vmatpush.msra.mxu0 %v1442
        %v1444 = vand.u32 %v375, 4294901760
        %1445 = vmatpush.msra.mxu0 %v1444
        %v1446 = vand.u32 %v371, 4294901760
        %1447 = vmatpush.msra.mxu0 %v1446
        %v1448 = vand.u32 %v367, 4294901760
        %1449 = vmatpush.msra.mxu0 %v1448
        %v1450 = vand.u32 %v363, 4294901760
        %1451 = vmatpush.msra.mxu0 %v1450
        %v1452 = vand.u32 %v359, 4294901760
        %1453 = vmatpush.msra.mxu0 %v1452
        %v1454 = vand.u32 %v355, 4294901760
        %1455 = vmatpush.msra.mxu0 %v1454
        %v1456 = vand.u32 %v351, 4294901760
        %1457 = vmatpush.msra.mxu0 %v1456
        %v1458 = vand.u32 %v347, 4294901760
        %1459 = vmatpush.msra.mxu0 %v1458
        %v1460 = vand.u32 %v343, 4294901760
        %1461 = vmatpush.msra.mxu0 %v1460
        %v1462 = vand.u32 %v339, 4294901760
        %1463 = vmatpush.msra.mxu0 %v1462
        %v1464 = vand.u32 %v335, 4294901760
        %1465 = vmatpush.msra.mxu0 %v1464
        %v1466 = vand.u32 %v331, 4294901760
        %1467 = vmatpush.msra.mxu0 %v1466
        %v1468 = vand.u32 %v327, 4294901760
        %1469 = vmatpush.msra.mxu0 %v1468
        %v1470 = vand.u32 %v323, 4294901760
        %1471 = vmatpush.msra.mxu0 %v1470
        %v1472 = vand.u32 %v319, 4294901760
        %1473 = vmatpush.msra.mxu0 %v1472
        %v1474 = vand.u32 %v316, 4294901760
        %1475 = vmatmul.f32.gmra.mxu0 %v1474
        %v1476 = vpop.f32.mrf.mxu0
        %v1477 = vadd.f32 %v1440, %v1476
        %1478 = vdwg.mxu0
        %v1479 = vand.u32 %v443, 4294901760
        %1480 = vmatpush.msra.mxu0 %v1479
        %v1481 = vand.u32 %v439, 4294901760
        %1482 = vmatpush.msra.mxu0 %v1481
        %v1483 = vand.u32 %v435, 4294901760
        %1484 = vmatpush.msra.mxu0 %v1483
        %v1485 = vand.u32 %v431, 4294901760
        %1486 = vmatpush.msra.mxu0 %v1485
        %v1487 = vand.u32 %v427, 4294901760
        %1488 = vmatpush.msra.mxu0 %v1487
        %v1489 = vand.u32 %v423, 4294901760
        %1490 = vmatpush.msra.mxu0 %v1489
        %v1491 = vand.u32 %v419, 4294901760
        %1492 = vmatpush.msra.mxu0 %v1491
        %v1493 = vand.u32 %v415, 4294901760
        %1494 = vmatpush.msra.mxu0 %v1493
        %v1495 = vand.u32 %v411, 4294901760
        %1496 = vmatpush.msra.mxu0 %v1495
        %v1497 = vand.u32 %v407, 4294901760
        %1498 = vmatpush.msra.mxu0 %v1497
        %v1499 = vand.u32 %v403, 4294901760
        %1500 = vmatpush.msra.mxu0 %v1499
        %v1501 = vand.u32 %v399, 4294901760
        %1502 = vmatpush.msra.mxu0 %v1501
        %v1503 = vand.u32 %v395, 4294901760
        %1504 = vmatpush.msra.mxu0 %v1503
        %v1505 = vand.u32 %v391, 4294901760
        %1506 = vmatpush.msra.mxu0 %v1505
        %v1507 = vand.u32 %v387, 4294901760
        %1508 = vmatpush.msra.mxu0 %v1507
        %v1509 = vand.u32 %v383, 4294901760
        %1510 = vmatpush.msra.mxu0 %v1509
        %v1511 = vand.u32 %v317, 4294901760
        %v1512 = vsub.f32 %v317, %v1511
        %v1513 = vand.u32 %v1512, 4294901760
        %v1514 = vsub.f32 %v1512, %v1513
        %v1515 = vand.u32 %v1514, 4294901760
        %1516 = vmatmul.f32.gmra.mxu0 %v1515
        %v1517 = vpop.f32.mrf.mxu0
        %v1518 = vadd.f32 %v1477, %v1517
        %1519 = vdwg.mxu0
        %v1520 = vand.u32 %v443, 4294901760
        %v1521 = vsub.f32 %v443, %v1520
        %v1522 = vand.u32 %v1521, 4294901760
        %v1523 = vsub.f32 %v1521, %v1522
        %v1524 = vand.u32 %v1523, 4294901760
        %1525 = vmatpush.msra.mxu0 %v1524
        %v1526 = vand.u32 %v439, 4294901760
        %v1527 = vsub.f32 %v439, %v1526
        %v1528 = vand.u32 %v1527, 4294901760
        %v1529 = vsub.f32 %v1527, %v1528
        %v1530 = vand.u32 %v1529, 4294901760
        %1531 = vmatpush.msra.mxu0 %v1530
        %v1532 = vand.u32 %v435, 4294901760
        %v1533 = vsub.f32 %v435, %v1532
        %v1534 = vand.u32 %v1533, 4294901760
        %v1535 = vsub.f32 %v1533, %v1534
        %v1536 = vand.u32 %v1535, 4294901760
        %1537 = vmatpush.msra.mxu0 %v1536
        %v1538 = vand.u32 %v431, 4294901760
        %v1539 = vsub.f32 %v431, %v1538
        %v1540 = vand.u32 %v1539, 4294901760
        %v1541 = vsub.f32 %v1539, %v1540
        %v1542 = vand.u32 %v1541, 4294901760
        %1543 = vmatpush.msra.mxu0 %v1542
        %v1544 = vand.u32 %v427, 4294901760
        %v1545 = vsub.f32 %v427, %v1544
        %v1546 = vand.u32 %v1545, 4294901760
        %v1547 = vsub.f32 %v1545, %v1546
        %v1548 = vand.u32 %v1547, 4294901760
        %1549 = vmatpush.msra.mxu0 %v1548
        %v1550 = vand.u32 %v423, 4294901760
        %v1551 = vsub.f32 %v423, %v1550
        %v1552 = vand.u32 %v1551, 4294901760
        %v1553 = vsub.f32 %v1551, %v1552
        %v1554 = vand.u32 %v1553, 4294901760
        %1555 = vmatpush.msra.mxu0 %v1554
        %v1556 = vand.u32 %v419, 4294901760
        %v1557 = vsub.f32 %v419, %v1556
        %v1558 = vand.u32 %v1557, 4294901760
        %v1559 = vsub.f32 %v1557, %v1558
        %v1560 = vand.u32 %v1559, 4294901760
        %1561 = vmatpush.msra.mxu0 %v1560
        %v1562 = vand.u32 %v415, 4294901760
        %v1563 = vsub.f32 %v415, %v1562
        %v1564 = vand.u32 %v1563, 4294901760
        %v1565 = vsub.f32 %v1563, %v1564
        %v1566 = vand.u32 %v1565, 4294901760
        %1567 = vmatpush.msra.mxu0 %v1566
        %v1568 = vand.u32 %v411, 4294901760
        %v1569 = vsub.f32 %v411, %v1568
        %v1570 = vand.u32 %v1569, 4294901760
        %v1571 = vsub.f32 %v1569, %v1570
        %v1572 = vand.u32 %v1571, 4294901760
        %1573 = vmatpush.msra.mxu0 %v1572
        %v1574 = vand.u32 %v407, 4294901760
        %v1575 = vsub.f32 %v407, %v1574
        %v1576 = vand.u32 %v1575, 4294901760
        %v1577 = vsub.f32 %v1575, %v1576
        %v1578 = vand.u32 %v1577, 4294901760
        %1579 = vmatpush.msra.mxu0 %v1578
        %v1580 = vand.u32 %v403, 4294901760
        %v1581 = vsub.f32 %v403, %v1580
        %v1582 = vand.u32 %v1581, 4294901760
        %v1583 = vsub.f32 %v1581, %v1582
        %v1584 = vand.u32 %v1583, 4294901760
        %1585 = vmatpush.msra.mxu0 %v1584
        %v1586 = vand.u32 %v399, 4294901760
        %v1587 = vsub.f32 %v399, %v1586
        %v1588 = vand.u32 %v1587, 4294901760
        %v1589 = vsub.f32 %v1587, %v1588
        %v1590 = vand.u32 %v1589, 4294901760
        %1591 = vmatpush.msra.mxu0 %v1590
        %v1592 = vand.u32 %v395, 4294901760
        %v1593 = vsub.f32 %v395, %v1592
        %v1594 = vand.u32 %v1593, 4294901760
        %v1595 = vsub.f32 %v1593, %v1594
        %v1596 = vand.u32 %v1595, 4294901760
        %1597 = vmatpush.msra.mxu0 %v1596
        %v1598 = vand.u32 %v391, 4294901760
        %v1599 = vsub.f32 %v391, %v1598
        %v1600 = vand.u32 %v1599, 4294901760
        %v1601 = vsub.f32 %v1599, %v1600
        %v1602 = vand.u32 %v1601, 4294901760
        %1603 = vmatpush.msra.mxu0 %v1602
        %v1604 = vand.u32 %v387, 4294901760
        %v1605 = vsub.f32 %v387, %v1604
        %v1606 = vand.u32 %v1605, 4294901760
        %v1607 = vsub.f32 %v1605, %v1606
        %v1608 = vand.u32 %v1607, 4294901760
        %1609 = vmatpush.msra.mxu0 %v1608
        %v1610 = vand.u32 %v383, 4294901760
        %v1611 = vsub.f32 %v383, %v1610
        %v1612 = vand.u32 %v1611, 4294901760
        %v1613 = vsub.f32 %v1611, %v1612
        %v1614 = vand.u32 %v1613, 4294901760
        %1615 = vmatpush.msra.mxu0 %v1614
        %v1616 = vand.u32 %v317, 4294901760
        %1617 = vmatmul.f32.gmra.mxu0 %v1616
        %v1618 = vpop.f32.mrf.mxu0
        %v1619 = vadd.f32 %v1518, %v1618
        %1620 = vdwg.mxu0
        %v1621 = vand.u32 %v443, 4294901760
        %v1622 = vsub.f32 %v443, %v1621
        %1623 = vmatpush.msra.mxu0 %v1622
        %v1624 = vand.u32 %v439, 4294901760
        %v1625 = vsub.f32 %v439, %v1624
        %1626 = vmatpush.msra.mxu0 %v1625
        %v1627 = vand.u32 %v435, 4294901760
        %v1628 = vsub.f32 %v435, %v1627
        %1629 = vmatpush.msra.mxu0 %v1628
        %v1630 = vand.u32 %v431, 4294901760
        %v1631 = vsub.f32 %v431, %v1630
        %1632 = vmatpush.msra.mxu0 %v1631
        %v1633 = vand.u32 %v427, 4294901760
        %v1634 = vsub.f32 %v427, %v1633
        %1635 = vmatpush.msra.mxu0 %v1634
        %v1636 = vand.u32 %v423, 4294901760
        %v1637 = vsub.f32 %v423, %v1636
        %1638 = vmatpush.msra.mxu0 %v1637
        %v1639 = vand.u32 %v419, 4294901760
        %v1640 = vsub.f32 %v419, %v1639
        %1641 = vmatpush.msra.mxu0 %v1640
        %v1642 = vand.u32 %v415, 4294901760
        %v1643 = vsub.f32 %v415, %v1642
        %1644 = vmatpush.msra.mxu0 %v1643
        %v1645 = vand.u32 %v411, 4294901760
        %v1646 = vsub.f32 %v411, %v1645
        %1647 = vmatpush.msra.mxu0 %v1646
        %v1648 = vand.u32 %v407, 4294901760
        %v1649 = vsub.f32 %v407, %v1648
        %1650 = vmatpush.msra.mxu0 %v1649
        %v1651 = vand.u32 %v403, 4294901760
        %v1652 = vsub.f32 %v403, %v1651
        %1653 = vmatpush.msra.mxu0 %v1652
        %v1654 = vand.u32 %v399, 4294901760
        %v1655 = vsub.f32 %v399, %v1654
        %1656 = vmatpush.msra.mxu0 %v1655
        %v1657 = vand.u32 %v395, 4294901760
        %v1658 = vsub.f32 %v395, %v1657
        %1659 = vmatpush.msra.mxu0 %v1658
        %v1660 = vand.u32 %v391, 4294901760
        %v1661 = vsub.f32 %v391, %v1660
        %1662 = vmatpush.msra.mxu0 %v1661
        %v1663 = vand.u32 %v387, 4294901760
        %v1664 = vsub.f32 %v387, %v1663
        %1665 = vmatpush.msra.mxu0 %v1664
        %v1666 = vand.u32 %v383, 4294901760
        %v1667 = vsub.f32 %v383, %v1666
        %1668 = vmatpush.msra.mxu0 %v1667
        %v1669 = vand.u32 %v317, 4294901760
        %v1670 = vsub.f32 %v317, %v1669
        %1671 = vmatmul.f32.gmra.mxu0 %v1670
        %v1672 = vpop.f32.mrf.mxu0
        %v1673 = vadd.f32 %v1619, %v1672
        %1674 = vdwg.mxu0
        %v1675 = vand.u32 %v443, 4294901760
        %1676 = vmatpush.msra.mxu0 %v1675
        %v1677 = vand.u32 %v439, 4294901760
        %1678 = vmatpush.msra.mxu0 %v1677
        %v1679 = vand.u32 %v435, 4294901760
        %1680 = vmatpush.msra.mxu0 %v1679
        %v1681 = vand.u32 %v431, 4294901760
        %1682 = vmatpush.msra.mxu0 %v1681
        %v1683 = vand.u32 %v427, 4294901760
        %1684 = vmatpush.msra.mxu0 %v1683
        %v1685 = vand.u32 %v423, 4294901760
        %1686 = vmatpush.msra.mxu0 %v1685
        %v1687 = vand.u32 %v419, 4294901760
        %1688 = vmatpush.msra.mxu0 %v1687
        %v1689 = vand.u32 %v415, 4294901760
        %1690 = vmatpush.msra.mxu0 %v1689
        %v1691 = vand.u32 %v411, 4294901760
        %1692 = vmatpush.msra.mxu0 %v1691
        %v1693 = vand.u32 %v407, 4294901760
        %1694 = vmatpush.msra.mxu0 %v1693
        %v1695 = vand.u32 %v403, 4294901760
        %1696 = vmatpush.msra.mxu0 %v1695
        %v1697 = vand.u32 %v399, 4294901760
        %1698 = vmatpush.msra.mxu0 %v1697
        %v1699 = vand.u32 %v395, 4294901760
        %1700 = vmatpush.msra.mxu0 %v1699
        %v1701 = vand.u32 %v391, 4294901760
        %1702 = vmatpush.msra.mxu0 %v1701
        %v1703 = vand.u32 %v387, 4294901760
        %1704 = vmatpush.msra.mxu0 %v1703
        %v1705 = vand.u32 %v383, 4294901760
        %1706 = vmatpush.msra.mxu0 %v1705
        %v1707 = vand.u32 %v317, 4294901760
        %v1708 = vsub.f32 %v317, %v1707
        %v1709 = vand.u32 %v1708, 4294901760
        %1710 = vmatmul.f32.gmra.mxu0 %v1709
        %v1711 = vpop.f32.mrf.mxu0
        %v1712 = vadd.f32 %v1673, %v1711
        %1713 = vdwg.mxu0
        %v1714 = vand.u32 %v443, 4294901760
        %v1715 = vsub.f32 %v443, %v1714
        %v1716 = vand.u32 %v1715, 4294901760
        %1717 = vmatpush.msra.mxu0 %v1716
        %v1718 = vand.u32 %v439, 4294901760
        %v1719 = vsub.f32 %v439, %v1718
        %v1720 = vand.u32 %v1719, 4294901760
        %1721 = vmatpush.msra.mxu0 %v1720
        %v1722 = vand.u32 %v435, 4294901760
        %v1723 = vsub.f32 %v435, %v1722
        %v1724 = vand.u32 %v1723, 4294901760
        %1725 = vmatpush.msra.mxu0 %v1724
        %v1726 = vand.u32 %v431, 4294901760
        %v1727 = vsub.f32 %v431, %v1726
        %v1728 = vand.u32 %v1727, 4294901760
        %1729 = vmatpush.msra.mxu0 %v1728
        %v1730 = vand.u32 %v427, 4294901760
        %v1731 = vsub.f32 %v427, %v1730
        %v1732 = vand.u32 %v1731, 4294901760
        %1733 = vmatpush.msra.mxu0 %v1732
        %v1734 = vand.u32 %v423, 4294901760
        %v1735 = vsub.f32 %v423, %v1734
        %v1736 = vand.u32 %v1735, 4294901760
        %1737 = vmatpush.msra.mxu0 %v1736
        %v1738 = vand.u32 %v419, 4294901760
        %v1739 = vsub.f32 %v419, %v1738
        %v1740 = vand.u32 %v1739, 4294901760
        %1741 = vmatpush.msra.mxu0 %v1740
        %v1742 = vand.u32 %v415, 4294901760
        %v1743 = vsub.f32 %v415, %v1742
        %v1744 = vand.u32 %v1743, 4294901760
        %1745 = vmatpush.msra.mxu0 %v1744
        %v1746 = vand.u32 %v411, 4294901760
        %v1747 = vsub.f32 %v411, %v1746
        %v1748 = vand.u32 %v1747, 4294901760
        %1749 = vmatpush.msra.mxu0 %v1748
        %v1750 = vand.u32 %v407, 4294901760
        %v1751 = vsub.f32 %v407, %v1750
        %v1752 = vand.u32 %v1751, 4294901760
        %1753 = vmatpush.msra.mxu0 %v1752
        %v1754 = vand.u32 %v403, 4294901760
        %v1755 = vsub.f32 %v403, %v1754
        %v1756 = vand.u32 %v1755, 4294901760
        %1757 = vmatpush.msra.mxu0 %v1756
        %v1758 = vand.u32 %v399, 4294901760
        %v1759 = vsub.f32 %v399, %v1758
        %v1760 = vand.u32 %v1759, 4294901760
        %1761 = vmatpush.msra.mxu0 %v1760
        %v1762 = vand.u32 %v395, 4294901760
        %v1763 = vsub.f32 %v395, %v1762
        %v1764 = vand.u32 %v1763, 4294901760
        %1765 = vmatpush.msra.mxu0 %v1764
        %v1766 = vand.u32 %v391, 4294901760
        %v1767 = vsub.f32 %v391, %v1766
        %v1768 = vand.u32 %v1767, 4294901760
        %1769 = vmatpush.msra.mxu0 %v1768
        %v1770 = vand.u32 %v387, 4294901760
        %v1771 = vsub.f32 %v387, %v1770
        %v1772 = vand.u32 %v1771, 4294901760
        %1773 = vmatpush.msra.mxu0 %v1772
        %v1774 = vand.u32 %v383, 4294901760
        %v1775 = vsub.f32 %v383, %v1774
        %v1776 = vand.u32 %v1775, 4294901760
        %1777 = vmatpush.msra.mxu0 %v1776
        %v1778 = vand.u32 %v317, 4294901760
        %1779 = vmatmul.f32.gmra.mxu0 %v1778
        %v1780 = vpop.f32.mrf.mxu0
        %v1781 = vadd.f32 %v1712, %v1780
        %1782 = vdwg.mxu0
        %v1783 = vand.u32 %v443, 4294901760
        %1784 = vmatpush.msra.mxu0 %v1783
        %v1785 = vand.u32 %v439, 4294901760
        %1786 = vmatpush.msra.mxu0 %v1785
        %v1787 = vand.u32 %v435, 4294901760
        %1788 = vmatpush.msra.mxu0 %v1787
        %v1789 = vand.u32 %v431, 4294901760
        %1790 = vmatpush.msra.mxu0 %v1789
        %v1791 = vand.u32 %v427, 4294901760
        %1792 = vmatpush.msra.mxu0 %v1791
        %v1793 = vand.u32 %v423, 4294901760
        %1794 = vmatpush.msra.mxu0 %v1793
        %v1795 = vand.u32 %v419, 4294901760
        %1796 = vmatpush.msra.mxu0 %v1795
        %v1797 = vand.u32 %v415, 4294901760
        %1798 = vmatpush.msra.mxu0 %v1797
        %v1799 = vand.u32 %v411, 4294901760
        %1800 = vmatpush.msra.mxu0 %v1799
        %v1801 = vand.u32 %v407, 4294901760
        %1802 = vmatpush.msra.mxu0 %v1801
        %v1803 = vand.u32 %v403, 4294901760
        %1804 = vmatpush.msra.mxu0 %v1803
        %v1805 = vand.u32 %v399, 4294901760
        %1806 = vmatpush.msra.mxu0 %v1805
        %v1807 = vand.u32 %v395, 4294901760
        %1808 = vmatpush.msra.mxu0 %v1807
        %v1809 = vand.u32 %v391, 4294901760
        %1810 = vmatpush.msra.mxu0 %v1809
        %v1811 = vand.u32 %v387, 4294901760
        %1812 = vmatpush.msra.mxu0 %v1811
        %v1813 = vand.u32 %v383, 4294901760
        %1814 = vmatpush.msra.mxu0 %v1813
        %v1815 = vand.u32 %v317, 4294901760
        %1816 = vmatmul.f32.gmra.mxu0 %v1815
        %v1817 = vpop.f32.mrf.mxu0
        %v1818 = vadd.f32 %v1781, %v1817
        %1819 = vdwg.mxu0
        %v1820 = vand.u32 %v380, 4294901760
        %1821 = vmatpush.msra.mxu0 %v1820
        %v1822 = vand.u32 %v376, 4294901760
        %1823 = vmatpush.msra.mxu0 %v1822
        %v1824 = vand.u32 %v372, 4294901760
        %1825 = vmatpush.msra.mxu0 %v1824
        %v1826 = vand.u32 %v368, 4294901760
        %1827 = vmatpush.msra.mxu0 %v1826
        %v1828 = vand.u32 %v364, 4294901760
        %1829 = vmatpush.msra.mxu0 %v1828
        %v1830 = vand.u32 %v360, 4294901760
        %1831 = vmatpush.msra.mxu0 %v1830
        %v1832 = vand.u32 %v356, 4294901760
        %1833 = vmatpush.msra.mxu0 %v1832
        %v1834 = vand.u32 %v352, 4294901760
        %1835 = vmatpush.msra.mxu0 %v1834
        %v1836 = vand.u32 %v348, 4294901760
        %1837 = vmatpush.msra.mxu0 %v1836
        %v1838 = vand.u32 %v344, 4294901760
        %1839 = vmatpush.msra.mxu0 %v1838
        %v1840 = vand.u32 %v340, 4294901760
        %1841 = vmatpush.msra.mxu0 %v1840
        %v1842 = vand.u32 %v336, 4294901760
        %1843 = vmatpush.msra.mxu0 %v1842
        %v1844 = vand.u32 %v332, 4294901760
        %1845 = vmatpush.msra.mxu0 %v1844
        %v1846 = vand.u32 %v328, 4294901760
        %1847 = vmatpush.msra.mxu0 %v1846
        %v1848 = vand.u32 %v324, 4294901760
        %1849 = vmatpush.msra.mxu0 %v1848
        %v1850 = vand.u32 %v320, 4294901760
        %1851 = vmatpush.msra.mxu0 %v1850
        %v1852 = vand.u32 %v316, 4294901760
        %v1853 = vsub.f32 %v316, %v1852
        %v1854 = vand.u32 %v1853, 4294901760
        %v1855 = vsub.f32 %v1853, %v1854
        %v1856 = vand.u32 %v1855, 4294901760
        %1857 = vmatmul.f32.gmra.mxu0 %v1856
        %v1858 = vpop.f32.mrf.mxu0
        %v1859 = vadd.f32 %v450, %v1858
        %1860 = vdwg.mxu0
        %v1861 = vand.u32 %v380, 4294901760
        %v1862 = vsub.f32 %v380, %v1861
        %v1863 = vand.u32 %v1862, 4294901760
        %v1864 = vsub.f32 %v1862, %v1863
        %v1865 = vand.u32 %v1864, 4294901760
        %1866 = vmatpush.msra.mxu0 %v1865
        %v1867 = vand.u32 %v376, 4294901760
        %v1868 = vsub.f32 %v376, %v1867
        %v1869 = vand.u32 %v1868, 4294901760
        %v1870 = vsub.f32 %v1868, %v1869
        %v1871 = vand.u32 %v1870, 4294901760
        %1872 = vmatpush.msra.mxu0 %v1871
        %v1873 = vand.u32 %v372, 4294901760
        %v1874 = vsub.f32 %v372, %v1873
        %v1875 = vand.u32 %v1874, 4294901760
        %v1876 = vsub.f32 %v1874, %v1875
        %v1877 = vand.u32 %v1876, 4294901760
        %1878 = vmatpush.msra.mxu0 %v1877
        %v1879 = vand.u32 %v368, 4294901760
        %v1880 = vsub.f32 %v368, %v1879
        %v1881 = vand.u32 %v1880, 4294901760
        %v1882 = vsub.f32 %v1880, %v1881
        %v1883 = vand.u32 %v1882, 4294901760
        %1884 = vmatpush.msra.mxu0 %v1883
        %v1885 = vand.u32 %v364, 4294901760
        %v1886 = vsub.f32 %v364, %v1885
        %v1887 = vand.u32 %v1886, 4294901760
        %v1888 = vsub.f32 %v1886, %v1887
        %v1889 = vand.u32 %v1888, 4294901760
        %1890 = vmatpush.msra.mxu0 %v1889
        %v1891 = vand.u32 %v360, 4294901760
        %v1892 = vsub.f32 %v360, %v1891
        %v1893 = vand.u32 %v1892, 4294901760
        %v1894 = vsub.f32 %v1892, %v1893
        %v1895 = vand.u32 %v1894, 4294901760
        %1896 = vmatpush.msra.mxu0 %v1895
        %v1897 = vand.u32 %v356, 4294901760
        %v1898 = vsub.f32 %v356, %v1897
        %v1899 = vand.u32 %v1898, 4294901760
        %v1900 = vsub.f32 %v1898, %v1899
        %v1901 = vand.u32 %v1900, 4294901760
        %1902 = vmatpush.msra.mxu0 %v1901
        %v1903 = vand.u32 %v352, 4294901760
        %v1904 = vsub.f32 %v352, %v1903
        %v1905 = vand.u32 %v1904, 4294901760
        %v1906 = vsub.f32 %v1904, %v1905
        %v1907 = vand.u32 %v1906, 4294901760
        %1908 = vmatpush.msra.mxu0 %v1907
        %v1909 = vand.u32 %v348, 4294901760
        %v1910 = vsub.f32 %v348, %v1909
        %v1911 = vand.u32 %v1910, 4294901760
        %v1912 = vsub.f32 %v1910, %v1911
        %v1913 = vand.u32 %v1912, 4294901760
        %1914 = vmatpush.msra.mxu0 %v1913
        %v1915 = vand.u32 %v344, 4294901760
        %v1916 = vsub.f32 %v344, %v1915
        %v1917 = vand.u32 %v1916, 4294901760
        %v1918 = vsub.f32 %v1916, %v1917
        %v1919 = vand.u32 %v1918, 4294901760
        %1920 = vmatpush.msra.mxu0 %v1919
        %v1921 = vand.u32 %v340, 4294901760
        %v1922 = vsub.f32 %v340, %v1921
        %v1923 = vand.u32 %v1922, 4294901760
        %v1924 = vsub.f32 %v1922, %v1923
        %v1925 = vand.u32 %v1924, 4294901760
        %1926 = vmatpush.msra.mxu0 %v1925
        %v1927 = vand.u32 %v336, 4294901760
        %v1928 = vsub.f32 %v336, %v1927
        %v1929 = vand.u32 %v1928, 4294901760
        %v1930 = vsub.f32 %v1928, %v1929
        %v1931 = vand.u32 %v1930, 4294901760
        %1932 = vmatpush.msra.mxu0 %v1931
        %v1933 = vand.u32 %v332, 4294901760
        %v1934 = vsub.f32 %v332, %v1933
        %v1935 = vand.u32 %v1934, 4294901760
        %v1936 = vsub.f32 %v1934, %v1935
        %v1937 = vand.u32 %v1936, 4294901760
        %1938 = vmatpush.msra.mxu0 %v1937
        %v1939 = vand.u32 %v328, 4294901760
        %v1940 = vsub.f32 %v328, %v1939
        %v1941 = vand.u32 %v1940, 4294901760
        %v1942 = vsub.f32 %v1940, %v1941
        %v1943 = vand.u32 %v1942, 4294901760
        %1944 = vmatpush.msra.mxu0 %v1943
        %v1945 = vand.u32 %v324, 4294901760
        %v1946 = vsub.f32 %v324, %v1945
        %v1947 = vand.u32 %v1946, 4294901760
        %v1948 = vsub.f32 %v1946, %v1947
        %v1949 = vand.u32 %v1948, 4294901760
        %1950 = vmatpush.msra.mxu0 %v1949
        %v1951 = vand.u32 %v320, 4294901760
        %v1952 = vsub.f32 %v320, %v1951
        %v1953 = vand.u32 %v1952, 4294901760
        %v1954 = vsub.f32 %v1952, %v1953
        %v1955 = vand.u32 %v1954, 4294901760
        %1956 = vmatpush.msra.mxu0 %v1955
        %v1957 = vand.u32 %v316, 4294901760
        %1958 = vmatmul.f32.gmra.mxu0 %v1957
        %v1959 = vpop.f32.mrf.mxu0
        %v1960 = vadd.f32 %v1859, %v1959
        %1961 = vdwg.mxu0
        %v1962 = vand.u32 %v380, 4294901760
        %v1963 = vsub.f32 %v380, %v1962
        %1964 = vmatpush.msra.mxu0 %v1963
        %v1965 = vand.u32 %v376, 4294901760
        %v1966 = vsub.f32 %v376, %v1965
        %1967 = vmatpush.msra.mxu0 %v1966
        %v1968 = vand.u32 %v372, 4294901760
        %v1969 = vsub.f32 %v372, %v1968
        %1970 = vmatpush.msra.mxu0 %v1969
        %v1971 = vand.u32 %v368, 4294901760
        %v1972 = vsub.f32 %v368, %v1971
        %1973 = vmatpush.msra.mxu0 %v1972
        %v1974 = vand.u32 %v364, 4294901760
        %v1975 = vsub.f32 %v364, %v1974
        %1976 = vmatpush.msra.mxu0 %v1975
        %v1977 = vand.u32 %v360, 4294901760
        %v1978 = vsub.f32 %v360, %v1977
        %1979 = vmatpush.msra.mxu0 %v1978
        %v1980 = vand.u32 %v356, 4294901760
        %v1981 = vsub.f32 %v356, %v1980
        %1982 = vmatpush.msra.mxu0 %v1981
        %v1983 = vand.u32 %v352, 4294901760
        %v1984 = vsub.f32 %v352, %v1983
        %1985 = vmatpush.msra.mxu0 %v1984
        %v1986 = vand.u32 %v348, 4294901760
        %v1987 = vsub.f32 %v348, %v1986
        %1988 = vmatpush.msra.mxu0 %v1987
        %v1989 = vand.u32 %v344, 4294901760
        %v1990 = vsub.f32 %v344, %v1989
        %1991 = vmatpush.msra.mxu0 %v1990
        %v1992 = vand.u32 %v340, 4294901760
        %v1993 = vsub.f32 %v340, %v1992
        %1994 = vmatpush.msra.mxu0 %v1993
        %v1995 = vand.u32 %v336, 4294901760
        %v1996 = vsub.f32 %v336, %v1995
        %1997 = vmatpush.msra.mxu0 %v1996
        %v1998 = vand.u32 %v332, 4294901760
        %v1999 = vsub.f32 %v332, %v1998
        %2000 = vmatpush.msra.mxu0 %v1999
        %v2001 = vand.u32 %v328, 4294901760
        %v2002 = vsub.f32 %v328, %v2001
        %2003 = vmatpush.msra.mxu0 %v2002
        %v2004 = vand.u32 %v324, 4294901760
        %v2005 = vsub.f32 %v324, %v2004
        %2006 = vmatpush.msra.mxu0 %v2005
        %v2007 = vand.u32 %v320, 4294901760
        %v2008 = vsub.f32 %v320, %v2007
        %2009 = vmatpush.msra.mxu0 %v2008
        %v2010 = vand.u32 %v316, 4294901760
        %v2011 = vsub.f32 %v316, %v2010
        %2012 = vmatmul.f32.gmra.mxu0 %v2011
        %v2013 = vpop.f32.mrf.mxu0
        %v2014 = vadd.f32 %v1960, %v2013
        %2015 = vdwg.mxu0
        %v2016 = vand.u32 %v380, 4294901760
        %2017 = vmatpush.msra.mxu0 %v2016
        %v2018 = vand.u32 %v376, 4294901760
        %2019 = vmatpush.msra.mxu0 %v2018
        %v2020 = vand.u32 %v372, 4294901760
        %2021 = vmatpush.msra.mxu0 %v2020
        %v2022 = vand.u32 %v368, 4294901760
        %2023 = vmatpush.msra.mxu0 %v2022
        %v2024 = vand.u32 %v364, 4294901760
        %2025 = vmatpush.msra.mxu0 %v2024
        %v2026 = vand.u32 %v360, 4294901760
        %2027 = vmatpush.msra.mxu0 %v2026
        %v2028 = vand.u32 %v356, 4294901760
        %2029 = vmatpush.msra.mxu0 %v2028
        %v2030 = vand.u32 %v352, 4294901760
        %2031 = vmatpush.msra.mxu0 %v2030
        %v2032 = vand.u32 %v348, 4294901760
        %2033 = vmatpush.msra.mxu0 %v2032
        %v2034 = vand.u32 %v344, 4294901760
        %2035 = vmatpush.msra.mxu0 %v2034
        %v2036 = vand.u32 %v340, 4294901760
        %2037 = vmatpush.msra.mxu0 %v2036
        %v2038 = vand.u32 %v336, 4294901760
        %2039 = vmatpush.msra.mxu0 %v2038
        %v2040 = vand.u32 %v332, 4294901760
        %2041 = vmatpush.msra.mxu0 %v2040
        %v2042 = vand.u32 %v328, 4294901760
        %2043 = vmatpush.msra.mxu0 %v2042
        %v2044 = vand.u32 %v324, 4294901760
        %2045 = vmatpush.msra.mxu0 %v2044
        %v2046 = vand.u32 %v320, 4294901760
        %2047 = vmatpush.msra.mxu0 %v2046
        %v2048 = vand.u32 %v316, 4294901760
        %v2049 = vsub.f32 %v316, %v2048
        %v2050 = vand.u32 %v2049, 4294901760
        %2051 = vmatmul.f32.gmra.mxu0 %v2050
        %v2052 = vpop.f32.mrf.mxu0
        %v2053 = vadd.f32 %v2014, %v2052
        %2054 = vdwg.mxu0
        %v2055 = vand.u32 %v380, 4294901760
        %v2056 = vsub.f32 %v380, %v2055
        %v2057 = vand.u32 %v2056, 4294901760
        %2058 = vmatpush.msra.mxu0 %v2057
        %v2059 = vand.u32 %v376, 4294901760
        %v2060 = vsub.f32 %v376, %v2059
        %v2061 = vand.u32 %v2060, 4294901760
        %2062 = vmatpush.msra.mxu0 %v2061
        %v2063 = vand.u32 %v372, 4294901760
        %v2064 = vsub.f32 %v372, %v2063
        %v2065 = vand.u32 %v2064, 4294901760
        %2066 = vmatpush.msra.mxu0 %v2065
        %v2067 = vand.u32 %v368, 4294901760
        %v2068 = vsub.f32 %v368, %v2067
        %v2069 = vand.u32 %v2068, 4294901760
        %2070 = vmatpush.msra.mxu0 %v2069
        %v2071 = vand.u32 %v364, 4294901760
        %v2072 = vsub.f32 %v364, %v2071
        %v2073 = vand.u32 %v2072, 4294901760
        %2074 = vmatpush.msra.mxu0 %v2073
        %v2075 = vand.u32 %v360, 4294901760
        %v2076 = vsub.f32 %v360, %v2075
        %v2077 = vand.u32 %v2076, 4294901760
        %2078 = vmatpush.msra.mxu0 %v2077
        %v2079 = vand.u32 %v356, 4294901760
        %v2080 = vsub.f32 %v356, %v2079
        %v2081 = vand.u32 %v2080, 4294901760
        %2082 = vmatpush.msra.mxu0 %v2081
        %v2083 = vand.u32 %v352, 4294901760
        %v2084 = vsub.f32 %v352, %v2083
        %v2085 = vand.u32 %v2084, 4294901760
        %2086 = vmatpush.msra.mxu0 %v2085
        %v2087 = vand.u32 %v348, 4294901760
        %v2088 = vsub.f32 %v348, %v2087
        %v2089 = vand.u32 %v2088, 4294901760
        %2090 = vmatpush.msra.mxu0 %v2089
        %v2091 = vand.u32 %v344, 4294901760
        %v2092 = vsub.f32 %v344, %v2091
        %v2093 = vand.u32 %v2092, 4294901760
        %2094 = vmatpush.msra.mxu0 %v2093
        %v2095 = vand.u32 %v340, 4294901760
        %v2096 = vsub.f32 %v340, %v2095
        %v2097 = vand.u32 %v2096, 4294901760
        %2098 = vmatpush.msra.mxu0 %v2097
        %v2099 = vand.u32 %v336, 4294901760
        %v2100 = vsub.f32 %v336, %v2099
        %v2101 = vand.u32 %v2100, 4294901760
        %2102 = vmatpush.msra.mxu0 %v2101
        %v2103 = vand.u32 %v332, 4294901760
        %v2104 = vsub.f32 %v332, %v2103
        %v2105 = vand.u32 %v2104, 4294901760
        %2106 = vmatpush.msra.mxu0 %v2105
        %v2107 = vand.u32 %v328, 4294901760
        %v2108 = vsub.f32 %v328, %v2107
        %v2109 = vand.u32 %v2108, 4294901760
        %2110 = vmatpush.msra.mxu0 %v2109
        %v2111 = vand.u32 %v324, 4294901760
        %v2112 = vsub.f32 %v324, %v2111
        %v2113 = vand.u32 %v2112, 4294901760
        %2114 = vmatpush.msra.mxu0 %v2113
        %v2115 = vand.u32 %v320, 4294901760
        %v2116 = vsub.f32 %v320, %v2115
        %v2117 = vand.u32 %v2116, 4294901760
        %2118 = vmatpush.msra.mxu0 %v2117
        %v2119 = vand.u32 %v316, 4294901760
        %2120 = vmatmul.f32.gmra.mxu0 %v2119
        %v2121 = vpop.f32.mrf.mxu0
        %v2122 = vadd.f32 %v2053, %v2121
        %2123 = vdwg.mxu0
        %v2124 = vand.u32 %v380, 4294901760
        %2125 = vmatpush.msra.mxu0 %v2124
        %v2126 = vand.u32 %v376, 4294901760
        %2127 = vmatpush.msra.mxu0 %v2126
        %v2128 = vand.u32 %v372, 4294901760
        %2129 = vmatpush.msra.mxu0 %v2128
        %v2130 = vand.u32 %v368, 4294901760
        %2131 = vmatpush.msra.mxu0 %v2130
        %v2132 = vand.u32 %v364, 4294901760
        %2133 = vmatpush.msra.mxu0 %v2132
        %v2134 = vand.u32 %v360, 4294901760
        %2135 = vmatpush.msra.mxu0 %v2134
        %v2136 = vand.u32 %v356, 4294901760
        %2137 = vmatpush.msra.mxu0 %v2136
        %v2138 = vand.u32 %v352, 4294901760
        %2139 = vmatpush.msra.mxu0 %v2138
        %v2140 = vand.u32 %v348, 4294901760
        %2141 = vmatpush.msra.mxu0 %v2140
        %v2142 = vand.u32 %v344, 4294901760
        %2143 = vmatpush.msra.mxu0 %v2142
        %v2144 = vand.u32 %v340, 4294901760
        %2145 = vmatpush.msra.mxu0 %v2144
        %v2146 = vand.u32 %v336, 4294901760
        %2147 = vmatpush.msra.mxu0 %v2146
        %v2148 = vand.u32 %v332, 4294901760
        %2149 = vmatpush.msra.mxu0 %v2148
        %v2150 = vand.u32 %v328, 4294901760
        %2151 = vmatpush.msra.mxu0 %v2150
        %v2152 = vand.u32 %v324, 4294901760
        %2153 = vmatpush.msra.mxu0 %v2152
        %v2154 = vand.u32 %v320, 4294901760
        %2155 = vmatpush.msra.mxu0 %v2154
        %v2156 = vand.u32 %v316, 4294901760
        %2157 = vmatmul.f32.gmra.mxu0 %v2156
        %v2158 = vpop.f32.mrf.mxu0
        %v2159 = vadd.f32 %v2122, %v2158
        %2160 = vdwg.mxu0
        %v2161 = vand.u32 %v444, 4294901760
        %2162 = vmatpush.msra.mxu0 %v2161
        %v2163 = vand.u32 %v440, 4294901760
        %2164 = vmatpush.msra.mxu0 %v2163
        %v2165 = vand.u32 %v436, 4294901760
        %2166 = vmatpush.msra.mxu0 %v2165
        %v2167 = vand.u32 %v432, 4294901760
        %2168 = vmatpush.msra.mxu0 %v2167
        %v2169 = vand.u32 %v428, 4294901760
        %2170 = vmatpush.msra.mxu0 %v2169
        %v2171 = vand.u32 %v424, 4294901760
        %2172 = vmatpush.msra.mxu0 %v2171
        %v2173 = vand.u32 %v420, 4294901760
        %2174 = vmatpush.msra.mxu0 %v2173
        %v2175 = vand.u32 %v416, 4294901760
        %2176 = vmatpush.msra.mxu0 %v2175
        %v2177 = vand.u32 %v412, 4294901760
        %2178 = vmatpush.msra.mxu0 %v2177
        %v2179 = vand.u32 %v408, 4294901760
        %2180 = vmatpush.msra.mxu0 %v2179
        %v2181 = vand.u32 %v404, 4294901760
        %2182 = vmatpush.msra.mxu0 %v2181
        %v2183 = vand.u32 %v400, 4294901760
        %2184 = vmatpush.msra.mxu0 %v2183
        %v2185 = vand.u32 %v396, 4294901760
        %2186 = vmatpush.msra.mxu0 %v2185
        %v2187 = vand.u32 %v392, 4294901760
        %2188 = vmatpush.msra.mxu0 %v2187
        %v2189 = vand.u32 %v388, 4294901760
        %2190 = vmatpush.msra.mxu0 %v2189
        %v2191 = vand.u32 %v384, 4294901760
        %2192 = vmatpush.msra.mxu0 %v2191
        %v2193 = vand.u32 %v317, 4294901760
        %v2194 = vsub.f32 %v317, %v2193
        %v2195 = vand.u32 %v2194, 4294901760
        %v2196 = vsub.f32 %v2194, %v2195
        %v2197 = vand.u32 %v2196, 4294901760
        %2198 = vmatmul.f32.gmra.mxu0 %v2197
        %v2199 = vpop.f32.mrf.mxu0
        %v2200 = vadd.f32 %v2159, %v2199
        %2201 = vdwg.mxu0
        %v2202 = vand.u32 %v444, 4294901760
        %v2203 = vsub.f32 %v444, %v2202
        %v2204 = vand.u32 %v2203, 4294901760
        %v2205 = vsub.f32 %v2203, %v2204
        %v2206 = vand.u32 %v2205, 4294901760
        %2207 = vmatpush.msra.mxu0 %v2206
        %v2208 = vand.u32 %v440, 4294901760
        %v2209 = vsub.f32 %v440, %v2208
        %v2210 = vand.u32 %v2209, 4294901760
        %v2211 = vsub.f32 %v2209, %v2210
        %v2212 = vand.u32 %v2211, 4294901760
        %2213 = vmatpush.msra.mxu0 %v2212
        %v2214 = vand.u32 %v436, 4294901760
        %v2215 = vsub.f32 %v436, %v2214
        %v2216 = vand.u32 %v2215, 4294901760
        %v2217 = vsub.f32 %v2215, %v2216
        %v2218 = vand.u32 %v2217, 4294901760
        %2219 = vmatpush.msra.mxu0 %v2218
        %v2220 = vand.u32 %v432, 4294901760
        %v2221 = vsub.f32 %v432, %v2220
        %v2222 = vand.u32 %v2221, 4294901760
        %v2223 = vsub.f32 %v2221, %v2222
        %v2224 = vand.u32 %v2223, 4294901760
        %2225 = vmatpush.msra.mxu0 %v2224
        %v2226 = vand.u32 %v428, 4294901760
        %v2227 = vsub.f32 %v428, %v2226
        %v2228 = vand.u32 %v2227, 4294901760
        %v2229 = vsub.f32 %v2227, %v2228
        %v2230 = vand.u32 %v2229, 4294901760
        %2231 = vmatpush.msra.mxu0 %v2230
        %v2232 = vand.u32 %v424, 4294901760
        %v2233 = vsub.f32 %v424, %v2232
        %v2234 = vand.u32 %v2233, 4294901760
        %v2235 = vsub.f32 %v2233, %v2234
        %v2236 = vand.u32 %v2235, 4294901760
        %2237 = vmatpush.msra.mxu0 %v2236
        %v2238 = vand.u32 %v420, 4294901760
        %v2239 = vsub.f32 %v420, %v2238
        %v2240 = vand.u32 %v2239, 4294901760
        %v2241 = vsub.f32 %v2239, %v2240
        %v2242 = vand.u32 %v2241, 4294901760
        %2243 = vmatpush.msra.mxu0 %v2242
        %v2244 = vand.u32 %v416, 4294901760
        %v2245 = vsub.f32 %v416, %v2244
        %v2246 = vand.u32 %v2245, 4294901760
        %v2247 = vsub.f32 %v2245, %v2246
        %v2248 = vand.u32 %v2247, 4294901760
        %2249 = vmatpush.msra.mxu0 %v2248
        %v2250 = vand.u32 %v412, 4294901760
        %v2251 = vsub.f32 %v412, %v2250
        %v2252 = vand.u32 %v2251, 4294901760
        %v2253 = vsub.f32 %v2251, %v2252
        %v2254 = vand.u32 %v2253, 4294901760
        %2255 = vmatpush.msra.mxu0 %v2254
        %v2256 = vand.u32 %v408, 4294901760
        %v2257 = vsub.f32 %v408, %v2256
        %v2258 = vand.u32 %v2257, 4294901760
        %v2259 = vsub.f32 %v2257, %v2258
        %v2260 = vand.u32 %v2259, 4294901760
        %2261 = vmatpush.msra.mxu0 %v2260
        %v2262 = vand.u32 %v404, 4294901760
        %v2263 = vsub.f32 %v404, %v2262
        %v2264 = vand.u32 %v2263, 4294901760
        %v2265 = vsub.f32 %v2263, %v2264
        %v2266 = vand.u32 %v2265, 4294901760
        %2267 = vmatpush.msra.mxu0 %v2266
        %v2268 = vand.u32 %v400, 4294901760
        %v2269 = vsub.f32 %v400, %v2268
        %v2270 = vand.u32 %v2269, 4294901760
        %v2271 = vsub.f32 %v2269, %v2270
        %v2272 = vand.u32 %v2271, 4294901760
        %2273 = vmatpush.msra.mxu0 %v2272
        %v2274 = vand.u32 %v396, 4294901760
        %v2275 = vsub.f32 %v396, %v2274
        %v2276 = vand.u32 %v2275, 4294901760
        %v2277 = vsub.f32 %v2275, %v2276
        %v2278 = vand.u32 %v2277, 4294901760
        %2279 = vmatpush.msra.mxu0 %v2278
        %v2280 = vand.u32 %v392, 4294901760
        %v2281 = vsub.f32 %v392, %v2280
        %v2282 = vand.u32 %v2281, 4294901760
        %v2283 = vsub.f32 %v2281, %v2282
        %v2284 = vand.u32 %v2283, 4294901760
        %2285 = vmatpush.msra.mxu0 %v2284
        %v2286 = vand.u32 %v388, 4294901760
        %v2287 = vsub.f32 %v388, %v2286
        %v2288 = vand.u32 %v2287, 4294901760
        %v2289 = vsub.f32 %v2287, %v2288
        %v2290 = vand.u32 %v2289, 4294901760
        %2291 = vmatpush.msra.mxu0 %v2290
        %v2292 = vand.u32 %v384, 4294901760
        %v2293 = vsub.f32 %v384, %v2292
        %v2294 = vand.u32 %v2293, 4294901760
        %v2295 = vsub.f32 %v2293, %v2294
        %v2296 = vand.u32 %v2295, 4294901760
        %2297 = vmatpush.msra.mxu0 %v2296
        %v2298 = vand.u32 %v317, 4294901760
        %2299 = vmatmul.f32.gmra.mxu0 %v2298
        %v2300 = vpop.f32.mrf.mxu0
        %v2301 = vadd.f32 %v2200, %v2300
        %2302 = vdwg.mxu0
        %v2303 = vand.u32 %v444, 4294901760
        %v2304 = vsub.f32 %v444, %v2303
        %2305 = vmatpush.msra.mxu0 %v2304
        %v2306 = vand.u32 %v440, 4294901760
        %v2307 = vsub.f32 %v440, %v2306
        %2308 = vmatpush.msra.mxu0 %v2307
        %v2309 = vand.u32 %v436, 4294901760
        %v2310 = vsub.f32 %v436, %v2309
        %2311 = vmatpush.msra.mxu0 %v2310
        %v2312 = vand.u32 %v432, 4294901760
        %v2313 = vsub.f32 %v432, %v2312
        %2314 = vmatpush.msra.mxu0 %v2313
        %v2315 = vand.u32 %v428, 4294901760
        %v2316 = vsub.f32 %v428, %v2315
        %2317 = vmatpush.msra.mxu0 %v2316
        %v2318 = vand.u32 %v424, 4294901760
        %v2319 = vsub.f32 %v424, %v2318
        %2320 = vmatpush.msra.mxu0 %v2319
        %v2321 = vand.u32 %v420, 4294901760
        %v2322 = vsub.f32 %v420, %v2321
        %2323 = vmatpush.msra.mxu0 %v2322
        %v2324 = vand.u32 %v416, 4294901760
        %v2325 = vsub.f32 %v416, %v2324
        %2326 = vmatpush.msra.mxu0 %v2325
        %v2327 = vand.u32 %v412, 4294901760
        %v2328 = vsub.f32 %v412, %v2327
        %2329 = vmatpush.msra.mxu0 %v2328
        %v2330 = vand.u32 %v408, 4294901760
        %v2331 = vsub.f32 %v408, %v2330
        %2332 = vmatpush.msra.mxu0 %v2331
        %v2333 = vand.u32 %v404, 4294901760
        %v2334 = vsub.f32 %v404, %v2333
        %2335 = vmatpush.msra.mxu0 %v2334
        %v2336 = vand.u32 %v400, 4294901760
        %v2337 = vsub.f32 %v400, %v2336
        %2338 = vmatpush.msra.mxu0 %v2337
        %v2339 = vand.u32 %v396, 4294901760
        %v2340 = vsub.f32 %v396, %v2339
        %2341 = vmatpush.msra.mxu0 %v2340
        %v2342 = vand.u32 %v392, 4294901760
        %v2343 = vsub.f32 %v392, %v2342
        %2344 = vmatpush.msra.mxu0 %v2343
        %v2345 = vand.u32 %v388, 4294901760
        %v2346 = vsub.f32 %v388, %v2345
        %2347 = vmatpush.msra.mxu0 %v2346
        %v2348 = vand.u32 %v384, 4294901760
        %v2349 = vsub.f32 %v384, %v2348
        %2350 = vmatpush.msra.mxu0 %v2349
        %v2351 = vand.u32 %v317, 4294901760
        %v2352 = vsub.f32 %v317, %v2351
        %2353 = vmatmul.f32.gmra.mxu0 %v2352
        %v2354 = vpop.f32.mrf.mxu0
        %v2355 = vadd.f32 %v2301, %v2354
        %2356 = vdwg.mxu0
        %v2357 = vand.u32 %v444, 4294901760
        %2358 = vmatpush.msra.mxu0 %v2357
        %v2359 = vand.u32 %v440, 4294901760
        %2360 = vmatpush.msra.mxu0 %v2359
        %v2361 = vand.u32 %v436, 4294901760
        %2362 = vmatpush.msra.mxu0 %v2361
        %v2363 = vand.u32 %v432, 4294901760
        %2364 = vmatpush.msra.mxu0 %v2363
        %v2365 = vand.u32 %v428, 4294901760
        %2366 = vmatpush.msra.mxu0 %v2365
        %v2367 = vand.u32 %v424, 4294901760
        %2368 = vmatpush.msra.mxu0 %v2367
        %v2369 = vand.u32 %v420, 4294901760
        %2370 = vmatpush.msra.mxu0 %v2369
        %v2371 = vand.u32 %v416, 4294901760
        %2372 = vmatpush.msra.mxu0 %v2371
        %v2373 = vand.u32 %v412, 4294901760
        %2374 = vmatpush.msra.mxu0 %v2373
        %v2375 = vand.u32 %v408, 4294901760
        %2376 = vmatpush.msra.mxu0 %v2375
        %v2377 = vand.u32 %v404, 4294901760
        %2378 = vmatpush.msra.mxu0 %v2377
        %v2379 = vand.u32 %v400, 4294901760
        %2380 = vmatpush.msra.mxu0 %v2379
        %v2381 = vand.u32 %v396, 4294901760
        %2382 = vmatpush.msra.mxu0 %v2381
        %v2383 = vand.u32 %v392, 4294901760
        %2384 = vmatpush.msra.mxu0 %v2383
        %v2385 = vand.u32 %v388, 4294901760
        %2386 = vmatpush.msra.mxu0 %v2385
        %v2387 = vand.u32 %v384, 4294901760
        %2388 = vmatpush.msra.mxu0 %v2387
        %v2389 = vand.u32 %v317, 4294901760
        %v2390 = vsub.f32 %v317, %v2389
        %v2391 = vand.u32 %v2390, 4294901760
        %2392 = vmatmul.f32.gmra.mxu0 %v2391
        %v2393 = vpop.f32.mrf.mxu0
        %v2394 = vadd.f32 %v2355, %v2393
        %2395 = vdwg.mxu0
        %v2396 = vand.u32 %v444, 4294901760
        %v2397 = vsub.f32 %v444, %v2396
        %v2398 = vand.u32 %v2397, 4294901760
        %2399 = vmatpush.msra.mxu0 %v2398
        %v2400 = vand.u32 %v440, 4294901760
        %v2401 = vsub.f32 %v440, %v2400
        %v2402 = vand.u32 %v2401, 4294901760
        %2403 = vmatpush.msra.mxu0 %v2402
        %v2404 = vand.u32 %v436, 4294901760
        %v2405 = vsub.f32 %v436, %v2404
        %v2406 = vand.u32 %v2405, 4294901760
        %2407 = vmatpush.msra.mxu0 %v2406
        %v2408 = vand.u32 %v432, 4294901760
        %v2409 = vsub.f32 %v432, %v2408
        %v2410 = vand.u32 %v2409, 4294901760
        %2411 = vmatpush.msra.mxu0 %v2410
        %v2412 = vand.u32 %v428, 4294901760
        %v2413 = vsub.f32 %v428, %v2412
        %v2414 = vand.u32 %v2413, 4294901760
        %2415 = vmatpush.msra.mxu0 %v2414
        %v2416 = vand.u32 %v424, 4294901760
        %v2417 = vsub.f32 %v424, %v2416
        %v2418 = vand.u32 %v2417, 4294901760
        %2419 = vmatpush.msra.mxu0 %v2418
        %v2420 = vand.u32 %v420, 4294901760
        %v2421 = vsub.f32 %v420, %v2420
        %v2422 = vand.u32 %v2421, 4294901760
        %2423 = vmatpush.msra.mxu0 %v2422
        %v2424 = vand.u32 %v416, 4294901760
        %v2425 = vsub.f32 %v416, %v2424
        %v2426 = vand.u32 %v2425, 4294901760
        %2427 = vmatpush.msra.mxu0 %v2426
        %v2428 = vand.u32 %v412, 4294901760
        %v2429 = vsub.f32 %v412, %v2428
        %v2430 = vand.u32 %v2429, 4294901760
        %2431 = vmatpush.msra.mxu0 %v2430
        %v2432 = vand.u32 %v408, 4294901760
        %v2433 = vsub.f32 %v408, %v2432
        %v2434 = vand.u32 %v2433, 4294901760
        %2435 = vmatpush.msra.mxu0 %v2434
        %v2436 = vand.u32 %v404, 4294901760
        %v2437 = vsub.f32 %v404, %v2436
        %v2438 = vand.u32 %v2437, 4294901760
        %2439 = vmatpush.msra.mxu0 %v2438
        %v2440 = vand.u32 %v400, 4294901760
        %v2441 = vsub.f32 %v400, %v2440
        %v2442 = vand.u32 %v2441, 4294901760
        %2443 = vmatpush.msra.mxu0 %v2442
        %v2444 = vand.u32 %v396, 4294901760
        %v2445 = vsub.f32 %v396, %v2444
        %v2446 = vand.u32 %v2445, 4294901760
        %2447 = vmatpush.msra.mxu0 %v2446
        %v2448 = vand.u32 %v392, 4294901760
        %v2449 = vsub.f32 %v392, %v2448
        %v2450 = vand.u32 %v2449, 4294901760
        %2451 = vmatpush.msra.mxu0 %v2450
        %v2452 = vand.u32 %v388, 4294901760
        %v2453 = vsub.f32 %v388, %v2452
        %v2454 = vand.u32 %v2453, 4294901760
        %2455 = vmatpush.msra.mxu0 %v2454
        %v2456 = vand.u32 %v384, 4294901760
        %v2457 = vsub.f32 %v384, %v2456
        %v2458 = vand.u32 %v2457, 4294901760
        %2459 = vmatpush.msra.mxu0 %v2458
        %v2460 = vand.u32 %v317, 4294901760
        %2461 = vmatmul.f32.gmra.mxu0 %v2460
        %v2462 = vpop.f32.mrf.mxu0
        %v2463 = vadd.f32 %v2394, %v2462
        %2464 = vdwg.mxu0
        %v2465 = vand.u32 %v444, 4294901760
        %2466 = vmatpush.msra.mxu0 %v2465
        %v2467 = vand.u32 %v440, 4294901760
        %2468 = vmatpush.msra.mxu0 %v2467
        %v2469 = vand.u32 %v436, 4294901760
        %2470 = vmatpush.msra.mxu0 %v2469
        %v2471 = vand.u32 %v432, 4294901760
        %2472 = vmatpush.msra.mxu0 %v2471
        %v2473 = vand.u32 %v428, 4294901760
        %2474 = vmatpush.msra.mxu0 %v2473
        %v2475 = vand.u32 %v424, 4294901760
        %2476 = vmatpush.msra.mxu0 %v2475
        %v2477 = vand.u32 %v420, 4294901760
        %2478 = vmatpush.msra.mxu0 %v2477
        %v2479 = vand.u32 %v416, 4294901760
        %2480 = vmatpush.msra.mxu0 %v2479
        %v2481 = vand.u32 %v412, 4294901760
        %2482 = vmatpush.msra.mxu0 %v2481
        %v2483 = vand.u32 %v408, 4294901760
        %2484 = vmatpush.msra.mxu0 %v2483
        %v2485 = vand.u32 %v404, 4294901760
        %2486 = vmatpush.msra.mxu0 %v2485
        %v2487 = vand.u32 %v400, 4294901760
        %2488 = vmatpush.msra.mxu0 %v2487
        %v2489 = vand.u32 %v396, 4294901760
        %2490 = vmatpush.msra.mxu0 %v2489
        %v2491 = vand.u32 %v392, 4294901760
        %2492 = vmatpush.msra.mxu0 %v2491
        %v2493 = vand.u32 %v388, 4294901760
        %2494 = vmatpush.msra.mxu0 %v2493
        %v2495 = vand.u32 %v384, 4294901760
        %2496 = vmatpush.msra.mxu0 %v2495
        %v2497 = vand.u32 %v317, 4294901760
        %2498 = vmatmul.f32.gmra.mxu0 %v2497
        %v2499 = vpop.f32.mrf.mxu0
        %v2500 = vadd.f32 %v2463, %v2499
        %2501 = vdwg.mxu0
        %v2502 = vand.u32 %v381, 4294901760
        %2503 = vmatpush.msra.mxu0 %v2502
        %v2504 = vand.u32 %v377, 4294901760
        %2505 = vmatpush.msra.mxu0 %v2504
        %v2506 = vand.u32 %v373, 4294901760
        %2507 = vmatpush.msra.mxu0 %v2506
        %v2508 = vand.u32 %v369, 4294901760
        %2509 = vmatpush.msra.mxu0 %v2508
        %v2510 = vand.u32 %v365, 4294901760
        %2511 = vmatpush.msra.mxu0 %v2510
        %v2512 = vand.u32 %v361, 4294901760
        %2513 = vmatpush.msra.mxu0 %v2512
        %v2514 = vand.u32 %v357, 4294901760
        %2515 = vmatpush.msra.mxu0 %v2514
        %v2516 = vand.u32 %v353, 4294901760
        %2517 = vmatpush.msra.mxu0 %v2516
        %v2518 = vand.u32 %v349, 4294901760
        %2519 = vmatpush.msra.mxu0 %v2518
        %v2520 = vand.u32 %v345, 4294901760
        %2521 = vmatpush.msra.mxu0 %v2520
        %v2522 = vand.u32 %v341, 4294901760
        %2523 = vmatpush.msra.mxu0 %v2522
        %v2524 = vand.u32 %v337, 4294901760
        %2525 = vmatpush.msra.mxu0 %v2524
        %v2526 = vand.u32 %v333, 4294901760
        %2527 = vmatpush.msra.mxu0 %v2526
        %v2528 = vand.u32 %v329, 4294901760
        %2529 = vmatpush.msra.mxu0 %v2528
        %v2530 = vand.u32 %v325, 4294901760
        %2531 = vmatpush.msra.mxu0 %v2530
        %v2532 = vand.u32 %v321, 4294901760
        %2533 = vmatpush.msra.mxu0 %v2532
        %v2534 = vand.u32 %v316, 4294901760
        %v2535 = vsub.f32 %v316, %v2534
        %v2536 = vand.u32 %v2535, 4294901760
        %v2537 = vsub.f32 %v2535, %v2536
        %v2538 = vand.u32 %v2537, 4294901760
        %2539 = vmatmul.f32.gmra.mxu0 %v2538
        %v2540 = vpop.f32.mrf.mxu0
        %v2541 = vadd.f32 %v451, %v2540
        %2542 = vdwg.mxu0
        %v2543 = vand.u32 %v381, 4294901760
        %v2544 = vsub.f32 %v381, %v2543
        %v2545 = vand.u32 %v2544, 4294901760
        %v2546 = vsub.f32 %v2544, %v2545
        %v2547 = vand.u32 %v2546, 4294901760
        %2548 = vmatpush.msra.mxu0 %v2547
        %v2549 = vand.u32 %v377, 4294901760
        %v2550 = vsub.f32 %v377, %v2549
        %v2551 = vand.u32 %v2550, 4294901760
        %v2552 = vsub.f32 %v2550, %v2551
        %v2553 = vand.u32 %v2552, 4294901760
        %2554 = vmatpush.msra.mxu0 %v2553
        %v2555 = vand.u32 %v373, 4294901760
        %v2556 = vsub.f32 %v373, %v2555
        %v2557 = vand.u32 %v2556, 4294901760
        %v2558 = vsub.f32 %v2556, %v2557
        %v2559 = vand.u32 %v2558, 4294901760
        %2560 = vmatpush.msra.mxu0 %v2559
        %v2561 = vand.u32 %v369, 4294901760
        %v2562 = vsub.f32 %v369, %v2561
        %v2563 = vand.u32 %v2562, 4294901760
        %v2564 = vsub.f32 %v2562, %v2563
        %v2565 = vand.u32 %v2564, 4294901760
        %2566 = vmatpush.msra.mxu0 %v2565
        %v2567 = vand.u32 %v365, 4294901760
        %v2568 = vsub.f32 %v365, %v2567
        %v2569 = vand.u32 %v2568, 4294901760
        %v2570 = vsub.f32 %v2568, %v2569
        %v2571 = vand.u32 %v2570, 4294901760
        %2572 = vmatpush.msra.mxu0 %v2571
        %v2573 = vand.u32 %v361, 4294901760
        %v2574 = vsub.f32 %v361, %v2573
        %v2575 = vand.u32 %v2574, 4294901760
        %v2576 = vsub.f32 %v2574, %v2575
        %v2577 = vand.u32 %v2576, 4294901760
        %2578 = vmatpush.msra.mxu0 %v2577
        %v2579 = vand.u32 %v357, 4294901760
        %v2580 = vsub.f32 %v357, %v2579
        %v2581 = vand.u32 %v2580, 4294901760
        %v2582 = vsub.f32 %v2580, %v2581
        %v2583 = vand.u32 %v2582, 4294901760
        %2584 = vmatpush.msra.mxu0 %v2583
        %v2585 = vand.u32 %v353, 4294901760
        %v2586 = vsub.f32 %v353, %v2585
        %v2587 = vand.u32 %v2586, 4294901760
        %v2588 = vsub.f32 %v2586, %v2587
        %v2589 = vand.u32 %v2588, 4294901760
        %2590 = vmatpush.msra.mxu0 %v2589
        %v2591 = vand.u32 %v349, 4294901760
        %v2592 = vsub.f32 %v349, %v2591
        %v2593 = vand.u32 %v2592, 4294901760
        %v2594 = vsub.f32 %v2592, %v2593
        %v2595 = vand.u32 %v2594, 4294901760
        %2596 = vmatpush.msra.mxu0 %v2595
        %v2597 = vand.u32 %v345, 4294901760
        %v2598 = vsub.f32 %v345, %v2597
        %v2599 = vand.u32 %v2598, 4294901760
        %v2600 = vsub.f32 %v2598, %v2599
        %v2601 = vand.u32 %v2600, 4294901760
        %2602 = vmatpush.msra.mxu0 %v2601
        %v2603 = vand.u32 %v341, 4294901760
        %v2604 = vsub.f32 %v341, %v2603
        %v2605 = vand.u32 %v2604, 4294901760
        %v2606 = vsub.f32 %v2604, %v2605
        %v2607 = vand.u32 %v2606, 4294901760
        %2608 = vmatpush.msra.mxu0 %v2607
        %v2609 = vand.u32 %v337, 4294901760
        %v2610 = vsub.f32 %v337, %v2609
        %v2611 = vand.u32 %v2610, 4294901760
        %v2612 = vsub.f32 %v2610, %v2611
        %v2613 = vand.u32 %v2612, 4294901760
        %2614 = vmatpush.msra.mxu0 %v2613
        %v2615 = vand.u32 %v333, 4294901760
        %v2616 = vsub.f32 %v333, %v2615
        %v2617 = vand.u32 %v2616, 4294901760
        %v2618 = vsub.f32 %v2616, %v2617
        %v2619 = vand.u32 %v2618, 4294901760
        %2620 = vmatpush.msra.mxu0 %v2619
        %v2621 = vand.u32 %v329, 4294901760
        %v2622 = vsub.f32 %v329, %v2621
        %v2623 = vand.u32 %v2622, 4294901760
        %v2624 = vsub.f32 %v2622, %v2623
        %v2625 = vand.u32 %v2624, 4294901760
        %2626 = vmatpush.msra.mxu0 %v2625
        %v2627 = vand.u32 %v325, 4294901760
        %v2628 = vsub.f32 %v325, %v2627
        %v2629 = vand.u32 %v2628, 4294901760
        %v2630 = vsub.f32 %v2628, %v2629
        %v2631 = vand.u32 %v2630, 4294901760
        %2632 = vmatpush.msra.mxu0 %v2631
        %v2633 = vand.u32 %v321, 4294901760
        %v2634 = vsub.f32 %v321, %v2633
        %v2635 = vand.u32 %v2634, 4294901760
        %v2636 = vsub.f32 %v2634, %v2635
        %v2637 = vand.u32 %v2636, 4294901760
        %2638 = vmatpush.msra.mxu0 %v2637
        %v2639 = vand.u32 %v316, 4294901760
        %2640 = vmatmul.f32.gmra.mxu0 %v2639
        %v2641 = vpop.f32.mrf.mxu0
        %v2642 = vadd.f32 %v2541, %v2641
        %2643 = vdwg.mxu0
        %v2644 = vand.u32 %v381, 4294901760
        %v2645 = vsub.f32 %v381, %v2644
        %2646 = vmatpush.msra.mxu0 %v2645
        %v2647 = vand.u32 %v377, 4294901760
        %v2648 = vsub.f32 %v377, %v2647
        %2649 = vmatpush.msra.mxu0 %v2648
        %v2650 = vand.u32 %v373, 4294901760
        %v2651 = vsub.f32 %v373, %v2650
        %2652 = vmatpush.msra.mxu0 %v2651
        %v2653 = vand.u32 %v369, 4294901760
        %v2654 = vsub.f32 %v369, %v2653
        %2655 = vmatpush.msra.mxu0 %v2654
        %v2656 = vand.u32 %v365, 4294901760
        %v2657 = vsub.f32 %v365, %v2656
        %2658 = vmatpush.msra.mxu0 %v2657
        %v2659 = vand.u32 %v361, 4294901760
        %v2660 = vsub.f32 %v361, %v2659
        %2661 = vmatpush.msra.mxu0 %v2660
        %v2662 = vand.u32 %v357, 4294901760
        %v2663 = vsub.f32 %v357, %v2662
        %2664 = vmatpush.msra.mxu0 %v2663
        %v2665 = vand.u32 %v353, 4294901760
        %v2666 = vsub.f32 %v353, %v2665
        %2667 = vmatpush.msra.mxu0 %v2666
        %v2668 = vand.u32 %v349, 4294901760
        %v2669 = vsub.f32 %v349, %v2668
        %2670 = vmatpush.msra.mxu0 %v2669
        %v2671 = vand.u32 %v345, 4294901760
        %v2672 = vsub.f32 %v345, %v2671
        %2673 = vmatpush.msra.mxu0 %v2672
        %v2674 = vand.u32 %v341, 4294901760
        %v2675 = vsub.f32 %v341, %v2674
        %2676 = vmatpush.msra.mxu0 %v2675
        %v2677 = vand.u32 %v337, 4294901760
        %v2678 = vsub.f32 %v337, %v2677
        %2679 = vmatpush.msra.mxu0 %v2678
        %v2680 = vand.u32 %v333, 4294901760
        %v2681 = vsub.f32 %v333, %v2680
        %2682 = vmatpush.msra.mxu0 %v2681
        %v2683 = vand.u32 %v329, 4294901760
        %v2684 = vsub.f32 %v329, %v2683
        %2685 = vmatpush.msra.mxu0 %v2684
        %v2686 = vand.u32 %v325, 4294901760
        %v2687 = vsub.f32 %v325, %v2686
        %2688 = vmatpush.msra.mxu0 %v2687
        %v2689 = vand.u32 %v321, 4294901760
        %v2690 = vsub.f32 %v321, %v2689
        %2691 = vmatpush.msra.mxu0 %v2690
        %v2692 = vand.u32 %v316, 4294901760
        %v2693 = vsub.f32 %v316, %v2692
        %2694 = vmatmul.f32.gmra.mxu0 %v2693
        %v2695 = vpop.f32.mrf.mxu0
        %v2696 = vadd.f32 %v2642, %v2695
        %2697 = vdwg.mxu0
        %v2698 = vand.u32 %v381, 4294901760
        %2699 = vmatpush.msra.mxu0 %v2698
        %v2700 = vand.u32 %v377, 4294901760
        %2701 = vmatpush.msra.mxu0 %v2700
        %v2702 = vand.u32 %v373, 4294901760
        %2703 = vmatpush.msra.mxu0 %v2702
        %v2704 = vand.u32 %v369, 4294901760
        %2705 = vmatpush.msra.mxu0 %v2704
        %v2706 = vand.u32 %v365, 4294901760
        %2707 = vmatpush.msra.mxu0 %v2706
        %v2708 = vand.u32 %v361, 4294901760
        %2709 = vmatpush.msra.mxu0 %v2708
        %v2710 = vand.u32 %v357, 4294901760
        %2711 = vmatpush.msra.mxu0 %v2710
        %v2712 = vand.u32 %v353, 4294901760
        %2713 = vmatpush.msra.mxu0 %v2712
        %v2714 = vand.u32 %v349, 4294901760
        %2715 = vmatpush.msra.mxu0 %v2714
        %v2716 = vand.u32 %v345, 4294901760
        %2717 = vmatpush.msra.mxu0 %v2716
        %v2718 = vand.u32 %v341, 4294901760
        %2719 = vmatpush.msra.mxu0 %v2718
        %v2720 = vand.u32 %v337, 4294901760
        %2721 = vmatpush.msra.mxu0 %v2720
        %v2722 = vand.u32 %v333, 4294901760
        %2723 = vmatpush.msra.mxu0 %v2722
        %v2724 = vand.u32 %v329, 4294901760
        %2725 = vmatpush.msra.mxu0 %v2724
        %v2726 = vand.u32 %v325, 4294901760
        %2727 = vmatpush.msra.mxu0 %v2726
        %v2728 = vand.u32 %v321, 4294901760
        %2729 = vmatpush.msra.mxu0 %v2728
        %v2730 = vand.u32 %v316, 4294901760
        %v2731 = vsub.f32 %v316, %v2730
        %v2732 = vand.u32 %v2731, 4294901760
        %2733 = vmatmul.f32.gmra.mxu0 %v2732
        %v2734 = vpop.f32.mrf.mxu0
        %v2735 = vadd.f32 %v2696, %v2734
        %2736 = vdwg.mxu0
        %v2737 = vand.u32 %v381, 4294901760
        %v2738 = vsub.f32 %v381, %v2737
        %v2739 = vand.u32 %v2738, 4294901760
        %2740 = vmatpush.msra.mxu0 %v2739
        %v2741 = vand.u32 %v377, 4294901760
        %v2742 = vsub.f32 %v377, %v2741
        %v2743 = vand.u32 %v2742, 4294901760
        %2744 = vmatpush.msra.mxu0 %v2743
        %v2745 = vand.u32 %v373, 4294901760
        %v2746 = vsub.f32 %v373, %v2745
        %v2747 = vand.u32 %v2746, 4294901760
        %2748 = vmatpush.msra.mxu0 %v2747
        %v2749 = vand.u32 %v369, 4294901760
        %v2750 = vsub.f32 %v369, %v2749
        %v2751 = vand.u32 %v2750, 4294901760
        %2752 = vmatpush.msra.mxu0 %v2751
        %v2753 = vand.u32 %v365, 4294901760
        %v2754 = vsub.f32 %v365, %v2753
        %v2755 = vand.u32 %v2754, 4294901760
        %2756 = vmatpush.msra.mxu0 %v2755
        %v2757 = vand.u32 %v361, 4294901760
        %v2758 = vsub.f32 %v361, %v2757
        %v2759 = vand.u32 %v2758, 4294901760
        %2760 = vmatpush.msra.mxu0 %v2759
        %v2761 = vand.u32 %v357, 4294901760
        %v2762 = vsub.f32 %v357, %v2761
        %v2763 = vand.u32 %v2762, 4294901760
        %2764 = vmatpush.msra.mxu0 %v2763
        %v2765 = vand.u32 %v353, 4294901760
        %v2766 = vsub.f32 %v353, %v2765
        %v2767 = vand.u32 %v2766, 4294901760
        %2768 = vmatpush.msra.mxu0 %v2767
        %v2769 = vand.u32 %v349, 4294901760
        %v2770 = vsub.f32 %v349, %v2769
        %v2771 = vand.u32 %v2770, 4294901760
        %2772 = vmatpush.msra.mxu0 %v2771
        %v2773 = vand.u32 %v345, 4294901760
        %v2774 = vsub.f32 %v345, %v2773
        %v2775 = vand.u32 %v2774, 4294901760
        %2776 = vmatpush.msra.mxu0 %v2775
        %v2777 = vand.u32 %v341, 4294901760
        %v2778 = vsub.f32 %v341, %v2777
        %v2779 = vand.u32 %v2778, 4294901760
        %2780 = vmatpush.msra.mxu0 %v2779
        %v2781 = vand.u32 %v337, 4294901760
        %v2782 = vsub.f32 %v337, %v2781
        %v2783 = vand.u32 %v2782, 4294901760
        %2784 = vmatpush.msra.mxu0 %v2783
        %v2785 = vand.u32 %v333, 4294901760
        %v2786 = vsub.f32 %v333, %v2785
        %v2787 = vand.u32 %v2786, 4294901760
        %2788 = vmatpush.msra.mxu0 %v2787
        %v2789 = vand.u32 %v329, 4294901760
        %v2790 = vsub.f32 %v329, %v2789
        %v2791 = vand.u32 %v2790, 4294901760
        %2792 = vmatpush.msra.mxu0 %v2791
        %v2793 = vand.u32 %v325, 4294901760
        %v2794 = vsub.f32 %v325, %v2793
        %v2795 = vand.u32 %v2794, 4294901760
        %2796 = vmatpush.msra.mxu0 %v2795
        %v2797 = vand.u32 %v321, 4294901760
        %v2798 = vsub.f32 %v321, %v2797
        %v2799 = vand.u32 %v2798, 4294901760
        %2800 = vmatpush.msra.mxu0 %v2799
        %v2801 = vand.u32 %v316, 4294901760
        %2802 = vmatmul.f32.gmra.mxu0 %v2801
        %v2803 = vpop.f32.mrf.mxu0
        %v2804 = vadd.f32 %v2735, %v2803
        %2805 = vdwg.mxu0
        %v2806 = vand.u32 %v381, 4294901760
        %2807 = vmatpush.msra.mxu0 %v2806
        %v2808 = vand.u32 %v377, 4294901760
        %2809 = vmatpush.msra.mxu0 %v2808
        %v2810 = vand.u32 %v373, 4294901760
        %2811 = vmatpush.msra.mxu0 %v2810
        %v2812 = vand.u32 %v369, 4294901760
        %2813 = vmatpush.msra.mxu0 %v2812
        %v2814 = vand.u32 %v365, 4294901760
        %2815 = vmatpush.msra.mxu0 %v2814
        %v2816 = vand.u32 %v361, 4294901760
        %2817 = vmatpush.msra.mxu0 %v2816
        %v2818 = vand.u32 %v357, 4294901760
        %2819 = vmatpush.msra.mxu0 %v2818
        %v2820 = vand.u32 %v353, 4294901760
        %2821 = vmatpush.msra.mxu0 %v2820
        %v2822 = vand.u32 %v349, 4294901760
        %2823 = vmatpush.msra.mxu0 %v2822
        %v2824 = vand.u32 %v345, 4294901760
        %2825 = vmatpush.msra.mxu0 %v2824
        %v2826 = vand.u32 %v341, 4294901760
        %2827 = vmatpush.msra.mxu0 %v2826
        %v2828 = vand.u32 %v337, 4294901760
        %2829 = vmatpush.msra.mxu0 %v2828
        %v2830 = vand.u32 %v333, 4294901760
        %2831 = vmatpush.msra.mxu0 %v2830
        %v2832 = vand.u32 %v329, 4294901760
        %2833 = vmatpush.msra.mxu0 %v2832
        %v2834 = vand.u32 %v325, 4294901760
        %2835 = vmatpush.msra.mxu0 %v2834
        %v2836 = vand.u32 %v321, 4294901760
        %2837 = vmatpush.msra.mxu0 %v2836
        %v2838 = vand.u32 %v316, 4294901760
        %2839 = vmatmul.f32.gmra.mxu0 %v2838
        %v2840 = vpop.f32.mrf.mxu0
        %v2841 = vadd.f32 %v2804, %v2840
        %2842 = vdwg.mxu0
        %v2843 = vand.u32 %v445, 4294901760
        %2844 = vmatpush.msra.mxu0 %v2843
        %v2845 = vand.u32 %v441, 4294901760
        %2846 = vmatpush.msra.mxu0 %v2845
        %v2847 = vand.u32 %v437, 4294901760
        %2848 = vmatpush.msra.mxu0 %v2847
        %v2849 = vand.u32 %v433, 4294901760
        %2850 = vmatpush.msra.mxu0 %v2849
        %v2851 = vand.u32 %v429, 4294901760
        %2852 = vmatpush.msra.mxu0 %v2851
        %v2853 = vand.u32 %v425, 4294901760
        %2854 = vmatpush.msra.mxu0 %v2853
        %v2855 = vand.u32 %v421, 4294901760
        %2856 = vmatpush.msra.mxu0 %v2855
        %v2857 = vand.u32 %v417, 4294901760
        %2858 = vmatpush.msra.mxu0 %v2857
        %v2859 = vand.u32 %v413, 4294901760
        %2860 = vmatpush.msra.mxu0 %v2859
        %v2861 = vand.u32 %v409, 4294901760
        %2862 = vmatpush.msra.mxu0 %v2861
        %v2863 = vand.u32 %v405, 4294901760
        %2864 = vmatpush.msra.mxu0 %v2863
        %v2865 = vand.u32 %v401, 4294901760
        %2866 = vmatpush.msra.mxu0 %v2865
        %v2867 = vand.u32 %v397, 4294901760
        %2868 = vmatpush.msra.mxu0 %v2867
        %v2869 = vand.u32 %v393, 4294901760
        %2870 = vmatpush.msra.mxu0 %v2869
        %v2871 = vand.u32 %v389, 4294901760
        %2872 = vmatpush.msra.mxu0 %v2871
        %v2873 = vand.u32 %v385, 4294901760
        %2874 = vmatpush.msra.mxu0 %v2873
        %v2875 = vand.u32 %v317, 4294901760
        %v2876 = vsub.f32 %v317, %v2875
        %v2877 = vand.u32 %v2876, 4294901760
        %v2878 = vsub.f32 %v2876, %v2877
        %v2879 = vand.u32 %v2878, 4294901760
        %2880 = vmatmul.f32.gmra.mxu0 %v2879
        %v2881 = vpop.f32.mrf.mxu0
        %v2882 = vadd.f32 %v2841, %v2881
        %2883 = vdwg.mxu0
        %v2884 = vand.u32 %v445, 4294901760
        %v2885 = vsub.f32 %v445, %v2884
        %v2886 = vand.u32 %v2885, 4294901760
        %v2887 = vsub.f32 %v2885, %v2886
        %v2888 = vand.u32 %v2887, 4294901760
        %2889 = vmatpush.msra.mxu0 %v2888
        %v2890 = vand.u32 %v441, 4294901760
        %v2891 = vsub.f32 %v441, %v2890
        %v2892 = vand.u32 %v2891, 4294901760
        %v2893 = vsub.f32 %v2891, %v2892
        %v2894 = vand.u32 %v2893, 4294901760
        %2895 = vmatpush.msra.mxu0 %v2894
        %v2896 = vand.u32 %v437, 4294901760
        %v2897 = vsub.f32 %v437, %v2896
        %v2898 = vand.u32 %v2897, 4294901760
        %v2899 = vsub.f32 %v2897, %v2898
        %v2900 = vand.u32 %v2899, 4294901760
        %2901 = vmatpush.msra.mxu0 %v2900
        %v2902 = vand.u32 %v433, 4294901760
        %v2903 = vsub.f32 %v433, %v2902
        %v2904 = vand.u32 %v2903, 4294901760
        %v2905 = vsub.f32 %v2903, %v2904
        %v2906 = vand.u32 %v2905, 4294901760
        %2907 = vmatpush.msra.mxu0 %v2906
        %v2908 = vand.u32 %v429, 4294901760
        %v2909 = vsub.f32 %v429, %v2908
        %v2910 = vand.u32 %v2909, 4294901760
        %v2911 = vsub.f32 %v2909, %v2910
        %v2912 = vand.u32 %v2911, 4294901760
        %2913 = vmatpush.msra.mxu0 %v2912
        %v2914 = vand.u32 %v425, 4294901760
        %v2915 = vsub.f32 %v425, %v2914
        %v2916 = vand.u32 %v2915, 4294901760
        %v2917 = vsub.f32 %v2915, %v2916
        %v2918 = vand.u32 %v2917, 4294901760
        %2919 = vmatpush.msra.mxu0 %v2918
        %v2920 = vand.u32 %v421, 4294901760
        %v2921 = vsub.f32 %v421, %v2920
        %v2922 = vand.u32 %v2921, 4294901760
        %v2923 = vsub.f32 %v2921, %v2922
        %v2924 = vand.u32 %v2923, 4294901760
        %2925 = vmatpush.msra.mxu0 %v2924
        %v2926 = vand.u32 %v417, 4294901760
        %v2927 = vsub.f32 %v417, %v2926
        %v2928 = vand.u32 %v2927, 4294901760
        %v2929 = vsub.f32 %v2927, %v2928
        %v2930 = vand.u32 %v2929, 4294901760
        %2931 = vmatpush.msra.mxu0 %v2930
        %v2932 = vand.u32 %v413, 4294901760
        %v2933 = vsub.f32 %v413, %v2932
        %v2934 = vand.u32 %v2933, 4294901760
        %v2935 = vsub.f32 %v2933, %v2934
        %v2936 = vand.u32 %v2935, 4294901760
        %2937 = vmatpush.msra.mxu0 %v2936
        %v2938 = vand.u32 %v409, 4294901760
        %v2939 = vsub.f32 %v409, %v2938
        %v2940 = vand.u32 %v2939, 4294901760
        %v2941 = vsub.f32 %v2939, %v2940
        %v2942 = vand.u32 %v2941, 4294901760
        %2943 = vmatpush.msra.mxu0 %v2942
        %v2944 = vand.u32 %v405, 4294901760
        %v2945 = vsub.f32 %v405, %v2944
        %v2946 = vand.u32 %v2945, 4294901760
        %v2947 = vsub.f32 %v2945, %v2946
        %v2948 = vand.u32 %v2947, 4294901760
        %2949 = vmatpush.msra.mxu0 %v2948
        %v2950 = vand.u32 %v401, 4294901760
        %v2951 = vsub.f32 %v401, %v2950
        %v2952 = vand.u32 %v2951, 4294901760
        %v2953 = vsub.f32 %v2951, %v2952
        %v2954 = vand.u32 %v2953, 4294901760
        %2955 = vmatpush.msra.mxu0 %v2954
        %v2956 = vand.u32 %v397, 4294901760
        %v2957 = vsub.f32 %v397, %v2956
        %v2958 = vand.u32 %v2957, 4294901760
        %v2959 = vsub.f32 %v2957, %v2958
        %v2960 = vand.u32 %v2959, 4294901760
        %2961 = vmatpush.msra.mxu0 %v2960
        %v2962 = vand.u32 %v393, 4294901760
        %v2963 = vsub.f32 %v393, %v2962
        %v2964 = vand.u32 %v2963, 4294901760
        %v2965 = vsub.f32 %v2963, %v2964
        %v2966 = vand.u32 %v2965, 4294901760
        %2967 = vmatpush.msra.mxu0 %v2966
        %v2968 = vand.u32 %v389, 4294901760
        %v2969 = vsub.f32 %v389, %v2968
        %v2970 = vand.u32 %v2969, 4294901760
        %v2971 = vsub.f32 %v2969, %v2970
        %v2972 = vand.u32 %v2971, 4294901760
        %2973 = vmatpush.msra.mxu0 %v2972
        %v2974 = vand.u32 %v385, 4294901760
        %v2975 = vsub.f32 %v385, %v2974
        %v2976 = vand.u32 %v2975, 4294901760
        %v2977 = vsub.f32 %v2975, %v2976
        %v2978 = vand.u32 %v2977, 4294901760
        %2979 = vmatpush.msra.mxu0 %v2978
        %v2980 = vand.u32 %v317, 4294901760
        %2981 = vmatmul.f32.gmra.mxu0 %v2980
        %v2982 = vpop.f32.mrf.mxu0
        %v2983 = vadd.f32 %v2882, %v2982
        %2984 = vdwg.mxu0
        %v2985 = vand.u32 %v445, 4294901760
        %v2986 = vsub.f32 %v445, %v2985
        %2987 = vmatpush.msra.mxu0 %v2986
        %v2988 = vand.u32 %v441, 4294901760
        %v2989 = vsub.f32 %v441, %v2988
        %2990 = vmatpush.msra.mxu0 %v2989
        %v2991 = vand.u32 %v437, 4294901760
        %v2992 = vsub.f32 %v437, %v2991
        %2993 = vmatpush.msra.mxu0 %v2992
        %v2994 = vand.u32 %v433, 4294901760
        %v2995 = vsub.f32 %v433, %v2994
        %2996 = vmatpush.msra.mxu0 %v2995
        %v2997 = vand.u32 %v429, 4294901760
        %v2998 = vsub.f32 %v429, %v2997
        %2999 = vmatpush.msra.mxu0 %v2998
        %v3000 = vand.u32 %v425, 4294901760
        %v3001 = vsub.f32 %v425, %v3000
        %3002 = vmatpush.msra.mxu0 %v3001
        %v3003 = vand.u32 %v421, 4294901760
        %v3004 = vsub.f32 %v421, %v3003
        %3005 = vmatpush.msra.mxu0 %v3004
        %v3006 = vand.u32 %v417, 4294901760
        %v3007 = vsub.f32 %v417, %v3006
        %3008 = vmatpush.msra.mxu0 %v3007
        %v3009 = vand.u32 %v413, 4294901760
        %v3010 = vsub.f32 %v413, %v3009
        %3011 = vmatpush.msra.mxu0 %v3010
        %v3012 = vand.u32 %v409, 4294901760
        %v3013 = vsub.f32 %v409, %v3012
        %3014 = vmatpush.msra.mxu0 %v3013
        %v3015 = vand.u32 %v405, 4294901760
        %v3016 = vsub.f32 %v405, %v3015
        %3017 = vmatpush.msra.mxu0 %v3016
        %v3018 = vand.u32 %v401, 4294901760
        %v3019 = vsub.f32 %v401, %v3018
        %3020 = vmatpush.msra.mxu0 %v3019
        %v3021 = vand.u32 %v397, 4294901760
        %v3022 = vsub.f32 %v397, %v3021
        %3023 = vmatpush.msra.mxu0 %v3022
        %v3024 = vand.u32 %v393, 4294901760
        %v3025 = vsub.f32 %v393, %v3024
        %3026 = vmatpush.msra.mxu0 %v3025
        %v3027 = vand.u32 %v389, 4294901760
        %v3028 = vsub.f32 %v389, %v3027
        %3029 = vmatpush.msra.mxu0 %v3028
        %v3030 = vand.u32 %v385, 4294901760
        %v3031 = vsub.f32 %v385, %v3030
        %3032 = vmatpush.msra.mxu0 %v3031
        %v3033 = vand.u32 %v317, 4294901760
        %v3034 = vsub.f32 %v317, %v3033
        %3035 = vmatmul.f32.gmra.mxu0 %v3034
        %v3036 = vpop.f32.mrf.mxu0
        %v3037 = vadd.f32 %v2983, %v3036
        %3038 = vdwg.mxu0
        %v3039 = vand.u32 %v445, 4294901760
        %3040 = vmatpush.msra.mxu0 %v3039
        %v3041 = vand.u32 %v441, 4294901760
        %3042 = vmatpush.msra.mxu0 %v3041
        %v3043 = vand.u32 %v437, 4294901760
        %3044 = vmatpush.msra.mxu0 %v3043
        %v3045 = vand.u32 %v433, 4294901760
        %3046 = vmatpush.msra.mxu0 %v3045
        %v3047 = vand.u32 %v429, 4294901760
        %3048 = vmatpush.msra.mxu0 %v3047
        %v3049 = vand.u32 %v425, 4294901760
        %3050 = vmatpush.msra.mxu0 %v3049
        %v3051 = vand.u32 %v421, 4294901760
        %3052 = vmatpush.msra.mxu0 %v3051
        %v3053 = vand.u32 %v417, 4294901760
        %3054 = vmatpush.msra.mxu0 %v3053
        %v3055 = vand.u32 %v413, 4294901760
        %3056 = vmatpush.msra.mxu0 %v3055
        %v3057 = vand.u32 %v409, 4294901760
        %3058 = vmatpush.msra.mxu0 %v3057
        %v3059 = vand.u32 %v405, 4294901760
        %3060 = vmatpush.msra.mxu0 %v3059
        %v3061 = vand.u32 %v401, 4294901760
        %3062 = vmatpush.msra.mxu0 %v3061
        %v3063 = vand.u32 %v397, 4294901760
        %3064 = vmatpush.msra.mxu0 %v3063
        %v3065 = vand.u32 %v393, 4294901760
        %3066 = vmatpush.msra.mxu0 %v3065
        %v3067 = vand.u32 %v389, 4294901760
        %3068 = vmatpush.msra.mxu0 %v3067
        %v3069 = vand.u32 %v385, 4294901760
        %3070 = vmatpush.msra.mxu0 %v3069
        %v3071 = vand.u32 %v317, 4294901760
        %v3072 = vsub.f32 %v317, %v3071
        %v3073 = vand.u32 %v3072, 4294901760
        %3074 = vmatmul.f32.gmra.mxu0 %v3073
        %v3075 = vpop.f32.mrf.mxu0
        %v3076 = vadd.f32 %v3037, %v3075
        %3077 = vdwg.mxu0
        %v3078 = vand.u32 %v445, 4294901760
        %v3079 = vsub.f32 %v445, %v3078
        %v3080 = vand.u32 %v3079, 4294901760
        %3081 = vmatpush.msra.mxu0 %v3080
        %v3082 = vand.u32 %v441, 4294901760
        %v3083 = vsub.f32 %v441, %v3082
        %v3084 = vand.u32 %v3083, 4294901760
        %3085 = vmatpush.msra.mxu0 %v3084
        %v3086 = vand.u32 %v437, 4294901760
        %v3087 = vsub.f32 %v437, %v3086
        %v3088 = vand.u32 %v3087, 4294901760
        %3089 = vmatpush.msra.mxu0 %v3088
        %v3090 = vand.u32 %v433, 4294901760
        %v3091 = vsub.f32 %v433, %v3090
        %v3092 = vand.u32 %v3091, 4294901760
        %3093 = vmatpush.msra.mxu0 %v3092
        %v3094 = vand.u32 %v429, 4294901760
        %v3095 = vsub.f32 %v429, %v3094
        %v3096 = vand.u32 %v3095, 4294901760
        %3097 = vmatpush.msra.mxu0 %v3096
        %v3098 = vand.u32 %v425, 4294901760
        %v3099 = vsub.f32 %v425, %v3098
        %v3100 = vand.u32 %v3099, 4294901760
        %3101 = vmatpush.msra.mxu0 %v3100
        %v3102 = vand.u32 %v421, 4294901760
        %v3103 = vsub.f32 %v421, %v3102
        %v3104 = vand.u32 %v3103, 4294901760
        %3105 = vmatpush.msra.mxu0 %v3104
        %v3106 = vand.u32 %v417, 4294901760
        %v3107 = vsub.f32 %v417, %v3106
        %v3108 = vand.u32 %v3107, 4294901760
        %3109 = vmatpush.msra.mxu0 %v3108
        %v3110 = vand.u32 %v413, 4294901760
        %v3111 = vsub.f32 %v413, %v3110
        %v3112 = vand.u32 %v3111, 4294901760
        %3113 = vmatpush.msra.mxu0 %v3112
        %v3114 = vand.u32 %v409, 4294901760
        %v3115 = vsub.f32 %v409, %v3114
        %v3116 = vand.u32 %v3115, 4294901760
        %3117 = vmatpush.msra.mxu0 %v3116
        %v3118 = vand.u32 %v405, 4294901760
        %v3119 = vsub.f32 %v405, %v3118
        %v3120 = vand.u32 %v3119, 4294901760
        %3121 = vmatpush.msra.mxu0 %v3120
        %v3122 = vand.u32 %v401, 4294901760
        %v3123 = vsub.f32 %v401, %v3122
        %v3124 = vand.u32 %v3123, 4294901760
        %3125 = vmatpush.msra.mxu0 %v3124
        %v3126 = vand.u32 %v397, 4294901760
        %v3127 = vsub.f32 %v397, %v3126
        %v3128 = vand.u32 %v3127, 4294901760
        %3129 = vmatpush.msra.mxu0 %v3128
        %v3130 = vand.u32 %v393, 4294901760
        %v3131 = vsub.f32 %v393, %v3130
        %v3132 = vand.u32 %v3131, 4294901760
        %3133 = vmatpush.msra.mxu0 %v3132
        %v3134 = vand.u32 %v389, 4294901760
        %v3135 = vsub.f32 %v389, %v3134
        %v3136 = vand.u32 %v3135, 4294901760
        %3137 = vmatpush.msra.mxu0 %v3136
        %v3138 = vand.u32 %v385, 4294901760
        %v3139 = vsub.f32 %v385, %v3138
        %v3140 = vand.u32 %v3139, 4294901760
        %3141 = vmatpush.msra.mxu0 %v3140
        %v3142 = vand.u32 %v317, 4294901760
        %3143 = vmatmul.f32.gmra.mxu0 %v3142
        %v3144 = vpop.f32.mrf.mxu0
        %v3145 = vadd.f32 %v3076, %v3144
        %3146 = vdwg.mxu0
        %v3147 = vand.u32 %v445, 4294901760
        %3148 = vmatpush.msra.mxu0 %v3147
        %v3149 = vand.u32 %v441, 4294901760
        %3150 = vmatpush.msra.mxu0 %v3149
        %v3151 = vand.u32 %v437, 4294901760
        %3152 = vmatpush.msra.mxu0 %v3151
        %v3153 = vand.u32 %v433, 4294901760
        %3154 = vmatpush.msra.mxu0 %v3153
        %v3155 = vand.u32 %v429, 4294901760
        %3156 = vmatpush.msra.mxu0 %v3155
        %v3157 = vand.u32 %v425, 4294901760
        %3158 = vmatpush.msra.mxu0 %v3157
        %v3159 = vand.u32 %v421, 4294901760
        %3160 = vmatpush.msra.mxu0 %v3159
        %v3161 = vand.u32 %v417, 4294901760
        %3162 = vmatpush.msra.mxu0 %v3161
        %v3163 = vand.u32 %v413, 4294901760
        %3164 = vmatpush.msra.mxu0 %v3163
        %v3165 = vand.u32 %v409, 4294901760
        %3166 = vmatpush.msra.mxu0 %v3165
        %v3167 = vand.u32 %v405, 4294901760
        %3168 = vmatpush.msra.mxu0 %v3167
        %v3169 = vand.u32 %v401, 4294901760
        %3170 = vmatpush.msra.mxu0 %v3169
        %v3171 = vand.u32 %v397, 4294901760
        %3172 = vmatpush.msra.mxu0 %v3171
        %v3173 = vand.u32 %v393, 4294901760
        %3174 = vmatpush.msra.mxu0 %v3173
        %v3175 = vand.u32 %v389, 4294901760
        %3176 = vmatpush.msra.mxu0 %v3175
        %v3177 = vand.u32 %v385, 4294901760
        %3178 = vmatpush.msra.mxu0 %v3177
        %v3179 = vand.u32 %v317, 4294901760
        %3180 = vmatmul.f32.gmra.mxu0 %v3179
        %v3181 = vpop.f32.mrf.mxu0
        %v3182 = vadd.f32 %v3145, %v3181
        %3183 = vdwg.mxu0
        %v3184 = vxor.u32 %v1136, 2147483648
        %v3185 = vmul.f32 %v3184, 1.442695
        %v3186 = vpow.pop %v3185
        %v3187 = vadd.f32 %v3186, 1.0
        %v3188 = vrcp.pop %v3187
        %v3189 = vmul.f32 %v3187, %v3188
        %v3190 = vsub.f32 1.0, %v3189
        %v3191 = vmul.f32 %v3188, %v3190
        %v3192 = vadd.f32 %v3188, %v3191
        %vm3193 = vweird.f32 %v3187
        %vm3194 = vweird.f32 %v3188
        %vm3195 = vmor %vm3193, %vm3194
        %v3196 = vsel %vm3195, %v3188, %v3192
        %v3197 = vand.u32 2147483647, %v3187
        %vm3198 = vcmp.eq.f32.partialorder %v3197, 8.507059e+37
        %v3199 = vand.u32 %v3187, 2147483648
        %v3200 = vor.u32 1.1754944e-38, %v3199
        %v3201 = vsel %vm3198, %v3200, %v3196
        %v3202 = vmul.f32 1.0, %v3201
        %v3203 = vxor.u32 %v1818, 2147483648
        %v3204 = vmul.f32 %v3203, 1.442695
        %v3205 = vpow.pop %v3204
        %v3206 = vadd.f32 %v3205, 1.0
        %v3207 = vrcp.pop %v3206
        %v3208 = vmul.f32 %v3206, %v3207
        %v3209 = vsub.f32 1.0, %v3208
        %v3210 = vmul.f32 %v3207, %v3209
        %v3211 = vadd.f32 %v3207, %v3210
        %vm3212 = vweird.f32 %v3206
        %vm3213 = vweird.f32 %v3207
        %vm3214 = vmor %vm3212, %vm3213
        %v3215 = vsel %vm3214, %v3207, %v3211
        %v3216 = vand.u32 2147483647, %v3206
        %vm3217 = vcmp.eq.f32.partialorder %v3216, 8.507059e+37
        %v3218 = vand.u32 %v3206, 2147483648
        %v3219 = vor.u32 1.1754944e-38, %v3218
        %v3220 = vsel %vm3217, %v3219, %v3215
        %v3221 = vmul.f32 1.0, %v3220
        %v3222 = vmul.f32 %v3202, %v3182
        %v3223 = vadd.f32 %v2500, %v3222
        %v3224 = vtanh.pop %v3223
        %v3225 = vsub.f32 %v314, %v3224
        %v3226 = vmul.f32 %v3221, %v3225
        %v3227 = vadd.f32 %v3226, %v3224
        %3228 = vst [vmem:[%s307] sm:$0xff] %v3227
        %3229 = vst [vmem:[#allocation2] sm:$0xff] %v3227
        %s3230 = sand.u32 %s132, 1
        %s3231 = scalar_lea.sflag [#allocation5], %s3230
        %s3232 = sand.u32 %s132, 1
        %s3233 = smul.addr %s3232, 8
        %s3234 = scalar_lea.vmem [#allocation11], %s3233
        // Predicated region
        $region57: #{tpu_custom_call.1} parent=35 // pred_check
          %p3235 = pneg %p142
        $region58: #{tpu_custom_call.1} parent=35 // pred_check_branch
          %3237 = sbr.rel (%p3235) target = $region60
        $region59: #{tpu_custom_call.1} parent=35 // pred_region
          %3239 = vsyncadd %s3231, 0
          %s3240 = smul.addr %s25, 8
          %s3241 = scalar_lea.hbm %s4, %s3240
          %s3243 = sshll.u32 %s3234, 4
          %s3244 = int_to_ptr.vmem [resolvable:$true] %s3243
          %s3245 = sshll.u32 %s3241, 4
          %s3246 = int_to_ptr.hbm [resolvable:$true] %s3245
          %3248 = dma.vmem_to_hbm [thread:$0]  %s3244, 128, %s3246, %s3231
        $region60: #{tpu_custom_call.1} parent=35 // pred_fallthru
          _
      $region36: #{tpu_custom_call.1} parent=5 // pred_fallthru
        _
      %p3249 = scmp.le.s32.totalorder 2, %s20
      // Predicated region
      $region61: #{tpu_custom_call.1} parent=5 // pred_check
        %p3250 = pneg %p3249
      $region62: #{tpu_custom_call.1} parent=5 // pred_check_branch
        %3252 = sbr.rel (%p3250) target = $region64
      $region63: #{tpu_custom_call.1} parent=5 // pred_region
        %s3253 = ssub.s32 %s20, 2
        // Predicated region
        $region65: #{tpu_custom_call.1} parent=63 // pred_check
          %p3254 = pneg %p148
        $region66: #{tpu_custom_call.1} parent=63 // pred_check_branch
          %3256 = sbr.rel (%p3254) target = $region68
        $region67: #{tpu_custom_call.1} parent=63 // pred_region
          %s3257 = sand.u32 %s133, 1
          %s3258 = scalar_lea.sflag [#allocation5], %s3257
          %s3259 = sand.u32 %s133, 1
          %s3260 = smul.addr %s3259, 8
          %s3261 = scalar_lea.vmem [#allocation11], %s3260
          %3263 = dma.done %s3258, 128
        $region68: #{tpu_custom_call.1} parent=63 // pred_fallthru
          _
      $region64: #{tpu_custom_call.1} parent=5 // pred_fallthru
        _
    $region6: #{tpu_custom_call.1} parent=1 // loop_footer
      %s24 = sadd.s32 1, %s20
    $region7: #{tpu_custom_call.1} parent=1 // loop_footer_branch
      %19 = sbr.rel target = $region3
    $region8: #{tpu_custom_call.1} parent=1 // loop_exit
      _
    %3264 = vsyncpa [#allocation4], 1
    %s3265 = scalar_lea.sflag [#allocation4], 1
    %3266 = vsyncpa %s3265, 1
    %3267 = vsyncpa [#allocation7], 1
    %s3268 = scalar_lea.sflag [#allocation7], 1
    %3269 = vsyncpa %s3268, 1
    %3270 = vsyncpa [#allocation10], 1
    %s3271 = scalar_lea.sflag [#allocation10], 1
    %3272 = vsyncpa %s3271, 1
    %3273 = vsyncpa [#allocation5], 1
    %s3274 = scalar_lea.sflag [#allocation5], 1
    %3275 = vsyncpa %s3274, 1

</llo_original>
